<compile_context>
chip_gen: v7x
topology: tpu7x:2x2x1
jax: 0.10.0
libtpu: 0.0.40
codegen_flags: <defaults>
</compile_context>

<pallas_src>
import functools

import numpy as np
import jax
import jax.numpy as jnp
from jax.experimental import pallas as pl
from jax.experimental.pallas import tpu as pltpu

EPS = 1e-5  # nn.GroupNorm default eps


# --------------------------------- kernel ------------------------------------

def _unet_block_dw_kernel(shifts, tb, hw, eps,
                          x_ref, w1_ref, w2_ref, p1_ref, p2_ref,
                          mask_ref, grp_g_ref, grp_s_ref, out_ref):
    """One grid step (= one batch tile). Shapes (C = out channels, N = tb*hw):
      x_ref    : (Cin, N)   activations in matmul dtype (bf16 or f32)
      w1_ref   : (C, Cin)   dense block-diagonal grouped-1x1 weights, layer 1
      w2_ref   : (C, C)     same for layer 2
      p1/p2    : (C, 13)    [dw taps 0..8 | pw bias | dw bias | gamma | beta]
      mask_ref : (9, N)     depthwise border masks (exact 0/1, stored bf16)
      grp_g_ref: (G, C)     group gather, pre-scaled by 1/(C_per_group * hw)
      grp_s_ref: (C, G)     group scatter (0/1)
      out_ref  : (C, N)     output (f32 or bf16)
    """
    masks = mask_ref[...].astype(jnp.float32)          # (9, N)
    grp_g = grp_g_ref[...]                             # (G, C)
    grp_s = grp_s_ref[...]                             # (C, G)
    G = grp_g.shape[0]

    def depthwise3x3(f, taps, bias):
        # f: (C, N) f32.  Neighbours fetched with static lane rotations (XLU);
        # precomputed masks zero out-of-image taps (and cross-sample wrap).
        acc = taps[:, 4:5] * f + bias                  # centre tap + bias
        for t, s in shifts:                            # 8 static neighbour taps
            nb = pltpu.roll(f, s, axis=1) * masks[t:t + 1, :]
            acc = acc + taps[:, t:t + 1] * nb
        return acc

    def group_norm(f, gamma, beta):
        # Per-(group, sample) stats: small channel-gather matmul, then a
        # cross-lane reduce per contiguous HW segment.  No (N, TB) indicator
        # matmuls and no full-(C, N) broadcast matmuls.
        gsum = jnp.dot(grp_g, f, preferred_element_type=jnp.float32)        # (G, N)
        gsq = jnp.dot(grp_g, f * f, preferred_element_type=jnp.float32)     # (G, N)
        mean = jnp.sum(gsum.reshape(G * tb, hw), axis=-1, keepdims=True)    # (G*tb, 1)
        msq = jnp.sum(gsq.reshape(G * tb, hw), axis=-1, keepdims=True)
        var = jnp.maximum(msq - mean * mean, 0.0)      # guard E[x^2]-E[x]^2 cancellation
        rstd = jax.lax.rsqrt(var + eps)
        mean = mean.reshape(G, tb)
        rstd = rstd.reshape(G, tb)
        # tiny group -> channel scatter ((C,G)x(G,tb)); fuse the affine so the
        # per-element apply is a single mul + add.
        mean_c = jnp.dot(grp_s, mean, preferred_element_type=jnp.float32)   # (C, tb)
        rstd_c = jnp.dot(grp_s, rstd, preferred_element_type=jnp.float32)   # (C, tb)
        scale = rstd_c * gamma                                              # (C, tb)
        shift = beta - mean_c * scale                                       # (C, tb)
        if tb == 1:
            return f * scale + shift                   # plain lane broadcast
        C = scale.shape[0]
        scale_f = jnp.broadcast_to(scale[:, :, None], (C, tb, hw)).reshape(C, tb * hw)
        shift_f = jnp.broadcast_to(shift[:, :, None], (C, tb, hw)).reshape(C, tb * hw)
        return f * scale_f + shift_f

    def dsep_layer(h, w_ref, params):
        taps = params[:, 0:9]
        b_pw = params[:, 9:10]
        b_dw = params[:, 10:11]
        gamma = params[:, 11:12]
        beta = params[:, 12:13]
        # grouped 1x1 conv == block-diagonal dense matmul (MXU, f32 accumulate)
        f = jnp.dot(w_ref[...], h.astype(w_ref.dtype),
                    preferred_element_type=jnp.float32) + b_pw
        f = depthwise3x3(f, taps, b_dw)
        f = group_norm(f, gamma, beta)
        return jnp.maximum(f, 0.0)                     # ReLU

    p1 = p1_ref[...].astype(jnp.float32)
    p2 = p2_ref[...].astype(jnp.float32)
    f1 = dsep_layer(x_ref[...], w1_ref, p1)
    f2 = dsep_layer(f1, w2_ref, p2)
    out_ref[...] = f2.astype(out_ref.dtype)


# --------------------------------- wrapper ------------------------------------

def _block_diag(wg, groups):
    # grouped-conv weight (Cout, Cin//G) -> dense block-diagonal (Cout, Cin)
    co, ci_pg = wg.shape
    co_pg = co // groups
    out = jnp.zeros((co, ci_pg * groups), wg.dtype)
    for g in range(groups):
        out = out.at[g * co_pg:(g + 1) * co_pg,
                     g * ci_pg:(g + 1) * ci_pg].set(wg[g * co_pg:(g + 1) * co_pg])
    return out


def unet_block_dw(x, p, groups, *, matmul_dtype=jnp.bfloat16,
                  out_dtype=jnp.float32, batch_tile=1):
    """Forward pass of UNetBlock_DW (two depthwise-separable conv layers)."""
    B, Cin, H, W = x.shape
    Cout = p["b1p"].shape[0]
    HW = H * W
    assert Cin % groups == 0 and Cout % groups == 0, "channels must divide groups"
    # TODO(synk): pad H*W up to a multiple of 128 (and exclude padded lanes from
    # both the depthwise taps and the GroupNorm statistics) to support arbitrary
    # spatial sizes.
    assert HW % 128 == 0, "wrapper assumes lane-dense H*W (multiple of 128)"

    tb = batch_tile
    assert B % tb == 0
    nblk = B // tb
    N = tb * HW
    cpg = Cout // groups

    # ---- constant tables (built once at trace time) --------------------------
    pos = np.arange(N) % HW
    row, col = pos // W, pos % W
    mask_tab = np.zeros((9, N), np.float32)
    shifts = []
    for dy in (-1, 0, 1):
        for dx in (-1, 0, 1):
            t = (dy + 1) * 3 + (dx + 1)
            mask_tab[t] = ((row + dy >= 0) & (row + dy < H) &
                           (col + dx >= 0) & (col + dx < W)).astype(np.float32)
            if not (dy == 0 and dx == 0):
                shifts.append((t, int((-(dy * W + dx)) % N)))
    shifts = tuple(shifts)

    grp_s = np.kron(np.eye(groups, dtype=np.float32),
                    np.ones((cpg, 1), np.float32))                  # (C, G)
    grp_g = (grp_s.T / float(cpg * HW)).astype(np.float32)          # (G, C)

    # ---- parameters -----------------------------------------------------------
    def pack(dw_w, b_pw, b_dw, gamma, beta):
        return jnp.concatenate(
            [dw_w.reshape(-1, 9), b_pw.reshape(-1, 1), b_dw.reshape(-1, 1),
             gamma.reshape(-1, 1), beta.reshape(-1, 1)], axis=1).astype(jnp.float32)

    w1 = _block_diag(p["w1p"][:, :, 0, 0], groups).astype(matmul_dtype)   # (Cout, Cin)
    w2 = _block_diag(p["w2p"][:, :, 0, 0], groups).astype(matmul_dtype)   # (Cout, Cout)
    p1 = pack(p["w1d"], p["b1p"], p["b1d"], p["g1"], p["be1"])            # (Cout, 13)
    p2 = pack(p["w2d"], p["b2p"], p["b2d"], p["g2"], p["be2"])            # (Cout, 13)

    # ---- activations ----------------------------------------------------------
    if tb == 1:
        x_blk = x.reshape(B, Cin, HW).astype(matmul_dtype)   # pure reshape, no transpose
    else:
        x_blk = (x.reshape(nblk, tb, Cin, HW).transpose(0, 2, 1, 3)
                  .reshape(nblk, Cin, N).astype(matmul_dtype))

    const_args = (w1, w2, p1, p2,
                  jnp.asarray(mask_tab, jnp.bfloat16),        # exact 0/1, half the DMA
                  jnp.asarray(grp_g), jnp.asarray(grp_s))

    # ---- VMEM budget (generation aware) ---------------------------------------
    try:
        phys_vmem = int(pltpu.get_tpu_info().vmem_capacity_bytes)
    except Exception:
        phys_vmem = 64 * 1024 * 1024            # conservative default (v7x per-TC)
    x_block_bytes = Cin * N * jnp.dtype(matmul_dtype).itemsize
    out_block_bytes = Cout * N * jnp.dtype(out_dtype).itemsize
    const_bytes = sum(int(a.size) * a.dtype.itemsize for a in const_args)
    live_f32 = 10 * Cout * N * 4                # rough bound on live (C, N) f32 temps
    footprint = 2 * (x_block_bytes + out_block_bytes) + 2 * const_bytes + live_f32
    vmem_limit = int(min(3 * phys_vmem // 4, max(32 << 20, 2 * footprint)))

    # ---- cost estimate ---------------------------------------------------------
    flops = nblk * (2 * Cout * Cin * N              # pointwise matmul, layer 1
                    + 2 * Cout * Cout * N           # pointwise matmul, layer 2
                    + 2 * 26 * Cout * N             # depthwise taps, both layers
                    + 2 * (4 * groups * Cout * N    # GN gather matmuls
                           + 4 * groups * N + 4 * Cout * N))
    bytes_accessed = int(nblk * (x_block_bytes + out_block_bytes) + const_bytes)

    def build(single_buffer_consts):
        def const_spec(a):
            zeros = (0,) * a.ndim
            if single_buffer_consts:
                return pl.BlockSpec(a.shape, lambda i, z=zeros: z,
                                    pipeline_mode=pl.Buffered(1))
            return pl.BlockSpec(a.shape, lambda i, z=zeros: z)
        return pl.pallas_call(
            functools.partial(_unet_block_dw_kernel, shifts, tb, HW, EPS),
            out_shape=jax.ShapeDtypeStruct((nblk, Cout, N), out_dtype),
            grid=(nblk,),
            in_specs=[pl.BlockSpec((None, Cin, N), lambda i: (i, 0, 0))]
                     + [const_spec(a) for a in const_args],
            out_specs=pl.BlockSpec((None, Cout, N), lambda i: (i, 0, 0)),
            compiler_params=pltpu.CompilerParams(
                dimension_semantics=("parallel",),
                vmem_limit_bytes=vmem_limit),
            cost_estimate=pl.CostEstimate(
                flops=int(flops),
                transcendentals=int(nblk * 2 * groups * tb),
                bytes_accessed=bytes_accessed),
        )

    try:
        # constants never change block index -> single-buffer them to save VMEM
        out = build(True)(x_blk, *const_args)
    except Exception:
        # pipeline_mode=pl.Buffered(1) not supported by this jax build; fall
        # back to default (double-buffered) constant blocks.
        out = build(False)(x_blk, *const_args)

    if tb == 1:
        return out.reshape(B, Cout, H, W)
    return (out.reshape(nblk, Cout, tb, HW).transpose(0, 2, 1, 3)
               .reshape(B, Cout, H, W))


# ------------------------- plain-JAX reference (check) -------------------------

def _conv2d_ref(x, w, b, groups, padding):
    y = jax.lax.conv_general_dilated(
        x, w, window_strides=(1, 1), padding=[(padding, padding)] * 2,
        dimension_numbers=("NCHW", "OIHW", "NCHW"), feature_group_count=groups)
    return y + b[None, :, None, None]


def _gn_ref(x, gamma, beta, groups):
    B, C, H, W = x.shape
    xg = x.reshape(B, groups, C // groups, H, W)
    m = xg.mean(axis=(2, 3, 4), keepdims=True)
    v = ((xg - m) ** 2).mean(axis=(2, 3, 4), keepdims=True)
    y = ((xg - m) / jnp.sqrt(v + EPS)).reshape(B, C, H, W)
    return y * gamma[None, :, None, None] + beta[None, :, None, None]


def ref_forward(x, p, groups):
    def layer(h, wp, bp, wd, bd, g, be):
        f = _conv2d_ref(h, wp, bp, groups, 0)          # grouped 1x1
        f = _conv2d_ref(f, wd, bd, f.shape[1], 1)      # depthwise 3x3, pad 1
        return jax.nn.relu(_gn_ref(f, g, be, groups))  # GroupNorm + ReLU
    f1 = layer(x, p["w1p"], p["b1p"], p["w1d"], p["b1d"], p["g1"], p["be1"])
    f2 = layer(f1, p["w2p"], p["b2p"], p["w2d"], p["b2d"], p["g2"], p["be2"])
    return f2


# ------------------------------- params / main ---------------------------------

def init_params(key, in_chns, out_chns, groups):
    ks = jax.random.split(key, 12)
    n = lambda k, shape, s=0.1: s * jax.random.normal(k, shape, jnp.float32)
    return {
        "w1p": n(ks[0], (out_chns, in_chns // groups, 1, 1)),
        "b1p": n(ks[1], (out_chns,)),
        "w1d": n(ks[2], (out_chns, 1, 3, 3)),
        "b1d": n(ks[3], (out_chns,)),
        "g1": 1.0 + n(ks[4], (out_chns,)),
        "be1": n(ks[5], (out_chns,)),
        "w2p": n(ks[6], (out_chns, out_chns // groups, 1, 1)),
        "b2p": n(ks[7], (out_chns,)),
        "w2d": n(ks[8], (out_chns, 1, 3, 3)),
        "b2d": n(ks[9], (out_chns,)),
        "g2": 1.0 + n(ks[10], (out_chns,)),
        "be2": n(ks[11], (out_chns,)),
    }


if __name__ == "__main__":
    B, Cin, Cout, G, H, W = 2, 4, 8, 2, 16, 16
    key = jax.random.PRNGKey(0)
    kx, kp = jax.random.split(key)
    x = jax.random.normal(kx, (B, Cin, H, W), jnp.float32)
    params = init_params(kp, Cin, Cout, G)

    y_ref = ref_forward(x, params, G)

    # 1) exactness check of the kernel math (f32 MXU path, f32 output)
    y32 = jax.block_until_ready(
        unet_block_dw(x, params, G, matmul_dtype=jnp.float32, out_dtype=jnp.float32))
    err32 = float(jnp.max(jnp.abs(y32 - y_ref)))
    assert y32.shape == (B, Cout, H, W), y32.shape
    assert err32 < 1e-3, f"f32 path max abs err {err32}"

    # 2) perf path: bf16 MXU inputs + bf16 output, f32 accumulation / norm math.
    #    bf16 has an 8-bit mantissa, so use a mixed abs/rel tolerance.
    y = jax.block_until_ready(unet_block_dw(x, params, G, out_dtype=jnp.bfloat16))
    assert y.shape == (B, Cout, H, W), y.shape
    err_bf16 = float(jnp.max(jnp.abs(y.astype(jnp.float32) - y_ref)
                             / (1.0 + jnp.abs(y_ref))))
    assert err_bf16 < 5e-2, f"bf16 path max rel-abs err {err_bf16}"

    print("KERNEL_OK")
</pallas_src>

<mosaic_0001>
module attributes {stable_mosaic.version = 11 : i64} {
  func.func @_unet_block_dw_kernel(%arg0: i32, %arg1: memref<1x4x256xf32, #tpu.memory_space<vmem>>, %arg2: memref<8x4xf32, #tpu.memory_space<vmem>>, %arg3: memref<8x8xf32, #tpu.memory_space<vmem>>, %arg4: memref<8x13xf32, #tpu.memory_space<vmem>>, %arg5: memref<8x13xf32, #tpu.memory_space<vmem>>, %arg6: memref<9x256xbf16, #tpu.memory_space<vmem>>, %arg7: memref<2x8xf32, #tpu.memory_space<vmem>>, %arg8: memref<8x2xf32, #tpu.memory_space<vmem>>, %arg9: memref<1x8x256xf32, #tpu.memory_space<vmem>>) attributes {dimension_semantics = [#tpu.dimension_semantics<parallel>], iteration_bounds = array<i64: 2>, scalar_prefetch = 0 : i64, scratch_operands = 0 : i64, tpu.core_type = #tpu.core_type<tc>, window_params = [{transform_indices = @transform_0, window_bounds = array<i64: 1, 4, 256>}, {pipeline_mode = #tpu.pipeline_mode<synchronous>, transform_indices = @transform_1, window_bounds = array<i64: 8, 4>}, {pipeline_mode = #tpu.pipeline_mode<synchronous>, transform_indices = @transform_2, window_bounds = array<i64: 8, 8>}, {pipeline_mode = #tpu.pipeline_mode<synchronous>, transform_indices = @transform_3, window_bounds = array<i64: 8, 13>}, {pipeline_mode = #tpu.pipeline_mode<synchronous>, transform_indices = @transform_4, window_bounds = array<i64: 8, 13>}, {pipeline_mode = #tpu.pipeline_mode<synchronous>, transform_indices = @transform_5, window_bounds = array<i64: 9, 256>}, {pipeline_mode = #tpu.pipeline_mode<synchronous>, transform_indices = @transform_6, window_bounds = array<i64: 2, 8>}, {pipeline_mode = #tpu.pipeline_mode<synchronous>, transform_indices = @transform_7, window_bounds = array<i64: 8, 2>}, {transform_indices = @transform_8, window_bounds = array<i64: 1, 8, 256>}]} {
    %c0 = arith.constant 0 : index
    %c0_0 = arith.constant 0 : index
    %0 = vector.load %arg6[%c0, %c0_0] : memref<9x256xbf16, #tpu.memory_space<vmem>>, vector<9x256xbf16>
    %1 = arith.extf %0 : vector<9x256xbf16> to vector<9x256xf32>
    %c0_1 = arith.constant 0 : index
    %c0_2 = arith.constant 0 : index
    %2 = vector.load %arg7[%c0_1, %c0_2] : memref<2x8xf32, #tpu.memory_space<vmem>>, vector<2x8xf32>
    %c0_3 = arith.constant 0 : index
    %c0_4 = arith.constant 0 : index
    %3 = vector.load %arg8[%c0_3, %c0_4] : memref<8x2xf32, #tpu.memory_space<vmem>>, vector<8x2xf32>
    %c0_5 = arith.constant 0 : index
    %c0_6 = arith.constant 0 : index
    %4 = vector.load %arg4[%c0_5, %c0_6] : memref<8x13xf32, #tpu.memory_space<vmem>>, vector<8x13xf32>
    %c0_7 = arith.constant 0 : index
    %c0_8 = arith.constant 0 : index
    %5 = vector.load %arg5[%c0_7, %c0_8] : memref<8x13xf32, #tpu.memory_space<vmem>>, vector<8x13xf32>
    %c0_9 = arith.constant 0 : index
    %c0_10 = arith.constant 0 : index
    %c0_11 = arith.constant 0 : index
    %6 = vector.load %arg1[%c0_9, %c0_10, %c0_11] : memref<1x4x256xf32, #tpu.memory_space<vmem>>, vector<1x4x256xf32>
    %7 = vector.shape_cast %6 : vector<1x4x256xf32> to vector<4x256xf32>
    %8 = vector.extract_strided_slice %4 {offsets = [0, 0], sizes = [8, 9], strides = [1, 1]} : vector<8x13xf32> to vector<8x9xf32>
    %9 = vector.extract_strided_slice %4 {offsets = [0, 9], sizes = [8, 1], strides = [1, 1]} : vector<8x13xf32> to vector<8x1xf32>
    %10 = vector.extract_strided_slice %4 {offsets = [0, 10], sizes = [8, 1], strides = [1, 1]} : vector<8x13xf32> to vector<8x1xf32>
    %11 = vector.extract_strided_slice %4 {offsets = [0, 11], sizes = [8, 1], strides = [1, 1]} : vector<8x13xf32> to vector<8x1xf32>
    %12 = vector.extract_strided_slice %4 {offsets = [0, 12], sizes = [8, 1], strides = [1, 1]} : vector<8x13xf32> to vector<8x1xf32>
    %c0_12 = arith.constant 0 : index
    %c0_13 = arith.constant 0 : index
    %13 = vector.load %arg2[%c0_12, %c0_13] : memref<8x4xf32, #tpu.memory_space<vmem>>, vector<8x4xf32>
    %cst = arith.constant dense<0.000000e+00> : vector<8x256xf32>
    %14 = tpu.matmul %13, %7, %cst {dimension_numbers = #tpu.dot_dimension_numbers<[1], [0], [0], [1], [0, 0, 1, 1], [], []>} : vector<8x4xf32>, vector<4x256xf32>, vector<8x256xf32> -> vector<8x256xf32>
    %15 = vector.broadcast %9 : vector<8x1xf32> to vector<8x256xf32>
    %16 = arith.addf %14, %15 : vector<8x256xf32>
    %17 = vector.extract_strided_slice %8 {offsets = [0, 4], sizes = [8, 1], strides = [1, 1]} : vector<8x9xf32> to vector<8x1xf32>
    %18 = vector.broadcast %17 : vector<8x1xf32> to vector<8x256xf32>
    %19 = arith.mulf %18, %16 : vector<8x256xf32>
    %20 = vector.broadcast %10 : vector<8x1xf32> to vector<8x256xf32>
    %21 = arith.addf %19, %20 : vector<8x256xf32>
    %c17_i32 = arith.constant 17 : i32
    %22 = tpu.dynamic_rotate %16 by %c17_i32 dim 1 : vector<8x256xf32>, i32 -> vector<8x256xf32>
    %23 = vector.extract_strided_slice %1 {offsets = [0, 0], sizes = [1, 256], strides = [1, 1]} : vector<9x256xf32> to vector<1x256xf32>
    %24 = vector.broadcast %23 : vector<1x256xf32> to vector<8x256xf32>
    %25 = arith.mulf %22, %24 : vector<8x256xf32>
    %26 = vector.extract_strided_slice %8 {offsets = [0, 0], sizes = [8, 1], strides = [1, 1]} : vector<8x9xf32> to vector<8x1xf32>
    %27 = vector.broadcast %26 : vector<8x1xf32> to vector<8x256xf32>
    %28 = arith.mulf %27, %25 : vector<8x256xf32>
    %29 = arith.addf %21, %28 : vector<8x256xf32>
    %c16_i32 = arith.constant 16 : i32
    %30 = tpu.dynamic_rotate %16 by %c16_i32 dim 1 : vector<8x256xf32>, i32 -> vector<8x256xf32>
    %31 = vector.extract_strided_slice %1 {offsets = [1, 0], sizes = [1, 256], strides = [1, 1]} : vector<9x256xf32> to vector<1x256xf32>
    %32 = vector.broadcast %31 : vector<1x256xf32> to vector<8x256xf32>
    %33 = arith.mulf %30, %32 : vector<8x256xf32>
    %34 = vector.extract_strided_slice %8 {offsets = [0, 1], sizes = [8, 1], strides = [1, 1]} : vector<8x9xf32> to vector<8x1xf32>
    %35 = vector.broadcast %34 : vector<8x1xf32> to vector<8x256xf32>
    %36 = arith.mulf %35, %33 : vector<8x256xf32>
    %37 = arith.addf %29, %36 : vector<8x256xf32>
    %c15_i32 = arith.constant 15 : i32
    %38 = tpu.dynamic_rotate %16 by %c15_i32 dim 1 : vector<8x256xf32>, i32 -> vector<8x256xf32>
    %39 = vector.extract_strided_slice %1 {offsets = [2, 0], sizes = [1, 256], strides = [1, 1]} : vector<9x256xf32> to vector<1x256xf32>
    %40 = vector.broadcast %39 : vector<1x256xf32> to vector<8x256xf32>
    %41 = arith.mulf %38, %40 : vector<8x256xf32>
    %42 = vector.extract_strided_slice %8 {offsets = [0, 2], sizes = [8, 1], strides = [1, 1]} : vector<8x9xf32> to vector<8x1xf32>
    %43 = vector.broadcast %42 : vector<8x1xf32> to vector<8x256xf32>
    %44 = arith.mulf %43, %41 : vector<8x256xf32>
    %45 = arith.addf %37, %44 : vector<8x256xf32>
    %c1_i32 = arith.constant 1 : i32
    %46 = tpu.dynamic_rotate %16 by %c1_i32 dim 1 : vector<8x256xf32>, i32 -> vector<8x256xf32>
    %47 = vector.extract_strided_slice %1 {offsets = [3, 0], sizes = [1, 256], strides = [1, 1]} : vector<9x256xf32> to vector<1x256xf32>
    %48 = vector.broadcast %47 : vector<1x256xf32> to vector<8x256xf32>
    %49 = arith.mulf %46, %48 : vector<8x256xf32>
    %50 = vector.extract_strided_slice %8 {offsets = [0, 3], sizes = [8, 1], strides = [1, 1]} : vector<8x9xf32> to vector<8x1xf32>
    %51 = vector.broadcast %50 : vector<8x1xf32> to vector<8x256xf32>
    %52 = arith.mulf %51, %49 : vector<8x256xf32>
    %53 = arith.addf %45, %52 : vector<8x256xf32>
    %c255_i32 = arith.constant 255 : i32
    %54 = tpu.dynamic_rotate %16 by %c255_i32 dim 1 : vector<8x256xf32>, i32 -> vector<8x256xf32>
    %55 = vector.extract_strided_slice %1 {offsets = [5, 0], sizes = [1, 256], strides = [1, 1]} : vector<9x256xf32> to vector<1x256xf32>
    %56 = vector.broadcast %55 : vector<1x256xf32> to vector<8x256xf32>
    %57 = arith.mulf %54, %56 : vector<8x256xf32>
    %58 = vector.extract_strided_slice %8 {offsets = [0, 5], sizes = [8, 1], strides = [1, 1]} : vector<8x9xf32> to vector<8x1xf32>
    %59 = vector.broadcast %58 : vector<8x1xf32> to vector<8x256xf32>
    %60 = arith.mulf %59, %57 : vector<8x256xf32>
    %61 = arith.addf %53, %60 : vector<8x256xf32>
    %c241_i32 = arith.constant 241 : i32
    %62 = tpu.dynamic_rotate %16 by %c241_i32 dim 1 : vector<8x256xf32>, i32 -> vector<8x256xf32>
    %63 = vector.extract_strided_slice %1 {offsets = [6, 0], sizes = [1, 256], strides = [1, 1]} : vector<9x256xf32> to vector<1x256xf32>
    %64 = vector.broadcast %63 : vector<1x256xf32> to vector<8x256xf32>
    %65 = arith.mulf %62, %64 : vector<8x256xf32>
    %66 = vector.extract_strided_slice %8 {offsets = [0, 6], sizes = [8, 1], strides = [1, 1]} : vector<8x9xf32> to vector<8x1xf32>
    %67 = vector.broadcast %66 : vector<8x1xf32> to vector<8x256xf32>
    %68 = arith.mulf %67, %65 : vector<8x256xf32>
    %69 = arith.addf %61, %68 : vector<8x256xf32>
    %c240_i32 = arith.constant 240 : i32
    %70 = tpu.dynamic_rotate %16 by %c240_i32 dim 1 : vector<8x256xf32>, i32 -> vector<8x256xf32>
    %71 = vector.extract_strided_slice %1 {offsets = [7, 0], sizes = [1, 256], strides = [1, 1]} : vector<9x256xf32> to vector<1x256xf32>
    %72 = vector.broadcast %71 : vector<1x256xf32> to vector<8x256xf32>
    %73 = arith.mulf %70, %72 : vector<8x256xf32>
    %74 = vector.extract_strided_slice %8 {offsets = [0, 7], sizes = [8, 1], strides = [1, 1]} : vector<8x9xf32> to vector<8x1xf32>
    %75 = vector.broadcast %74 : vector<8x1xf32> to vector<8x256xf32>
    %76 = arith.mulf %75, %73 : vector<8x256xf32>
    %77 = arith.addf %69, %76 : vector<8x256xf32>
    %c239_i32 = arith.constant 239 : i32
    %78 = tpu.dynamic_rotate %16 by %c239_i32 dim 1 : vector<8x256xf32>, i32 -> vector<8x256xf32>
    %79 = vector.extract_strided_slice %1 {offsets = [8, 0], sizes = [1, 256], strides = [1, 1]} : vector<9x256xf32> to vector<1x256xf32>
    %80 = vector.broadcast %79 : vector<1x256xf32> to vector<8x256xf32>
    %81 = arith.mulf %78, %80 : vector<8x256xf32>
    %82 = vector.extract_strided_slice %8 {offsets = [0, 8], sizes = [8, 1], strides = [1, 1]} : vector<8x9xf32> to vector<8x1xf32>
    %83 = vector.broadcast %82 : vector<8x1xf32> to vector<8x256xf32>
    %84 = arith.mulf %83, %81 : vector<8x256xf32>
    %85 = arith.addf %77, %84 : vector<8x256xf32>
    %cst_14 = arith.constant dense<0.000000e+00> : vector<2x256xf32>
    %86 = tpu.matmul %2, %85, %cst_14 {dimension_numbers = #tpu.dot_dimension_numbers<[1], [0], [0], [1], [0, 0, 1, 1], [], []>} : vector<2x8xf32>, vector<8x256xf32>, vector<2x256xf32> -> vector<2x256xf32>
    %87 = arith.mulf %85, %85 : vector<8x256xf32>
    %cst_15 = arith.constant dense<0.000000e+00> : vector<2x256xf32>
    %88 = tpu.matmul %2, %87, %cst_15 {dimension_numbers = #tpu.dot_dimension_numbers<[1], [0], [0], [1], [0, 0, 1, 1], [], []>} : vector<2x8xf32>, vector<8x256xf32>, vector<2x256xf32> -> vector<2x256xf32>
    %cst_16 = arith.constant dense<0.000000e+00> : vector<2xf32>
    %89 = vector.multi_reduction <add>, %86, %cst_16 [1] : vector<2x256xf32> to vector<2xf32>
    %90 = vector.shape_cast %89 : vector<2xf32> to vector<2x1xf32>
    %cst_17 = arith.constant dense<0.000000e+00> : vector<2xf32>
    %91 = vector.multi_reduction <add>, %88, %cst_17 [1] : vector<2x256xf32> to vector<2xf32>
    %92 = vector.shape_cast %91 : vector<2xf32> to vector<2x1xf32>
    %93 = arith.mulf %90, %90 : vector<2x1xf32>
    %94 = arith.subf %92, %93 : vector<2x1xf32>
    %cst_18 = arith.constant 0.000000e+00 : f32
    %95 = vector.broadcast %cst_18 : f32 to vector<2x1xf32>
    %96 = arith.maximumf %94, %95 : vector<2x1xf32>
    %cst_19 = arith.constant 9.99999974E-6 : f32
    %97 = vector.broadcast %cst_19 : f32 to vector<2x1xf32>
    %98 = arith.addf %96, %97 : vector<2x1xf32>
    %99 = math.rsqrt %98 : vector<2x1xf32>
    %cst_20 = arith.constant dense<0.000000e+00> : vector<8x1xf32>
    %100 = tpu.matmul %3, %90, %cst_20 {dimension_numbers = #tpu.dot_dimension_numbers<[1], [0], [0], [1], [0, 0, 1, 1], [], []>} : vector<8x2xf32>, vector<2x1xf32>, vector<8x1xf32> -> vector<8x1xf32>
    %cst_21 = arith.constant dense<0.000000e+00> : vector<8x1xf32>
    %101 = tpu.matmul %3, %99, %cst_21 {dimension_numbers = #tpu.dot_dimension_numbers<[1], [0], [0], [1], [0, 0, 1, 1], [], []>} : vector<8x2xf32>, vector<2x1xf32>, vector<8x1xf32> -> vector<8x1xf32>
    %102 = arith.mulf %101, %11 : vector<8x1xf32>
    %103 = arith.mulf %100, %102 : vector<8x1xf32>
    %104 = arith.subf %12, %103 : vector<8x1xf32>
    %105 = vector.broadcast %102 : vector<8x1xf32> to vector<8x256xf32>
    %106 = arith.mulf %85, %105 : vector<8x256xf32>
    %107 = vector.broadcast %104 : vector<8x1xf32> to vector<8x256xf32>
    %108 = arith.addf %106, %107 : vector<8x256xf32>
    %cst_22 = arith.constant 0.000000e+00 : f32
    %109 = vector.broadcast %cst_22 : f32 to vector<8x256xf32>
    %110 = arith.maximumf %108, %109 : vector<8x256xf32>
    %111 = vector.extract_strided_slice %5 {offsets = [0, 0], sizes = [8, 9], strides = [1, 1]} : vector<8x13xf32> to vector<8x9xf32>
    %112 = vector.extract_strided_slice %5 {offsets = [0, 9], sizes = [8, 1], strides = [1, 1]} : vector<8x13xf32> to vector<8x1xf32>
    %113 = vector.extract_strided_slice %5 {offsets = [0, 10], sizes = [8, 1], strides = [1, 1]} : vector<8x13xf32> to vector<8x1xf32>
    %114 = vector.extract_strided_slice %5 {offsets = [0, 11], sizes = [8, 1], strides = [1, 1]} : vector<8x13xf32> to vector<8x1xf32>
    %115 = vector.extract_strided_slice %5 {offsets = [0, 12], sizes = [8, 1], strides = [1, 1]} : vector<8x13xf32> to vector<8x1xf32>
    %c0_23 = arith.constant 0 : index
    %c0_24 = arith.constant 0 : index
    %116 = vector.load %arg3[%c0_23, %c0_24] : memref<8x8xf32, #tpu.memory_space<vmem>>, vector<8x8xf32>
    %cst_25 = arith.constant dense<0.000000e+00> : vector<8x256xf32>
    %117 = tpu.matmul %116, %110, %cst_25 {dimension_numbers = #tpu.dot_dimension_numbers<[1], [0], [0], [1], [0, 0, 1, 1], [], []>} : vector<8x8xf32>, vector<8x256xf32>, vector<8x256xf32> -> vector<8x256xf32>
    %118 = vector.broadcast %112 : vector<8x1xf32> to vector<8x256xf32>
    %119 = arith.addf %117, %118 : vector<8x256xf32>
    %120 = vector.extract_strided_slice %111 {offsets = [0, 4], sizes = [8, 1], strides = [1, 1]} : vector<8x9xf32> to vector<8x1xf32>
    %121 = vector.broadcast %120 : vector<8x1xf32> to vector<8x256xf32>
    %122 = arith.mulf %121, %119 : vector<8x256xf32>
    %123 = vector.broadcast %113 : vector<8x1xf32> to vector<8x256xf32>
    %124 = arith.addf %122, %123 : vector<8x256xf32>
    %c17_i32_26 = arith.constant 17 : i32
    %125 = tpu.dynamic_rotate %119 by %c17_i32_26 dim 1 : vector<8x256xf32>, i32 -> vector<8x256xf32>
    %126 = vector.extract_strided_slice %1 {offsets = [0, 0], sizes = [1, 256], strides = [1, 1]} : vector<9x256xf32> to vector<1x256xf32>
    %127 = vector.broadcast %126 : vector<1x256xf32> to vector<8x256xf32>
    %128 = arith.mulf %125, %127 : vector<8x256xf32>
    %129 = vector.extract_strided_slice %111 {offsets = [0, 0], sizes = [8, 1], strides = [1, 1]} : vector<8x9xf32> to vector<8x1xf32>
    %130 = vector.broadcast %129 : vector<8x1xf32> to vector<8x256xf32>
    %131 = arith.mulf %130, %128 : vector<8x256xf32>
    %132 = arith.addf %124, %131 : vector<8x256xf32>
    %c16_i32_27 = arith.constant 16 : i32
    %133 = tpu.dynamic_rotate %119 by %c16_i32_27 dim 1 : vector<8x256xf32>, i32 -> vector<8x256xf32>
    %134 = vector.extract_strided_slice %1 {offsets = [1, 0], sizes = [1, 256], strides = [1, 1]} : vector<9x256xf32> to vector<1x256xf32>
    %135 = vector.broadcast %134 : vector<1x256xf32> to vector<8x256xf32>
    %136 = arith.mulf %133, %135 : vector<8x256xf32>
    %137 = vector.extract_strided_slice %111 {offsets = [0, 1], sizes = [8, 1], strides = [1, 1]} : vector<8x9xf32> to vector<8x1xf32>
    %138 = vector.broadcast %137 : vector<8x1xf32> to vector<8x256xf32>
    %139 = arith.mulf %138, %136 : vector<8x256xf32>
    %140 = arith.addf %132, %139 : vector<8x256xf32>
    %c15_i32_28 = arith.constant 15 : i32
    %141 = tpu.dynamic_rotate %119 by %c15_i32_28 dim 1 : vector<8x256xf32>, i32 -> vector<8x256xf32>
    %142 = vector.extract_strided_slice %1 {offsets = [2, 0], sizes = [1, 256], strides = [1, 1]} : vector<9x256xf32> to vector<1x256xf32>
    %143 = vector.broadcast %142 : vector<1x256xf32> to vector<8x256xf32>
    %144 = arith.mulf %141, %143 : vector<8x256xf32>
    %145 = vector.extract_strided_slice %111 {offsets = [0, 2], sizes = [8, 1], strides = [1, 1]} : vector<8x9xf32> to vector<8x1xf32>
    %146 = vector.broadcast %145 : vector<8x1xf32> to vector<8x256xf32>
    %147 = arith.mulf %146, %144 : vector<8x256xf32>
    %148 = arith.addf %140, %147 : vector<8x256xf32>
    %c1_i32_29 = arith.constant 1 : i32
    %149 = tpu.dynamic_rotate %119 by %c1_i32_29 dim 1 : vector<8x256xf32>, i32 -> vector<8x256xf32>
    %150 = vector.extract_strided_slice %1 {offsets = [3, 0], sizes = [1, 256], strides = [1, 1]} : vector<9x256xf32> to vector<1x256xf32>
    %151 = vector.broadcast %150 : vector<1x256xf32> to vector<8x256xf32>
    %152 = arith.mulf %149, %151 : vector<8x256xf32>
    %153 = vector.extract_strided_slice %111 {offsets = [0, 3], sizes = [8, 1], strides = [1, 1]} : vector<8x9xf32> to vector<8x1xf32>
    %154 = vector.broadcast %153 : vector<8x1xf32> to vector<8x256xf32>
    %155 = arith.mulf %154, %152 : vector<8x256xf32>
    %156 = arith.addf %148, %155 : vector<8x256xf32>
    %c255_i32_30 = arith.constant 255 : i32
    %157 = tpu.dynamic_rotate %119 by %c255_i32_30 dim 1 : vector<8x256xf32>, i32 -> vector<8x256xf32>
    %158 = vector.extract_strided_slice %1 {offsets = [5, 0], sizes = [1, 256], strides = [1, 1]} : vector<9x256xf32> to vector<1x256xf32>
    %159 = vector.broadcast %158 : vector<1x256xf32> to vector<8x256xf32>
    %160 = arith.mulf %157, %159 : vector<8x256xf32>
    %161 = vector.extract_strided_slice %111 {offsets = [0, 5], sizes = [8, 1], strides = [1, 1]} : vector<8x9xf32> to vector<8x1xf32>
    %162 = vector.broadcast %161 : vector<8x1xf32> to vector<8x256xf32>
    %163 = arith.mulf %162, %160 : vector<8x256xf32>
    %164 = arith.addf %156, %163 : vector<8x256xf32>
    %c241_i32_31 = arith.constant 241 : i32
    %165 = tpu.dynamic_rotate %119 by %c241_i32_31 dim 1 : vector<8x256xf32>, i32 -> vector<8x256xf32>
    %166 = vector.extract_strided_slice %1 {offsets = [6, 0], sizes = [1, 256], strides = [1, 1]} : vector<9x256xf32> to vector<1x256xf32>
    %167 = vector.broadcast %166 : vector<1x256xf32> to vector<8x256xf32>
    %168 = arith.mulf %165, %167 : vector<8x256xf32>
    %169 = vector.extract_strided_slice %111 {offsets = [0, 6], sizes = [8, 1], strides = [1, 1]} : vector<8x9xf32> to vector<8x1xf32>
    %170 = vector.broadcast %169 : vector<8x1xf32> to vector<8x256xf32>
    %171 = arith.mulf %170, %168 : vector<8x256xf32>
    %172 = arith.addf %164, %171 : vector<8x256xf32>
    %c240_i32_32 = arith.constant 240 : i32
    %173 = tpu.dynamic_rotate %119 by %c240_i32_32 dim 1 : vector<8x256xf32>, i32 -> vector<8x256xf32>
    %174 = vector.extract_strided_slice %1 {offsets = [7, 0], sizes = [1, 256], strides = [1, 1]} : vector<9x256xf32> to vector<1x256xf32>
    %175 = vector.broadcast %174 : vector<1x256xf32> to vector<8x256xf32>
    %176 = arith.mulf %173, %175 : vector<8x256xf32>
    %177 = vector.extract_strided_slice %111 {offsets = [0, 7], sizes = [8, 1], strides = [1, 1]} : vector<8x9xf32> to vector<8x1xf32>
    %178 = vector.broadcast %177 : vector<8x1xf32> to vector<8x256xf32>
    %179 = arith.mulf %178, %176 : vector<8x256xf32>
    %180 = arith.addf %172, %179 : vector<8x256xf32>
    %c239_i32_33 = arith.constant 239 : i32
    %181 = tpu.dynamic_rotate %119 by %c239_i32_33 dim 1 : vector<8x256xf32>, i32 -> vector<8x256xf32>
    %182 = vector.extract_strided_slice %1 {offsets = [8, 0], sizes = [1, 256], strides = [1, 1]} : vector<9x256xf32> to vector<1x256xf32>
    %183 = vector.broadcast %182 : vector<1x256xf32> to vector<8x256xf32>
    %184 = arith.mulf %181, %183 : vector<8x256xf32>
    %185 = vector.extract_strided_slice %111 {offsets = [0, 8], sizes = [8, 1], strides = [1, 1]} : vector<8x9xf32> to vector<8x1xf32>
    %186 = vector.broadcast %185 : vector<8x1xf32> to vector<8x256xf32>
    %187 = arith.mulf %186, %184 : vector<8x256xf32>
    %188 = arith.addf %180, %187 : vector<8x256xf32>
    %cst_34 = arith.constant dense<0.000000e+00> : vector<2x256xf32>
    %189 = tpu.matmul %2, %188, %cst_34 {dimension_numbers = #tpu.dot_dimension_numbers<[1], [0], [0], [1], [0, 0, 1, 1], [], []>} : vector<2x8xf32>, vector<8x256xf32>, vector<2x256xf32> -> vector<2x256xf32>
    %190 = arith.mulf %188, %188 : vector<8x256xf32>
    %cst_35 = arith.constant dense<0.000000e+00> : vector<2x256xf32>
    %191 = tpu.matmul %2, %190, %cst_35 {dimension_numbers = #tpu.dot_dimension_numbers<[1], [0], [0], [1], [0, 0, 1, 1], [], []>} : vector<2x8xf32>, vector<8x256xf32>, vector<2x256xf32> -> vector<2x256xf32>
    %cst_36 = arith.constant dense<0.000000e+00> : vector<2xf32>
    %192 = vector.multi_reduction <add>, %189, %cst_36 [1] : vector<2x256xf32> to vector<2xf32>
    %193 = vector.shape_cast %192 : vector<2xf32> to vector<2x1xf32>
    %cst_37 = arith.constant dense<0.000000e+00> : vector<2xf32>
    %194 = vector.multi_reduction <add>, %191, %cst_37 [1] : vector<2x256xf32> to vector<2xf32>
    %195 = vector.shape_cast %194 : vector<2xf32> to vector<2x1xf32>
    %196 = arith.mulf %193, %193 : vector<2x1xf32>
    %197 = arith.subf %195, %196 : vector<2x1xf32>
    %cst_38 = arith.constant 0.000000e+00 : f32
    %198 = vector.broadcast %cst_38 : f32 to vector<2x1xf32>
    %199 = arith.maximumf %197, %198 : vector<2x1xf32>
    %cst_39 = arith.constant 9.99999974E-6 : f32
    %200 = vector.broadcast %cst_39 : f32 to vector<2x1xf32>
    %201 = arith.addf %199, %200 : vector<2x1xf32>
    %202 = math.rsqrt %201 : vector<2x1xf32>
    %cst_40 = arith.constant dense<0.000000e+00> : vector<8x1xf32>
    %203 = tpu.matmul %3, %193, %cst_40 {dimension_numbers = #tpu.dot_dimension_numbers<[1], [0], [0], [1], [0, 0, 1, 1], [], []>} : vector<8x2xf32>, vector<2x1xf32>, vector<8x1xf32> -> vector<8x1xf32>
    %cst_41 = arith.constant dense<0.000000e+00> : vector<8x1xf32>
    %204 = tpu.matmul %3, %202, %cst_41 {dimension_numbers = #tpu.dot_dimension_numbers<[1], [0], [0], [1], [0, 0, 1, 1], [], []>} : vector<8x2xf32>, vector<2x1xf32>, vector<8x1xf32> -> vector<8x1xf32>
    %205 = arith.mulf %204, %114 : vector<8x1xf32>
    %206 = arith.mulf %203, %205 : vector<8x1xf32>
    %207 = arith.subf %115, %206 : vector<8x1xf32>
    %208 = vector.broadcast %205 : vector<8x1xf32> to vector<8x256xf32>
    %209 = arith.mulf %188, %208 : vector<8x256xf32>
    %210 = vector.broadcast %207 : vector<8x1xf32> to vector<8x256xf32>
    %211 = arith.addf %209, %210 : vector<8x256xf32>
    %cst_42 = arith.constant 0.000000e+00 : f32
    %212 = vector.broadcast %cst_42 : f32 to vector<8x256xf32>
    %213 = arith.maximumf %211, %212 : vector<8x256xf32>
    %c0_43 = arith.constant 0 : index
    %c0_44 = arith.constant 0 : index
    %c0_45 = arith.constant 0 : index
    %214 = vector.load %arg9[%c0_43, %c0_44, %c0_45] : memref<1x8x256xf32, #tpu.memory_space<vmem>>, vector<1x8x256xf32>
    %215 = vector.shape_cast %214 : vector<1x8x256xf32> to vector<8x256xf32>
    %216 = vector.shape_cast %213 : vector<8x256xf32> to vector<1x8x256xf32>
    tpu.vector_store %arg9[%c0_43, %c0_44, %c0_45], %216 {strides = array<i32>} : memref<1x8x256xf32, #tpu.memory_space<vmem>>, vector<1x8x256xf32>,
    return
  }
  func.func @transform_0(%arg0: i32) -> (i32, i32, i32) {
    %c0_i32 = arith.constant 0 : i32
    %c0_i32_0 = arith.constant 0 : i32
    %c0_i32_1 = arith.constant 0 : i32
    return %arg0, %c0_i32, %c0_i32_0 : i32, i32, i32
  }
  func.func @transform_1(%arg0: i32) -> (i32, i32) {
    %c0_i32 = arith.constant 0 : i32
    %c0_i32_0 = arith.constant 0 : i32
    %c0_i32_1 = arith.constant 0 : i32
    return %c0_i32, %c0_i32_0 : i32, i32
  }
  func.func @transform_2(%arg0: i32) -> (i32, i32) {
    %c0_i32 = arith.constant 0 : i32
    %c0_i32_0 = arith.constant 0 : i32
    %c0_i32_1 = arith.constant 0 : i32
    return %c0_i32, %c0_i32_0 : i32, i32
  }
  func.func @transform_3(%arg0: i32) -> (i32, i32) {
    %c0_i32 = arith.constant 0 : i32
    %c0_i32_0 = arith.constant 0 : i32
    %c0_i32_1 = arith.constant 0 : i32
    return %c0_i32, %c0_i32_0 : i32, i32
  }
  func.func @transform_4(%arg0: i32) -> (i32, i32) {
    %c0_i32 = arith.constant 0 : i32
    %c0_i32_0 = arith.constant 0 : i32
    %c0_i32_1 = arith.constant 0 : i32
    return %c0_i32, %c0_i32_0 : i32, i32
  }
  func.func @transform_5(%arg0: i32) -> (i32, i32) {
    %c0_i32 = arith.constant 0 : i32
    %c0_i32_0 = arith.constant 0 : i32
    %c0_i32_1 = arith.constant 0 : i32
    return %c0_i32, %c0_i32_0 : i32, i32
  }
  func.func @transform_6(%arg0: i32) -> (i32, i32) {
    %c0_i32 = arith.constant 0 : i32
    %c0_i32_0 = arith.constant 0 : i32
    %c0_i32_1 = arith.constant 0 : i32
    return %c0_i32, %c0_i32_0 : i32, i32
  }
  func.func @transform_7(%arg0: i32) -> (i32, i32) {
    %c0_i32 = arith.constant 0 : i32
    %c0_i32_0 = arith.constant 0 : i32
    %c0_i32_1 = arith.constant 0 : i32
    return %c0_i32, %c0_i32_0 : i32, i32
  }
  func.func @transform_8(%arg0: i32) -> (i32, i32, i32) {
    %c0_i32 = arith.constant 0 : i32
    %c0_i32_0 = arith.constant 0 : i32
    %c0_i32_1 = arith.constant 0 : i32
    return %arg0, %c0_i32, %c0_i32_0 : i32, i32, i32
  }
}

module attributes {stable_mosaic.version = 11 : i64} {
  func.func @_unet_block_dw_kernel(%arg0: i32, %arg1: memref<1x4x256xf32, #tpu.memory_space<vmem>>, %arg2: memref<8x4xf32, #tpu.memory_space<vmem>>, %arg3: memref<8x8xf32, #tpu.memory_space<vmem>>, %arg4: memref<8x13xf32, #tpu.memory_space<vmem>>, %arg5: memref<8x13xf32, #tpu.memory_space<vmem>>, %arg6: memref<9x256xbf16, #tpu.memory_space<vmem>>, %arg7: memref<2x8xf32, #tpu.memory_space<vmem>>, %arg8: memref<8x2xf32, #tpu.memory_space<vmem>>, %arg9: memref<1x8x256xf32, #tpu.memory_space<vmem>>) attributes {dimension_semantics = [#tpu.dimension_semantics<parallel>], iteration_bounds = array<i64: 2>, scalar_prefetch = 0 : i64, scratch_operands = 0 : i64, tpu.core_type = #tpu.core_type<tc>, window_params = [{transform_indices = @transform_0, window_bounds = array<i64: 1, 4, 256>}, {pipeline_mode = #tpu.pipeline_mode<synchronous>, transform_indices = @transform_1, window_bounds = array<i64: 8, 4>}, {pipeline_mode = #tpu.pipeline_mode<synchronous>, transform_indices = @transform_2, window_bounds = array<i64: 8, 8>}, {pipeline_mode = #tpu.pipeline_mode<synchronous>, transform_indices = @transform_3, window_bounds = array<i64: 8, 13>}, {pipeline_mode = #tpu.pipeline_mode<synchronous>, transform_indices = @transform_4, window_bounds = array<i64: 8, 13>}, {pipeline_mode = #tpu.pipeline_mode<synchronous>, transform_indices = @transform_5, window_bounds = array<i64: 9, 256>}, {pipeline_mode = #tpu.pipeline_mode<synchronous>, transform_indices = @transform_6, window_bounds = array<i64: 2, 8>}, {pipeline_mode = #tpu.pipeline_mode<synchronous>, transform_indices = @transform_7, window_bounds = array<i64: 8, 2>}, {transform_indices = @transform_8, window_bounds = array<i64: 1, 8, 256>}]} {
    %c0 = arith.constant 0 : index
    %c0_0 = arith.constant 0 : index
    %0 = vector.load %arg6[%c0, %c0_0] : memref<9x256xbf16, #tpu.memory_space<vmem>>, vector<9x256xbf16>
    %1 = arith.extf %0 : vector<9x256xbf16> to vector<9x256xf32>
    %c0_1 = arith.constant 0 : index
    %c0_2 = arith.constant 0 : index
    %2 = vector.load %arg7[%c0_1, %c0_2] : memref<2x8xf32, #tpu.memory_space<vmem>>, vector<2x8xf32>
    %c0_3 = arith.constant 0 : index
    %c0_4 = arith.constant 0 : index
    %3 = vector.load %arg8[%c0_3, %c0_4] : memref<8x2xf32, #tpu.memory_space<vmem>>, vector<8x2xf32>
    %c0_5 = arith.constant 0 : index
    %c0_6 = arith.constant 0 : index
    %4 = vector.load %arg4[%c0_5, %c0_6] : memref<8x13xf32, #tpu.memory_space<vmem>>, vector<8x13xf32>
    %c0_7 = arith.constant 0 : index
    %c0_8 = arith.constant 0 : index
    %5 = vector.load %arg5[%c0_7, %c0_8] : memref<8x13xf32, #tpu.memory_space<vmem>>, vector<8x13xf32>
    %c0_9 = arith.constant 0 : index
    %c0_10 = arith.constant 0 : index
    %c0_11 = arith.constant 0 : index
    %6 = vector.load %arg1[%c0_9, %c0_10, %c0_11] : memref<1x4x256xf32, #tpu.memory_space<vmem>>, vector<1x4x256xf32>
    %7 = vector.shape_cast %6 : vector<1x4x256xf32> to vector<4x256xf32>
    %8 = vector.extract_strided_slice %4 {offsets = [0, 0], sizes = [8, 9], strides = [1, 1]} : vector<8x13xf32> to vector<8x9xf32>
    %9 = vector.extract_strided_slice %4 {offsets = [0, 9], sizes = [8, 1], strides = [1, 1]} : vector<8x13xf32> to vector<8x1xf32>
    %10 = vector.extract_strided_slice %4 {offsets = [0, 10], sizes = [8, 1], strides = [1, 1]} : vector<8x13xf32> to vector<8x1xf32>
    %11 = vector.extract_strided_slice %4 {offsets = [0, 11], sizes = [8, 1], strides = [1, 1]} : vector<8x13xf32> to vector<8x1xf32>
    %12 = vector.extract_strided_slice %4 {offsets = [0, 12], sizes = [8, 1], strides = [1, 1]} : vector<8x13xf32> to vector<8x1xf32>
    %c0_12 = arith.constant 0 : index
    %c0_13 = arith.constant 0 : index
    %13 = vector.load %arg2[%c0_12, %c0_13] : memref<8x4xf32, #tpu.memory_space<vmem>>, vector<8x4xf32>
    %cst = arith.constant dense<0.000000e+00> : vector<8x256xf32>
    %14 = tpu.matmul %13, %7, %cst {dimension_numbers = #tpu.dot_dimension_numbers<[1], [0], [0], [1], [0, 0, 1, 1], [], []>} : vector<8x4xf32>, vector<4x256xf32>, vector<8x256xf32> -> vector<8x256xf32>
    %15 = vector.broadcast %9 : vector<8x1xf32> to vector<8x256xf32>
    %16 = arith.addf %14, %15 : vector<8x256xf32>
    %17 = vector.extract_strided_slice %8 {offsets = [0, 4], sizes = [8, 1], strides = [1, 1]} : vector<8x9xf32> to vector<8x1xf32>
    %18 = vector.broadcast %17 : vector<8x1xf32> to vector<8x256xf32>
    %19 = arith.mulf %18, %16 : vector<8x256xf32>
    %20 = vector.broadcast %10 : vector<8x1xf32> to vector<8x256xf32>
    %21 = arith.addf %19, %20 : vector<8x256xf32>
    %c17_i32 = arith.constant 17 : i32
    %22 = tpu.dynamic_rotate %16 by %c17_i32 dim 1 : vector<8x256xf32>, i32 -> vector<8x256xf32>
    %23 = vector.extract_strided_slice %1 {offsets = [0, 0], sizes = [1, 256], strides = [1, 1]} : vector<9x256xf32> to vector<1x256xf32>
    %24 = vector.broadcast %23 : vector<1x256xf32> to vector<8x256xf32>
    %25 = arith.mulf %22, %24 : vector<8x256xf32>
    %26 = vector.extract_strided_slice %8 {offsets = [0, 0], sizes = [8, 1], strides = [1, 1]} : vector<8x9xf32> to vector<8x1xf32>
    %27 = vector.broadcast %26 : vector<8x1xf32> to vector<8x256xf32>
    %28 = arith.mulf %27, %25 : vector<8x256xf32>
    %29 = arith.addf %21, %28 : vector<8x256xf32>
    %c16_i32 = arith.constant 16 : i32
    %30 = tpu.dynamic_rotate %16 by %c16_i32 dim 1 : vector<8x256xf32>, i32 -> vector<8x256xf32>
    %31 = vector.extract_strided_slice %1 {offsets = [1, 0], sizes = [1, 256], strides = [1, 1]} : vector<9x256xf32> to vector<1x256xf32>
    %32 = vector.broadcast %31 : vector<1x256xf32> to vector<8x256xf32>
    %33 = arith.mulf %30, %32 : vector<8x256xf32>
    %34 = vector.extract_strided_slice %8 {offsets = [0, 1], sizes = [8, 1], strides = [1, 1]} : vector<8x9xf32> to vector<8x1xf32>
    %35 = vector.broadcast %34 : vector<8x1xf32> to vector<8x256xf32>
    %36 = arith.mulf %35, %33 : vector<8x256xf32>
    %37 = arith.addf %29, %36 : vector<8x256xf32>
    %c15_i32 = arith.constant 15 : i32
    %38 = tpu.dynamic_rotate %16 by %c15_i32 dim 1 : vector<8x256xf32>, i32 -> vector<8x256xf32>
    %39 = vector.extract_strided_slice %1 {offsets = [2, 0], sizes = [1, 256], strides = [1, 1]} : vector<9x256xf32> to vector<1x256xf32>
    %40 = vector.broadcast %39 : vector<1x256xf32> to vector<8x256xf32>
    %41 = arith.mulf %38, %40 : vector<8x256xf32>
    %42 = vector.extract_strided_slice %8 {offsets = [0, 2], sizes = [8, 1], strides = [1, 1]} : vector<8x9xf32> to vector<8x1xf32>
    %43 = vector.broadcast %42 : vector<8x1xf32> to vector<8x256xf32>
    %44 = arith.mulf %43, %41 : vector<8x256xf32>
    %45 = arith.addf %37, %44 : vector<8x256xf32>
    %c1_i32 = arith.constant 1 : i32
    %46 = tpu.dynamic_rotate %16 by %c1_i32 dim 1 : vector<8x256xf32>, i32 -> vector<8x256xf32>
    %47 = vector.extract_strided_slice %1 {offsets = [3, 0], sizes = [1, 256], strides = [1, 1]} : vector<9x256xf32> to vector<1x256xf32>
    %48 = vector.broadcast %47 : vector<1x256xf32> to vector<8x256xf32>
    %49 = arith.mulf %46, %48 : vector<8x256xf32>
    %50 = vector.extract_strided_slice %8 {offsets = [0, 3], sizes = [8, 1], strides = [1, 1]} : vector<8x9xf32> to vector<8x1xf32>
    %51 = vector.broadcast %50 : vector<8x1xf32> to vector<8x256xf32>
    %52 = arith.mulf %51, %49 : vector<8x256xf32>
    %53 = arith.addf %45, %52 : vector<8x256xf32>
    %c255_i32 = arith.constant 255 : i32
    %54 = tpu.dynamic_rotate %16 by %c255_i32 dim 1 : vector<8x256xf32>, i32 -> vector<8x256xf32>
    %55 = vector.extract_strided_slice %1 {offsets = [5, 0], sizes = [1, 256], strides = [1, 1]} : vector<9x256xf32> to vector<1x256xf32>
    %56 = vector.broadcast %55 : vector<1x256xf32> to vector<8x256xf32>
    %57 = arith.mulf %54, %56 : vector<8x256xf32>
    %58 = vector.extract_strided_slice %8 {offsets = [0, 5], sizes = [8, 1], strides = [1, 1]} : vector<8x9xf32> to vector<8x1xf32>
    %59 = vector.broadcast %58 : vector<8x1xf32> to vector<8x256xf32>
    %60 = arith.mulf %59, %57 : vector<8x256xf32>
    %61 = arith.addf %53, %60 : vector<8x256xf32>
    %c241_i32 = arith.constant 241 : i32
    %62 = tpu.dynamic_rotate %16 by %c241_i32 dim 1 : vector<8x256xf32>, i32 -> vector<8x256xf32>
    %63 = vector.extract_strided_slice %1 {offsets = [6, 0], sizes = [1, 256], strides = [1, 1]} : vector<9x256xf32> to vector<1x256xf32>
    %64 = vector.broadcast %63 : vector<1x256xf32> to vector<8x256xf32>
    %65 = arith.mulf %62, %64 : vector<8x256xf32>
    %66 = vector.extract_strided_slice %8 {offsets = [0, 6], sizes = [8, 1], strides = [1, 1]} : vector<8x9xf32> to vector<8x1xf32>
    %67 = vector.broadcast %66 : vector<8x1xf32> to vector<8x256xf32>
    %68 = arith.mulf %67, %65 : vector<8x256xf32>
    %69 = arith.addf %61, %68 : vector<8x256xf32>
    %c240_i32 = arith.constant 240 : i32
    %70 = tpu.dynamic_rotate %16 by %c240_i32 dim 1 : vector<8x256xf32>, i32 -> vector<8x256xf32>
    %71 = vector.extract_strided_slice %1 {offsets = [7, 0], sizes = [1, 256], strides = [1, 1]} : vector<9x256xf32> to vector<1x256xf32>
    %72 = vector.broadcast %71 : vector<1x256xf32> to vector<8x256xf32>
    %73 = arith.mulf %70, %72 : vector<8x256xf32>
    %74 = vector.extract_strided_slice %8 {offsets = [0, 7], sizes = [8, 1], strides = [1, 1]} : vector<8x9xf32> to vector<8x1xf32>
    %75 = vector.broadcast %74 : vector<8x1xf32> to vector<8x256xf32>
    %76 = arith.mulf %75, %73 : vector<8x256xf32>
    %77 = arith.addf %69, %76 : vector<8x256xf32>
    %c239_i32 = arith.constant 239 : i32
    %78 = tpu.dynamic_rotate %16 by %c239_i32 dim 1 : vector<8x256xf32>, i32 -> vector<8x256xf32>
    %79 = vector.extract_strided_slice %1 {offsets = [8, 0], sizes = [1, 256], strides = [1, 1]} : vector<9x256xf32> to vector<1x256xf32>
    %80 = vector.broadcast %79 : vector<1x256xf32> to vector<8x256xf32>
    %81 = arith.mulf %78, %80 : vector<8x256xf32>
    %82 = vector.extract_strided_slice %8 {offsets = [0, 8], sizes = [8, 1], strides = [1, 1]} : vector<8x9xf32> to vector<8x1xf32>
    %83 = vector.broadcast %82 : vector<8x1xf32> to vector<8x256xf32>
    %84 = arith.mulf %83, %81 : vector<8x256xf32>
    %85 = arith.addf %77, %84 : vector<8x256xf32>
    %cst_14 = arith.constant dense<0.000000e+00> : vector<2x256xf32>
    %86 = tpu.matmul %2, %85, %cst_14 {dimension_numbers = #tpu.dot_dimension_numbers<[1], [0], [0], [1], [0, 0, 1, 1], [], []>} : vector<2x8xf32>, vector<8x256xf32>, vector<2x256xf32> -> vector<2x256xf32>
    %87 = arith.mulf %85, %85 : vector<8x256xf32>
    %cst_15 = arith.constant dense<0.000000e+00> : vector<2x256xf32>
    %88 = tpu.matmul %2, %87, %cst_15 {dimension_numbers = #tpu.dot_dimension_numbers<[1], [0], [0], [1], [0, 0, 1, 1], [], []>} : vector<2x8xf32>, vector<8x256xf32>, vector<2x256xf32> -> vector<2x256xf32>
    %cst_16 = arith.constant dense<0.000000e+00> : vector<2xf32>
    %89 = vector.multi_reduction <add>, %86, %cst_16 [1] : vector<2x256xf32> to vector<2xf32>
    %90 = vector.shape_cast %89 : vector<2xf32> to vector<2x1xf32>
    %cst_17 = arith.constant dense<0.000000e+00> : vector<2xf32>
    %91 = vector.multi_reduction <add>, %88, %cst_17 [1] : vector<2x256xf32> to vector<2xf32>
    %92 = vector.shape_cast %91 : vector<2xf32> to vector<2x1xf32>
    %93 = arith.mulf %90, %90 : vector<2x1xf32>
    %94 = arith.subf %92, %93 : vector<2x1xf32>
    %cst_18 = arith.constant 0.000000e+00 : f32
    %95 = vector.broadcast %cst_18 : f32 to vector<2x1xf32>
    %96 = arith.maximumf %94, %95 : vector<2x1xf32>
    %cst_19 = arith.constant 9.99999974E-6 : f32
    %97 = vector.broadcast %cst_19 : f32 to vector<2x1xf32>
    %98 = arith.addf %96, %97 : vector<2x1xf32>
    %99 = math.rsqrt %98 : vector<2x1xf32>
    %cst_20 = arith.constant dense<0.000000e+00> : vector<8x1xf32>
    %100 = tpu.matmul %3, %90, %cst_20 {dimension_numbers = #tpu.dot_dimension_numbers<[1], [0], [0], [1], [0, 0, 1, 1], [], []>} : vector<8x2xf32>, vector<2x1xf32>, vector<8x1xf32> -> vector<8x1xf32>
    %cst_21 = arith.constant dense<0.000000e+00> : vector<8x1xf32>
    %101 = tpu.matmul %3, %99, %cst_21 {dimension_numbers = #tpu.dot_dimension_numbers<[1], [0], [0], [1], [0, 0, 1, 1], [], []>} : vector<8x2xf32>, vector<2x1xf32>, vector<8x1xf32> -> vector<8x1xf32>
    %102 = arith.mulf %101, %11 : vector<8x1xf32>
    %103 = arith.mulf %100, %102 : vector<8x1xf32>
    %104 = arith.subf %12, %103 : vector<8x1xf32>
    %105 = vector.broadcast %102 : vector<8x1xf32> to vector<8x256xf32>
    %106 = arith.mulf %85, %105 : vector<8x256xf32>
    %107 = vector.broadcast %104 : vector<8x1xf32> to vector<8x256xf32>
    %108 = arith.addf %106, %107 : vector<8x256xf32>
    %cst_22 = arith.constant 0.000000e+00 : f32
    %109 = vector.broadcast %cst_22 : f32 to vector<8x256xf32>
    %110 = arith.maximumf %108, %109 : vector<8x256xf32>
    %111 = vector.extract_strided_slice %5 {offsets = [0, 0], sizes = [8, 9], strides = [1, 1]} : vector<8x13xf32> to vector<8x9xf32>
    %112 = vector.extract_strided_slice %5 {offsets = [0, 9], sizes = [8, 1], strides = [1, 1]} : vector<8x13xf32> to vector<8x1xf32>
    %113 = vector.extract_strided_slice %5 {offsets = [0, 10], sizes = [8, 1], strides = [1, 1]} : vector<8x13xf32> to vector<8x1xf32>
    %114 = vector.extract_strided_slice %5 {offsets = [0, 11], sizes = [8, 1], strides = [1, 1]} : vector<8x13xf32> to vector<8x1xf32>
    %115 = vector.extract_strided_slice %5 {offsets = [0, 12], sizes = [8, 1], strides = [1, 1]} : vector<8x13xf32> to vector<8x1xf32>
    %c0_23 = arith.constant 0 : index
    %c0_24 = arith.constant 0 : index
    %116 = vector.load %arg3[%c0_23, %c0_24] : memref<8x8xf32, #tpu.memory_space<vmem>>, vector<8x8xf32>
    %cst_25 = arith.constant dense<0.000000e+00> : vector<8x256xf32>
    %117 = tpu.matmul %116, %110, %cst_25 {dimension_numbers = #tpu.dot_dimension_numbers<[1], [0], [0], [1], [0, 0, 1, 1], [], []>} : vector<8x8xf32>, vector<8x256xf32>, vector<8x256xf32> -> vector<8x256xf32>
    %118 = vector.broadcast %112 : vector<8x1xf32> to vector<8x256xf32>
    %119 = arith.addf %117, %118 : vector<8x256xf32>
    %120 = vector.extract_strided_slice %111 {offsets = [0, 4], sizes = [8, 1], strides = [1, 1]} : vector<8x9xf32> to vector<8x1xf32>
    %121 = vector.broadcast %120 : vector<8x1xf32> to vector<8x256xf32>
    %122 = arith.mulf %121, %119 : vector<8x256xf32>
    %123 = vector.broadcast %113 : vector<8x1xf32> to vector<8x256xf32>
    %124 = arith.addf %122, %123 : vector<8x256xf32>
    %c17_i32_26 = arith.constant 17 : i32
    %125 = tpu.dynamic_rotate %119 by %c17_i32_26 dim 1 : vector<8x256xf32>, i32 -> vector<8x256xf32>
    %126 = vector.extract_strided_slice %1 {offsets = [0, 0], sizes = [1, 256], strides = [1, 1]} : vector<9x256xf32> to vector<1x256xf32>
    %127 = vector.broadcast %126 : vector<1x256xf32> to vector<8x256xf32>
    %128 = arith.mulf %125, %127 : vector<8x256xf32>
    %129 = vector.extract_strided_slice %111 {offsets = [0, 0], sizes = [8, 1], strides = [1, 1]} : vector<8x9xf32> to vector<8x1xf32>
    %130 = vector.broadcast %129 : vector<8x1xf32> to vector<8x256xf32>
    %131 = arith.mulf %130, %128 : vector<8x256xf32>
    %132 = arith.addf %124, %131 : vector<8x256xf32>
    %c16_i32_27 = arith.constant 16 : i32
    %133 = tpu.dynamic_rotate %119 by %c16_i32_27 dim 1 : vector<8x256xf32>, i32 -> vector<8x256xf32>
    %134 = vector.extract_strided_slice %1 {offsets = [1, 0], sizes = [1, 256], strides = [1, 1]} : vector<9x256xf32> to vector<1x256xf32>
    %135 = vector.broadcast %134 : vector<1x256xf32> to vector<8x256xf32>
    %136 = arith.mulf %133, %135 : vector<8x256xf32>
    %137 = vector.extract_strided_slice %111 {offsets = [0, 1], sizes = [8, 1], strides = [1, 1]} : vector<8x9xf32> to vector<8x1xf32>
    %138 = vector.broadcast %137 : vector<8x1xf32> to vector<8x256xf32>
    %139 = arith.mulf %138, %136 : vector<8x256xf32>
    %140 = arith.addf %132, %139 : vector<8x256xf32>
    %c15_i32_28 = arith.constant 15 : i32
    %141 = tpu.dynamic_rotate %119 by %c15_i32_28 dim 1 : vector<8x256xf32>, i32 -> vector<8x256xf32>
    %142 = vector.extract_strided_slice %1 {offsets = [2, 0], sizes = [1, 256], strides = [1, 1]} : vector<9x256xf32> to vector<1x256xf32>
    %143 = vector.broadcast %142 : vector<1x256xf32> to vector<8x256xf32>
    %144 = arith.mulf %141, %143 : vector<8x256xf32>
    %145 = vector.extract_strided_slice %111 {offsets = [0, 2], sizes = [8, 1], strides = [1, 1]} : vector<8x9xf32> to vector<8x1xf32>
    %146 = vector.broadcast %145 : vector<8x1xf32> to vector<8x256xf32>
    %147 = arith.mulf %146, %144 : vector<8x256xf32>
    %148 = arith.addf %140, %147 : vector<8x256xf32>
    %c1_i32_29 = arith.constant 1 : i32
    %149 = tpu.dynamic_rotate %119 by %c1_i32_29 dim 1 : vector<8x256xf32>, i32 -> vector<8x256xf32>
    %150 = vector.extract_strided_slice %1 {offsets = [3, 0], sizes = [1, 256], strides = [1, 1]} : vector<9x256xf32> to vector<1x256xf32>
    %151 = vector.broadcast %150 : vector<1x256xf32> to vector<8x256xf32>
    %152 = arith.mulf %149, %151 : vector<8x256xf32>
    %153 = vector.extract_strided_slice %111 {offsets = [0, 3], sizes = [8, 1], strides = [1, 1]} : vector<8x9xf32> to vector<8x1xf32>
    %154 = vector.broadcast %153 : vector<8x1xf32> to vector<8x256xf32>
    %155 = arith.mulf %154, %152 : vector<8x256xf32>
    %156 = arith.addf %148, %155 : vector<8x256xf32>
    %c255_i32_30 = arith.constant 255 : i32
    %157 = tpu.dynamic_rotate %119 by %c255_i32_30 dim 1 : vector<8x256xf32>, i32 -> vector<8x256xf32>
    %158 = vector.extract_strided_slice %1 {offsets = [5, 0], sizes = [1, 256], strides = [1, 1]} : vector<9x256xf32> to vector<1x256xf32>
    %159 = vector.broadcast %158 : vector<1x256xf32> to vector<8x256xf32>
    %160 = arith.mulf %157, %159 : vector<8x256xf32>
    %161 = vector.extract_strided_slice %111 {offsets = [0, 5], sizes = [8, 1], strides = [1, 1]} : vector<8x9xf32> to vector<8x1xf32>
    %162 = vector.broadcast %161 : vector<8x1xf32> to vector<8x256xf32>
    %163 = arith.mulf %162, %160 : vector<8x256xf32>
    %164 = arith.addf %156, %163 : vector<8x256xf32>
    %c241_i32_31 = arith.constant 241 : i32
    %165 = tpu.dynamic_rotate %119 by %c241_i32_31 dim 1 : vector<8x256xf32>, i32 -> vector<8x256xf32>
    %166 = vector.extract_strided_slice %1 {offsets = [6, 0], sizes = [1, 256], strides = [1, 1]} : vector<9x256xf32> to vector<1x256xf32>
    %167 = vector.broadcast %166 : vector<1x256xf32> to vector<8x256xf32>
    %168 = arith.mulf %165, %167 : vector<8x256xf32>
    %169 = vector.extract_strided_slice %111 {offsets = [0, 6], sizes = [8, 1], strides = [1, 1]} : vector<8x9xf32> to vector<8x1xf32>
    %170 = vector.broadcast %169 : vector<8x1xf32> to vector<8x256xf32>
    %171 = arith.mulf %170, %168 : vector<8x256xf32>
    %172 = arith.addf %164, %171 : vector<8x256xf32>
    %c240_i32_32 = arith.constant 240 : i32
    %173 = tpu.dynamic_rotate %119 by %c240_i32_32 dim 1 : vector<8x256xf32>, i32 -> vector<8x256xf32>
    %174 = vector.extract_strided_slice %1 {offsets = [7, 0], sizes = [1, 256], strides = [1, 1]} : vector<9x256xf32> to vector<1x256xf32>
    %175 = vector.broadcast %174 : vector<1x256xf32> to vector<8x256xf32>
    %176 = arith.mulf %173, %175 : vector<8x256xf32>
    %177 = vector.extract_strided_slice %111 {offsets = [0, 7], sizes = [8, 1], strides = [1, 1]} : vector<8x9xf32> to vector<8x1xf32>
    %178 = vector.broadcast %177 : vector<8x1xf32> to vector<8x256xf32>
    %179 = arith.mulf %178, %176 : vector<8x256xf32>
    %180 = arith.addf %172, %179 : vector<8x256xf32>
    %c239_i32_33 = arith.constant 239 : i32
    %181 = tpu.dynamic_rotate %119 by %c239_i32_33 dim 1 : vector<8x256xf32>, i32 -> vector<8x256xf32>
    %182 = vector.extract_strided_slice %1 {offsets = [8, 0], sizes = [1, 256], strides = [1, 1]} : vector<9x256xf32> to vector<1x256xf32>
    %183 = vector.broadcast %182 : vector<1x256xf32> to vector<8x256xf32>
    %184 = arith.mulf %181, %183 : vector<8x256xf32>
    %185 = vector.extract_strided_slice %111 {offsets = [0, 8], sizes = [8, 1], strides = [1, 1]} : vector<8x9xf32> to vector<8x1xf32>
    %186 = vector.broadcast %185 : vector<8x1xf32> to vector<8x256xf32>
    %187 = arith.mulf %186, %184 : vector<8x256xf32>
    %188 = arith.addf %180, %187 : vector<8x256xf32>
    %cst_34 = arith.constant dense<0.000000e+00> : vector<2x256xf32>
    %189 = tpu.matmul %2, %188, %cst_34 {dimension_numbers = #tpu.dot_dimension_numbers<[1], [0], [0], [1], [0, 0, 1, 1], [], []>} : vector<2x8xf32>, vector<8x256xf32>, vector<2x256xf32> -> vector<2x256xf32>
    %190 = arith.mulf %188, %188 : vector<8x256xf32>
    %cst_35 = arith.constant dense<0.000000e+00> : vector<2x256xf32>
    %191 = tpu.matmul %2, %190, %cst_35 {dimension_numbers = #tpu.dot_dimension_numbers<[1], [0], [0], [1], [0, 0, 1, 1], [], []>} : vector<2x8xf32>, vector<8x256xf32>, vector<2x256xf32> -> vector<2x256xf32>
    %cst_36 = arith.constant dense<0.000000e+00> : vector<2xf32>
    %192 = vector.multi_reduction <add>, %189, %cst_36 [1] : vector<2x256xf32> to vector<2xf32>
    %193 = vector.shape_cast %192 : vector<2xf32> to vector<2x1xf32>
    %cst_37 = arith.constant dense<0.000000e+00> : vector<2xf32>
    %194 = vector.multi_reduction <add>, %191, %cst_37 [1] : vector<2x256xf32> to vector<2xf32>
    %195 = vector.shape_cast %194 : vector<2xf32> to vector<2x1xf32>
    %196 = arith.mulf %193, %193 : vector<2x1xf32>
    %197 = arith.subf %195, %196 : vector<2x1xf32>
    %cst_38 = arith.constant 0.000000e+00 : f32
    %198 = vector.broadcast %cst_38 : f32 to vector<2x1xf32>
    %199 = arith.maximumf %197, %198 : vector<2x1xf32>
    %cst_39 = arith.constant 9.99999974E-6 : f32
    %200 = vector.broadcast %cst_39 : f32 to vector<2x1xf32>
    %201 = arith.addf %199, %200 : vector<2x1xf32>
    %202 = math.rsqrt %201 : vector<2x1xf32>
    %cst_40 = arith.constant dense<0.000000e+00> : vector<8x1xf32>
    %203 = tpu.matmul %3, %193, %cst_40 {dimension_numbers = #tpu.dot_dimension_numbers<[1], [0], [0], [1], [0, 0, 1, 1], [], []>} : vector<8x2xf32>, vector<2x1xf32>, vector<8x1xf32> -> vector<8x1xf32>
    %cst_41 = arith.constant dense<0.000000e+00> : vector<8x1xf32>
    %204 = tpu.matmul %3, %202, %cst_41 {dimension_numbers = #tpu.dot_dimension_numbers<[1], [0], [0], [1], [0, 0, 1, 1], [], []>} : vector<8x2xf32>, vector<2x1xf32>, vector<8x1xf32> -> vector<8x1xf32>
    %205 = arith.mulf %204, %114 : vector<8x1xf32>
    %206 = arith.mulf %203, %205 : vector<8x1xf32>
    %207 = arith.subf %115, %206 : vector<8x1xf32>
    %208 = vector.broadcast %205 : vector<8x1xf32> to vector<8x256xf32>
    %209 = arith.mulf %188, %208 : vector<8x256xf32>
    %210 = vector.broadcast %207 : vector<8x1xf32> to vector<8x256xf32>
    %211 = arith.addf %209, %210 : vector<8x256xf32>
    %cst_42 = arith.constant 0.000000e+00 : f32
    %212 = vector.broadcast %cst_42 : f32 to vector<8x256xf32>
    %213 = arith.maximumf %211, %212 : vector<8x256xf32>
    %c0_43 = arith.constant 0 : index
    %c0_44 = arith.constant 0 : index
    %c0_45 = arith.constant 0 : index
    %214 = vector.load %arg9[%c0_43, %c0_44, %c0_45] : memref<1x8x256xf32, #tpu.memory_space<vmem>>, vector<1x8x256xf32>
    %215 = vector.shape_cast %214 : vector<1x8x256xf32> to vector<8x256xf32>
    %216 = vector.shape_cast %213 : vector<8x256xf32> to vector<1x8x256xf32>
    tpu.vector_store %arg9[%c0_43, %c0_44, %c0_45], %216 {strides = array<i32>} : memref<1x8x256xf32, #tpu.memory_space<vmem>>, vector<1x8x256xf32>,
    return
  }
  func.func @transform_0(%arg0: i32) -> (i32, i32, i32) {
    %c0_i32 = arith.constant 0 : i32
    %c0_i32_0 = arith.constant 0 : i32
    %c0_i32_1 = arith.constant 0 : i32
    return %arg0, %c0_i32, %c0_i32_0 : i32, i32, i32
  }
  func.func @transform_1(%arg0: i32) -> (i32, i32) {
    %c0_i32 = arith.constant 0 : i32
    %c0_i32_0 = arith.constant 0 : i32
    %c0_i32_1 = arith.constant 0 : i32
    return %c0_i32, %c0_i32_0 : i32, i32
  }
  func.func @transform_2(%arg0: i32) -> (i32, i32) {
    %c0_i32 = arith.constant 0 : i32
    %c0_i32_0 = arith.constant 0 : i32
    %c0_i32_1 = arith.constant 0 : i32
    return %c0_i32, %c0_i32_0 : i32, i32
  }
  func.func @transform_3(%arg0: i32) -> (i32, i32) {
    %c0_i32 = arith.constant 0 : i32
    %c0_i32_0 = arith.constant 0 : i32
    %c0_i32_1 = arith.constant 0 : i32
    return %c0_i32, %c0_i32_0 : i32, i32
  }
  func.func @transform_4(%arg0: i32) -> (i32, i32) {
    %c0_i32 = arith.constant 0 : i32
    %c0_i32_0 = arith.constant 0 : i32
    %c0_i32_1 = arith.constant 0 : i32
    return %c0_i32, %c0_i32_0 : i32, i32
  }
  func.func @transform_5(%arg0: i32) -> (i32, i32) {
    %c0_i32 = arith.constant 0 : i32
    %c0_i32_0 = arith.constant 0 : i32
    %c0_i32_1 = arith.constant 0 : i32
    return %c0_i32, %c0_i32_0 : i32, i32
  }
  func.func @transform_6(%arg0: i32) -> (i32, i32) {
    %c0_i32 = arith.constant 0 : i32
    %c0_i32_0 = arith.constant 0 : i32
    %c0_i32_1 = arith.constant 0 : i32
    return %c0_i32, %c0_i32_0 : i32, i32
  }
  func.func @transform_7(%arg0: i32) -> (i32, i32) {
    %c0_i32 = arith.constant 0 : i32
    %c0_i32_0 = arith.constant 0 : i32
    %c0_i32_1 = arith.constant 0 : i32
    return %c0_i32, %c0_i32_0 : i32, i32
  }
  func.func @transform_8(%arg0: i32) -> (i32, i32, i32) {
    %c0_i32 = arith.constant 0 : i32
    %c0_i32_0 = arith.constant 0 : i32
    %c0_i32_1 = arith.constant 0 : i32
    return %arg0, %c0_i32, %c0_i32_0 : i32, i32, i32
  }
}

</mosaic_0001>

<llo_original>
// kernel: tpu_custom_call.1
$region0: #{tpu_custom_call.1}
  #allocation0 [shape = 'u32[]', space=smem, size = 0x4, offset = 0x4, fixed_abs, tag = 'smem constant byte address 0x4 - core index']
  #allocation1 [shape = 'u32[144,128]{1,0:T(1,128)}', space=vmem, size = 0x12000, scoped, tag = 'internal scratch']
  %s0 = inlined_call_operand.vmem [shape: f32[2,4,256], index: 0, kind: input, shape index: {}]
  %s1 = inlined_call_operand.vmem [shape: f32[8,4], index: 1, kind: input, shape index: {}]
  %s2 = inlined_call_operand.hbm [shape: f32[8,8], index: 2, kind: input, shape index: {}]
  %s3 = inlined_call_operand.hbm [shape: f32[8,13], index: 3, kind: input, shape index: {}]
  %s4 = inlined_call_operand.hbm [shape: f32[8,13], index: 4, kind: input, shape index: {}]
  %s5 = inlined_call_operand.vmem [shape: bf16[9,256], index: 5, kind: input, shape index: {}]
  %s6 = inlined_call_operand.vmem [shape: f32[2,8], index: 6, kind: input, shape index: {}]
  %s7 = inlined_call_operand.vmem [shape: f32[8,2], index: 7, kind: input, shape index: {}]
  %s8 = inlined_call_operand.hbm [shape: f32[2,8,256], index: 8, kind: output, shape index: {}]
  %s9 = sld [smem:[#allocation0]]
  $region77: #{tpu_custom_call.1} parent=0
    _
  %s11 = ssub.s32 1, %s9
  %s12 = scalar_select 0, %s11, %s9
  $region1: #{tpu_custom_call.1} parent=0
    #allocation2 [shape = 'u8[4096]{0}', space=vmem, size = 0x1000, scoped, tag = 'input window, operand 2, single buffered']
    #allocation3 [shape = 's32[2]{0}', space=sflag, size = 0x8, scoped, tag = 'scoped memory for tpu_custom_call.1']
    #allocation4 [shape = 's32[2]{0}', space=sflag, size = 0x8, scoped, tag = 'scoped memory for tpu_custom_call.1']
    #allocation5 [shape = 'u8[4096]{0}', space=vmem, size = 0x1000, scoped, tag = 'input window, operand 3, single buffered']
    #allocation6 [shape = 's32[1]{0}', space=sflag, size = 0x4, scoped, tag = 'scoped memory for tpu_custom_call.1']
    #allocation7 [shape = 'u8[4096]{0}', space=vmem, size = 0x1000, scoped, tag = 'input window, operand 4, single buffered']
    #allocation8 [shape = 'u8[16384]{0}', space=vmem, size = 0x4000, scoped, tag = 'output window, operand 0']
    %13 = vsyncpa [#allocation3], 0
    %14 = vsyncpa [#allocation6], 0
    %15 = vsyncpa [#allocation4], 0
    %s16 = scalar_lea.sflag [#allocation4], 1
    %17 = vsyncpa %s16, 0
    loop: start=0, step=1, limit=4
    $region2: #{tpu_custom_call.1} parent=1 // loop_pre_header
      _
    $region3: #{tpu_custom_call.1} parent=1 // loop_header
      %s19 = sphi 0, %s23
      %p20 = scmp.ge.s32.totalorder %s19, 4
      %s29 = sphi 0, %s31
      %s32 = sphi 0, %s29
      %s33 = sphi 0, %s32
      %s49 = sphi 0, %s33
      %s53 = sphi 0, %s53
      %s55 = sphi 0, %s53
      %s56 = sphi 0, %s55
      %s70 = sphi 0, %s56
      %s74 = sphi 0, %s74
      %s76 = sphi 0, %s74
      %s77 = sphi 0, %s76
      %s91 = sphi 0, %s77
      %s95 = sphi 0, %s95
      %s97 = sphi 0, %s95
      %s98 = sphi 0, %s97
      %s112 = sphi 0, %s98
      %s116 = sphi 0, %s116
      %s118 = sphi 0, %s116
      %s119 = sphi 0, %s118
      %s133 = sphi 0, %s119
      %s137 = sphi 0, %s137
      %s139 = sphi 0, %s137
      %s140 = sphi 0, %s139
      %s154 = sphi 0, %s140
      %s158 = sphi 0, %s158
      %s160 = sphi 0, %s158
      %s161 = sphi 0, %s160
      %s175 = sphi 0, %s161
      %s179 = sphi 0, %s179
      %s181 = sphi 0, %s179
      %s182 = sphi 0, %s181
      %s196 = sphi 0, %s182
      %s202 = sphi 0, %s204
      %s205 = sphi 0, %s202
      %s206 = sphi 0, %s205
      %s222 = sphi 0, %s206
    $region4: #{tpu_custom_call.1} parent=1 // loop_header_branch
      %22 = sbr.rel (%p20) target = $region8
    $region5: #{tpu_custom_call.1} parent=1 // loop_body
      %s24 = ssub.s32 %s19, 1
      %s25 = ssub.s32 %s19, 2
      %s26 = sadd.s32 %s19, 1
      %s27 = ssub.s32 %s19, %s26
      %p28 = scmp.eq.s32.totalorder %s27, 0
      %s30 = sadd.s32 %s29, 1
      %s31 = scalar_select %p28, %s29, %s30
      %p34 = pneg %p28
      %p35 = scmp.eq.s32.totalorder %s19, 1
      %p36 = por %p34, %p35
      %p37 = scmp.ne.s32.totalorder %s29, %s32
      %p38 = scmp.eq.s32.totalorder %s19, 0
      %p39 = por %p37, %p38
      %p40 = scmp.ne.s32.totalorder %s29, %s32
      %p41 = scmp.eq.s32.totalorder %s24, 1
      %p42 = por %p40, %p41
      %p43 = scmp.ne.s32.totalorder %s32, %s33
      %p44 = scmp.eq.s32.totalorder %s24, 0
      %p45 = por %p43, %p44
      %p46 = scmp.ne.s32.totalorder %s32, %s33
      %p47 = scmp.eq.s32.totalorder %s25, 1
      %p48 = por %p46, %p47
      %p50 = scmp.ne.s32.totalorder %s33, %s49
      %p51 = scmp.eq.s32.totalorder %s25, 0
      %p52 = por %p50, %p51
      %s54 = sadd.s32 %s53, 1
      %p57 = scmp.eq.s32.totalorder %s19, 1
      %p58 = scmp.ne.s32.totalorder %s53, %s55
      %p59 = scmp.eq.s32.totalorder %s19, 0
      %p60 = por %p58, %p59
      %p61 = scmp.ne.s32.totalorder %s53, %s55
      %p62 = scmp.eq.s32.totalorder %s24, 1
      %p63 = por %p61, %p62
      %p64 = scmp.ne.s32.totalorder %s55, %s56
      %p65 = scmp.eq.s32.totalorder %s24, 0
      %p66 = por %p64, %p65
      %p67 = scmp.ne.s32.totalorder %s55, %s56
      %p68 = scmp.eq.s32.totalorder %s25, 1
      %p69 = por %p67, %p68
      %p71 = scmp.ne.s32.totalorder %s56, %s70
      %p72 = scmp.eq.s32.totalorder %s25, 0
      %p73 = por %p71, %p72
      %s75 = sadd.s32 %s74, 1
      %p78 = scmp.eq.s32.totalorder %s19, 1
      %p79 = scmp.ne.s32.totalorder %s74, %s76
      %p80 = scmp.eq.s32.totalorder %s19, 0
      %p81 = por %p79, %p80
      %p82 = scmp.ne.s32.totalorder %s74, %s76
      %p83 = scmp.eq.s32.totalorder %s24, 1
      %p84 = por %p82, %p83
      %p85 = scmp.ne.s32.totalorder %s76, %s77
      %p86 = scmp.eq.s32.totalorder %s24, 0
      %p87 = por %p85, %p86
      %p88 = scmp.ne.s32.totalorder %s76, %s77
      %p89 = scmp.eq.s32.totalorder %s25, 1
      %p90 = por %p88, %p89
      %p92 = scmp.ne.s32.totalorder %s77, %s91
      %p93 = scmp.eq.s32.totalorder %s25, 0
      %p94 = por %p92, %p93
      %s96 = sadd.s32 %s95, 1
      %p99 = scmp.eq.s32.totalorder %s19, 1
      %p100 = scmp.ne.s32.totalorder %s95, %s97
      %p101 = scmp.eq.s32.totalorder %s19, 0
      %p102 = por %p100, %p101
      %p103 = scmp.ne.s32.totalorder %s95, %s97
      %p104 = scmp.eq.s32.totalorder %s24, 1
      %p105 = por %p103, %p104
      %p106 = scmp.ne.s32.totalorder %s97, %s98
      %p107 = scmp.eq.s32.totalorder %s24, 0
      %p108 = por %p106, %p107
      %p109 = scmp.ne.s32.totalorder %s97, %s98
      %p110 = scmp.eq.s32.totalorder %s25, 1
      %p111 = por %p109, %p110
      %p113 = scmp.ne.s32.totalorder %s98, %s112
      %p114 = scmp.eq.s32.totalorder %s25, 0
      %p115 = por %p113, %p114
      %s117 = sadd.s32 %s116, 1
      %p120 = scmp.eq.s32.totalorder %s19, 1
      %p121 = scmp.ne.s32.totalorder %s116, %s118
      %p122 = scmp.eq.s32.totalorder %s19, 0
      %p123 = por %p121, %p122
      %p124 = scmp.ne.s32.totalorder %s116, %s118
      %p125 = scmp.eq.s32.totalorder %s24, 1
      %p126 = por %p124, %p125
      %p127 = scmp.ne.s32.totalorder %s118, %s119
      %p128 = scmp.eq.s32.totalorder %s24, 0
      %p129 = por %p127, %p128
      %p130 = scmp.ne.s32.totalorder %s118, %s119
      %p131 = scmp.eq.s32.totalorder %s25, 1
      %p132 = por %p130, %p131
      %p134 = scmp.ne.s32.totalorder %s119, %s133
      %p135 = scmp.eq.s32.totalorder %s25, 0
      %p136 = por %p134, %p135
      %s138 = sadd.s32 %s137, 1
      %p141 = scmp.eq.s32.totalorder %s19, 1
      %p142 = scmp.ne.s32.totalorder %s137, %s139
      %p143 = scmp.eq.s32.totalorder %s19, 0
      %p144 = por %p142, %p143
      %p145 = scmp.ne.s32.totalorder %s137, %s139
      %p146 = scmp.eq.s32.totalorder %s24, 1
      %p147 = por %p145, %p146
      %p148 = scmp.ne.s32.totalorder %s139, %s140
      %p149 = scmp.eq.s32.totalorder %s24, 0
      %p150 = por %p148, %p149
      %p151 = scmp.ne.s32.totalorder %s139, %s140
      %p152 = scmp.eq.s32.totalorder %s25, 1
      %p153 = por %p151, %p152
      %p155 = scmp.ne.s32.totalorder %s140, %s154
      %p156 = scmp.eq.s32.totalorder %s25, 0
      %p157 = por %p155, %p156
      %s159 = sadd.s32 %s158, 1
      %p162 = scmp.eq.s32.totalorder %s19, 1
      %p163 = scmp.ne.s32.totalorder %s158, %s160
      %p164 = scmp.eq.s32.totalorder %s19, 0
      %p165 = por %p163, %p164
      %p166 = scmp.ne.s32.totalorder %s158, %s160
      %p167 = scmp.eq.s32.totalorder %s24, 1
      %p168 = por %p166, %p167
      %p169 = scmp.ne.s32.totalorder %s160, %s161
      %p170 = scmp.eq.s32.totalorder %s24, 0
      %p171 = por %p169, %p170
      %p172 = scmp.ne.s32.totalorder %s160, %s161
      %p173 = scmp.eq.s32.totalorder %s25, 1
      %p174 = por %p172, %p173
      %p176 = scmp.ne.s32.totalorder %s161, %s175
      %p177 = scmp.eq.s32.totalorder %s25, 0
      %p178 = por %p176, %p177
      %s180 = sadd.s32 %s179, 1
      %p183 = scmp.eq.s32.totalorder %s19, 1
      %p184 = scmp.ne.s32.totalorder %s179, %s181
      %p185 = scmp.eq.s32.totalorder %s19, 0
      %p186 = por %p184, %p185
      %p187 = scmp.ne.s32.totalorder %s179, %s181
      %p188 = scmp.eq.s32.totalorder %s24, 1
      %p189 = por %p187, %p188
      %p190 = scmp.ne.s32.totalorder %s181, %s182
      %p191 = scmp.eq.s32.totalorder %s24, 0
      %p192 = por %p190, %p191
      %p193 = scmp.ne.s32.totalorder %s181, %s182
      %p194 = scmp.eq.s32.totalorder %s25, 1
      %p195 = por %p193, %p194
      %p197 = scmp.ne.s32.totalorder %s182, %s196
      %p198 = scmp.eq.s32.totalorder %s25, 0
      %p199 = por %p197, %p198
      %s200 = ssub.s32 %s19, %s26
      %p201 = scmp.eq.s32.totalorder %s200, 0
      %s203 = sadd.s32 %s202, 1
      %s204 = scalar_select %p201, %s202, %s203
      %p207 = pneg %p201
      %p208 = scmp.eq.s32.totalorder %s19, 1
      %p209 = por %p207, %p208
      %p210 = scmp.ne.s32.totalorder %s202, %s205
      %p211 = scmp.eq.s32.totalorder %s19, 0
      %p212 = por %p210, %p211
      %p213 = scmp.ne.s32.totalorder %s202, %s205
      %p214 = scmp.eq.s32.totalorder %s24, 1
      %p215 = por %p213, %p214
      %p216 = scmp.ne.s32.totalorder %s205, %s206
      %p217 = scmp.eq.s32.totalorder %s24, 0
      %p218 = por %p216, %p217
      %p219 = scmp.ne.s32.totalorder %s205, %s206
      %p220 = scmp.eq.s32.totalorder %s25, 1
      %p221 = por %p219, %p220
      %p223 = scmp.ne.s32.totalorder %s206, %s222
      %p224 = scmp.eq.s32.totalorder %s25, 0
      %p225 = por %p223, %p224
      %p226 = scmp.le.s32.totalorder 1, %s19
      %p227 = scmp.lt.s32.totalorder %s19, 3
      %p228 = pnand %p226, %p227
      %p229 = pneg %p228
      // Predicated region
      $region9: #{tpu_custom_call.1} parent=5 // pred_check
        _
      $region10: #{tpu_custom_call.1} parent=5 // pred_check_branch
        %231 = sbr.rel (%p228) target = $region12
      $region11: #{tpu_custom_call.1} parent=5 // pred_region
        %s232 = ssub.s32 %s19, 1
        // Predicated region
        $region13: #{tpu_custom_call.1} parent=11 // pred_check
          %p233 = pneg %p66
        $region14: #{tpu_custom_call.1} parent=11 // pred_check_branch
          %235 = sbr.rel (%p233) target = $region16
        $region15: #{tpu_custom_call.1} parent=11 // pred_region
          _
        $region16: #{tpu_custom_call.1} parent=11 // pred_fallthru
          _
        // Predicated region
        $region17: #{tpu_custom_call.1} parent=11 // pred_check
          %p236 = pneg %p87
        $region18: #{tpu_custom_call.1} parent=11 // pred_check_branch
          %238 = sbr.rel (%p236) target = $region20
        $region19: #{tpu_custom_call.1} parent=11 // pred_region
          %s240 = ssub.s32 128, 128
          %241 = vsyncadd [#allocation3], %s240
          %s243 = sshll.u32 [#allocation2], 4
          %s244 = int_to_ptr.vmem [resolvable:$true] %s243
          %246 = dma.hbm_to_vmem [thread:$0]  %s2, 128, %s244, [#allocation3]
        $region20: #{tpu_custom_call.1} parent=11 // pred_fallthru
          _
        // Predicated region
        $region21: #{tpu_custom_call.1} parent=11 // pred_check
          %p247 = pneg %p108
        $region22: #{tpu_custom_call.1} parent=11 // pred_check_branch
          %249 = sbr.rel (%p247) target = $region24
        $region23: #{tpu_custom_call.1} parent=11 // pred_region
          %s251 = ssub.s32 128, 128
          %252 = vsyncadd [#allocation6], %s251
          %s254 = sshll.u32 [#allocation5], 4
          %s255 = int_to_ptr.vmem [resolvable:$true] %s254
          %257 = dma.hbm_to_vmem [thread:$0]  %s3, 128, %s255, [#allocation6]
        $region24: #{tpu_custom_call.1} parent=11 // pred_fallthru
          _
        // Predicated region
        $region25: #{tpu_custom_call.1} parent=11 // pred_check
          %p258 = pneg %p129
        $region26: #{tpu_custom_call.1} parent=11 // pred_check_branch
          %260 = sbr.rel (%p258) target = $region28
        $region27: #{tpu_custom_call.1} parent=11 // pred_region
          %s262 = ssub.s32 128, 128
          %263 = vsyncadd [#allocation6], %s262
          %s265 = sshll.u32 [#allocation7], 4
          %s266 = int_to_ptr.vmem [resolvable:$true] %s265
          %268 = dma.hbm_to_vmem [thread:$0]  %s4, 128, %s266, [#allocation6]
        $region28: #{tpu_custom_call.1} parent=11 // pred_fallthru
          _
        // Predicated region
        $region29: #{tpu_custom_call.1} parent=11 // pred_check
          %p269 = pneg %p150
        $region30: #{tpu_custom_call.1} parent=11 // pred_check_branch
          %271 = sbr.rel (%p269) target = $region32
        $region31: #{tpu_custom_call.1} parent=11 // pred_region
          _
        $region32: #{tpu_custom_call.1} parent=11 // pred_fallthru
          _
        // Predicated region
        $region33: #{tpu_custom_call.1} parent=11 // pred_check
          %p272 = pneg %p171
        $region34: #{tpu_custom_call.1} parent=11 // pred_check_branch
          %274 = sbr.rel (%p272) target = $region36
        $region35: #{tpu_custom_call.1} parent=11 // pred_region
          _
        $region36: #{tpu_custom_call.1} parent=11 // pred_fallthru
          _
        // Predicated region
        $region37: #{tpu_custom_call.1} parent=11 // pred_check
          %p275 = pneg %p192
        $region38: #{tpu_custom_call.1} parent=11 // pred_check_branch
          %277 = sbr.rel (%p275) target = $region40
        $region39: #{tpu_custom_call.1} parent=11 // pred_region
          _
        $region40: #{tpu_custom_call.1} parent=11 // pred_fallthru
          _
      $region12: #{tpu_custom_call.1} parent=5 // pred_fallthru
        _
      %p278 = scmp.lt.s32.totalorder %s19, 2
      // Predicated region
      $region41: #{tpu_custom_call.1} parent=5 // pred_check
        %p279 = pneg %p278
      $region42: #{tpu_custom_call.1} parent=5 // pred_check_branch
        %281 = sbr.rel (%p279) target = $region44
      $region43: #{tpu_custom_call.1} parent=5 // pred_region
        // Predicated region
        $region45: #{tpu_custom_call.1} parent=43 // pred_check
          %p282 = pneg %p39
        $region46: #{tpu_custom_call.1} parent=43 // pred_check_branch
          %284 = sbr.rel (%p282) target = $region48
        $region47: #{tpu_custom_call.1} parent=43 // pred_region
          %p285 = scmp.lt.s32.totalorder %s19, 1
          %s286 = scalar_select %p285, %s19, 1
          %s287 = smul.addr %s286, 2
          %s288 = smul.addr %s287, 4
          %s289 = scalar_lea.vmem %s0, %s288
        $region48: #{tpu_custom_call.1} parent=43 // pred_fallthru
          _
      $region44: #{tpu_custom_call.1} parent=5 // pred_fallthru
        _
      %p290 = scmp.le.s32.totalorder 1, %s19
      %p291 = scmp.lt.s32.totalorder %s19, 3
      %p292 = pnand %p290, %p291
      %p293 = pneg %p292
      // Predicated region
      $region49: #{tpu_custom_call.1} parent=5 // pred_check
        _
      $region50: #{tpu_custom_call.1} parent=5 // pred_check_branch
        %295 = sbr.rel (%p292) target = $region52
      $region51: #{tpu_custom_call.1} parent=5 // pred_region
        %s296 = ssub.s32 %s19, 1
        // Predicated region
        $region53: #{tpu_custom_call.1} parent=51 // pred_check
          %p297 = pneg %p87
        $region54: #{tpu_custom_call.1} parent=51 // pred_check_branch
          %299 = sbr.rel (%p297) target = $region56
        $region55: #{tpu_custom_call.1} parent=51 // pred_region
          %300 = dma.done [#allocation3], 128
        $region56: #{tpu_custom_call.1} parent=51 // pred_fallthru
          _
        // Predicated region
        $region57: #{tpu_custom_call.1} parent=51 // pred_check
          %p301 = pneg %p108
        $region58: #{tpu_custom_call.1} parent=51 // pred_check_branch
          %303 = sbr.rel (%p301) target = $region60
        $region59: #{tpu_custom_call.1} parent=51 // pred_region
          %304 = dma.done [#allocation6], 128
        $region60: #{tpu_custom_call.1} parent=51 // pred_fallthru
          _
        // Predicated region
        $region61: #{tpu_custom_call.1} parent=51 // pred_check
          %p305 = pneg %p129
        $region62: #{tpu_custom_call.1} parent=51 // pred_check_branch
          %307 = sbr.rel (%p305) target = $region64
        $region63: #{tpu_custom_call.1} parent=51 // pred_region
          %308 = dma.done [#allocation6], 128
        $region64: #{tpu_custom_call.1} parent=51 // pred_fallthru
          _
        %p309 = scmp.lt.s32.totalorder %s24, 1
        %s310 = scalar_select %p309, %s24, 1
        %s311 = smul.addr %s310, 2
        %s312 = smul.addr %s311, 4
        %s313 = scalar_lea.vmem %s0, %s312
        %p314 = pneg %p45
        %p315 = pneg %p42
        %p316 = pneg %p66
        %p317 = pneg %p63
        %p318 = pneg %p87
        %p319 = pneg %p84
        %p320 = pneg %p108
        %p321 = pneg %p105
        %p322 = pneg %p129
        %p323 = pneg %p126
        %p324 = pneg %p150
        %p325 = pneg %p147
        %p326 = pneg %p171
        %p327 = pneg %p168
        %p328 = pneg %p192
        %p329 = pneg %p189
        %p330 = pneg %p218
        %p331 = pneg %p215
        %s332 = sand.u32 %s205, 1
        %s333 = scalar_lea.sflag [#allocation4], %s332
        %s334 = sand.u32 %s205, 1
        %s335 = smul.addr %s334, 16
        %s336 = scalar_lea.vmem [#allocation8], %s335
        %p337 = scmp.lt.s32.totalorder %s24, 1
        %s338 = scalar_select %p337, %s24, 1
        %s339 = smul.addr %s338, 2
        %s340 = smul.addr %s339, 4
        %s341 = scalar_lea.vmem %s0, %s340
        %v342 = vld [vmem:[%s5] sm:$0xff]
        %v343 = vld [vmem:[%s5 + $0x8] sm:$0x11]
        %v344 = vunpack.c.l.bf16 %v342
        %v345 = vunpack.c.h.bf16 %v342
        %v346 = vunpack.c.l.bf16 %v343
        %v347 = vunpack.c.h.bf16 %v343
        %v348 = vld [vmem:[%s6] sm:$0x3]
        %v349 = vld [vmem:[%s7] sm:$0xff]
        %v350 = vld [vmem:[#allocation5] sm:$0xff]
        %v351 = vld [vmem:[#allocation7] sm:$0xff]
        %v352 = vld [vmem:[%s341] sm:$0xff]
        %v353 = vld [vmem:[%s1] sm:$0xff]
        %355 = vset.pattern.permute.xlu0 9
        %356 = vperm.xlu0 %355, %v350
        %v357 = vpop.permute.xlu0 %356
        %v360 = vcombine.high %v352, %v352
        %vm361 = vcmask 31744
        %v363 = vsel %vm361, %v353, 0
        %vm365 = vcmask 1043456
        %v366 = vsel %vm365, %v352, 0
        %v368 = vsel %vm365, %v360, 0
        %370 = vmatprep.subr.mxu0 %v368
        %371 = vmatpush1.msra.mxu0 %v366
        %372 = vmatprep.subr.mxu0 0.0
        %373 = vmatpush1.msra.mxu0 0.0
        %374 = vmatprep.subr.mxu0 0.0
        %375 = vmatpush1.msra.mxu0 0.0
        %376 = vmatprep.subr.mxu0 0.0
        %377 = vmatpush1.msra.mxu0 0.0
        %378 = vmatprep.subr.mxu0 0.0
        %379 = vmatpush1.msra.mxu0 0.0
        %380 = vmatprep.subr.mxu0 0.0
        %381 = vmatpush1.msra.mxu0 0.0
        %382 = vmatprep.subr.mxu0 0.0
        %383 = vmatpush1.msra.mxu0 0.0
        %384 = vmatprep.subr.mxu0 0.0
        %385 = vmatpush1.msra.mxu0 0.0
        %386 = vmatprep.subr.mxu0 0.0
        %387 = vmatpush1.msra.mxu0 0.0
        %388 = vmatprep.subr.mxu0 0.0
        %389 = vmatpush1.msra.mxu0 0.0
        %390 = vmatprep.subr.mxu0 0.0
        %391 = vmatpush1.msra.mxu0 0.0
        %392 = vmatprep.subr.mxu0 0.0
        %393 = vmatpush1.msra.mxu0 0.0
        %394 = vmatprep.subr.mxu0 0.0
        %395 = vmatpush1.msra.mxu0 0.0
        %396 = vmatprep.subr.mxu0 0.0
        %397 = vmatpush1.msra.mxu0 0.0
        %398 = vmatprep.subr.mxu0 0.0
        %399 = vmatpush1.msra.mxu0 0.0
        %400 = vmatprep.subr.mxu0 0.0
        %401 = vmatpush1.msra.mxu0 0.0
        %402 = vmatprep.subr.mxu0 0.0
        %403 = vmatpush1.msra.mxu0 0.0
        %404 = vmatprep.subr.mxu0 0.0
        %405 = vmatpush1.msra.mxu0 0.0
        %406 = vmatprep.subr.mxu0 0.0
        %407 = vmatpush1.msra.mxu0 0.0
        %408 = vmatprep.subr.mxu0 0.0
        %409 = vmatpush1.msra.mxu0 0.0
        %410 = vmatprep.subr.mxu0 0.0
        %411 = vmatpush1.msra.mxu0 0.0
        %412 = vmatprep.subr.mxu0 0.0
        %413 = vmatpush1.msra.mxu0 0.0
        %414 = vmatprep.subr.mxu0 0.0
        %415 = vmatpush1.msra.mxu0 0.0
        %416 = vmatprep.subr.mxu0 0.0
        %417 = vmatpush1.msra.mxu0 0.0
        %418 = vmatprep.subr.mxu0 0.0
        %419 = vmatpush1.msra.mxu0 0.0
        %420 = vmatprep.subr.mxu0 0.0
        %421 = vmatpush1.msra.mxu0 0.0
        %422 = vmatprep.subr.mxu0 0.0
        %423 = vmatpush1.msra.mxu0 0.0
        %424 = vmatprep.subr.mxu0 0.0
        %425 = vmatpush1.msra.mxu0 0.0
        %426 = vmatprep.subr.mxu0 0.0
        %427 = vmatpush1.msra.mxu0 0.0
        %428 = vmatprep.subr.mxu0 0.0
        %429 = vmatpush1.msra.mxu0 0.0
        %430 = vmatprep.subr.mxu0 0.0
        %431 = vmatpush1.msra.mxu0 0.0
        %432 = vmatprep.subr.mxu0 0.0
        %433 = vmatpush1.msra.mxu0 0.0
        %434 = vmatprep.mubr.f32.mxu0 0.0
        %435 = vmatmul.mubr.f32.gmra.mrb[0].mxu0 %v363
        %v436 = vpop.f32.mrb[0].mxu0
        %v437 = vadd.f32 %v357, %v436
        %v438 = vpop.f32.mrb[0].mxu0
        %v439 = vadd.f32 %v357, %v438
        %440 = vdwg.mxu0
        %441 = vset.pattern.permute.xlu0 4
        %442 = vperm.xlu0 %441, %v350
        %v443 = vpop.permute.xlu0 %442
        %v445 = vmul.f32 %v443, %v437
        %v446 = vmul.f32 %v443, %v439
        %447 = vset.pattern.permute.xlu0 10
        %448 = vperm.xlu0 %447, %v350
        %v449 = vpop.permute.xlu0 %448
        %v451 = vadd.f32 %v445, %v449
        %v452 = vadd.f32 %v446, %v449
        %453 = vrot.lane.b32.xlu0 %v437, 17
        %v454 = vpop.permute.xlu0 %453
        %455 = vrot.lane.b32.xlu0 %v439, 17
        %v456 = vpop.permute.xlu0 %455
        %v457 = vlaneseq
        %v458 = vand.u32 %v457, 127
        %vm459 = vcmp.lt.s32.totalorder %v458, 17
        %v460 = vsel %vm459, %v454, %v456
        %v461 = vsel %vm459, %v456, %v454
        %v462 = vlaneseq
        %v463 = vshrl.u32 %v462, 7
        %v464 = vsub.s32 0, %v463
        %v465 = vrot.slane %v344, %v464
        %v466 = vlaneseq
        %v467 = vshrl.u32 %v466, 7
        %v468 = vsub.s32 0, %v467
        %v469 = vrot.slane %v345, %v468
        %v470 = vmul.f32 %v461, %v465
        %v471 = vmul.f32 %v460, %v469
        %472 = vset.pattern.permute.xlu0 0
        %473 = vperm.xlu0 %472, %v350
        %v474 = vpop.permute.xlu0 %473
        %v476 = vmul.f32 %v474, %v470
        %v477 = vmul.f32 %v474, %v471
        %v478 = vadd.f32 %v451, %v476
        %v479 = vadd.f32 %v452, %v477
        %480 = vrot.lane.b32.xlu0 %v437, 16
        %v481 = vpop.permute.xlu0 %480
        %482 = vrot.lane.b32.xlu0 %v439, 16
        %v483 = vpop.permute.xlu0 %482
        %vm484 = vcmp.lt.s32.totalorder %v458, 16
        %v485 = vsel %vm484, %v481, %v483
        %v486 = vsel %vm484, %v483, %v481
        %v487 = vlaneseq
        %v488 = vshrl.u32 %v487, 7
        %v489 = vsub.s32 1, %v488
        %v490 = vrot.slane %v344, %v489
        %v491 = vlaneseq
        %v492 = vshrl.u32 %v491, 7
        %v493 = vsub.s32 1, %v492
        %v494 = vrot.slane %v345, %v493
        %v495 = vmul.f32 %v486, %v490
        %v496 = vmul.f32 %v485, %v494
        %497 = vset.pattern.permute.xlu0 1
        %498 = vperm.xlu0 %497, %v350
        %v499 = vpop.permute.xlu0 %498
        %v501 = vmul.f32 %v499, %v495
        %v502 = vmul.f32 %v499, %v496
        %v503 = vadd.f32 %v478, %v501
        %v504 = vadd.f32 %v479, %v502
        %505 = vrot.lane.b32.xlu0 %v437, 15
        %v506 = vpop.permute.xlu0 %505
        %507 = vrot.lane.b32.xlu0 %v439, 15
        %v508 = vpop.permute.xlu0 %507
        %vm509 = vcmp.lt.s32.totalorder %v458, 15
        %v510 = vsel %vm509, %v506, %v508
        %v511 = vsel %vm509, %v508, %v506
        %v512 = vlaneseq
        %v513 = vshrl.u32 %v512, 7
        %v514 = vsub.s32 2, %v513
        %v515 = vrot.slane %v344, %v514
        %v516 = vlaneseq
        %v517 = vshrl.u32 %v516, 7
        %v518 = vsub.s32 2, %v517
        %v519 = vrot.slane %v345, %v518
        %v520 = vmul.f32 %v511, %v515
        %v521 = vmul.f32 %v510, %v519
        %522 = vset.pattern.permute.xlu0 2
        %523 = vperm.xlu0 %522, %v350
        %v524 = vpop.permute.xlu0 %523
        %v526 = vmul.f32 %v524, %v520
        %v527 = vmul.f32 %v524, %v521
        %v528 = vadd.f32 %v503, %v526
        %v529 = vadd.f32 %v504, %v527
        %530 = vrot.lane.b32.xlu0 %v437, 1
        %v531 = vpop.permute.xlu0 %530
        %532 = vrot.lane.b32.xlu0 %v439, 1
        %v533 = vpop.permute.xlu0 %532
        %vm534 = vcmp.lt.s32.totalorder %v458, 1
        %v535 = vsel %vm534, %v531, %v533
        %v536 = vsel %vm534, %v533, %v531
        %v537 = vlaneseq
        %v538 = vshrl.u32 %v537, 7
        %v539 = vsub.s32 3, %v538
        %v540 = vrot.slane %v344, %v539
        %v541 = vlaneseq
        %v542 = vshrl.u32 %v541, 7
        %v543 = vsub.s32 3, %v542
        %v544 = vrot.slane %v345, %v543
        %v545 = vmul.f32 %v536, %v540
        %v546 = vmul.f32 %v535, %v544
        %547 = vset.pattern.permute.xlu0 3
        %548 = vperm.xlu0 %547, %v350
        %v549 = vpop.permute.xlu0 %548
        %v551 = vmul.f32 %v549, %v545
        %v552 = vmul.f32 %v549, %v546
        %v553 = vadd.f32 %v528, %v551
        %v554 = vadd.f32 %v529, %v552
        %555 = vrot.lane.b32.xlu0 %v437, 127
        %v556 = vpop.permute.xlu0 %555
        %557 = vrot.lane.b32.xlu0 %v439, 127
        %v558 = vpop.permute.xlu0 %557
        %vm559 = vcmp.lt.s32.totalorder %v458, 127
        %v560 = vsel %vm559, %v556, %v558
        %v561 = vsel %vm559, %v558, %v556
        %v562 = vlaneseq
        %v563 = vshrl.u32 %v562, 7
        %v564 = vsub.s32 5, %v563
        %v565 = vrot.slane %v344, %v564
        %v566 = vlaneseq
        %v567 = vshrl.u32 %v566, 7
        %v568 = vsub.s32 5, %v567
        %v569 = vrot.slane %v345, %v568
        %v570 = vmul.f32 %v560, %v565
        %v571 = vmul.f32 %v561, %v569
        %572 = vset.pattern.permute.xlu0 5
        %573 = vperm.xlu0 %572, %v350
        %v574 = vpop.permute.xlu0 %573
        %v576 = vmul.f32 %v574, %v570
        %v577 = vmul.f32 %v574, %v571
        %v578 = vadd.f32 %v553, %v576
        %v579 = vadd.f32 %v554, %v577
        %580 = vrot.lane.b32.xlu0 %v437, 113
        %v581 = vpop.permute.xlu0 %580
        %582 = vrot.lane.b32.xlu0 %v439, 113
        %v583 = vpop.permute.xlu0 %582
        %vm584 = vcmp.lt.s32.totalorder %v458, 113
        %v585 = vsel %vm584, %v581, %v583
        %v586 = vsel %vm584, %v583, %v581
        %v587 = vlaneseq
        %v588 = vshrl.u32 %v587, 7
        %v589 = vsub.s32 6, %v588
        %v590 = vrot.slane %v344, %v589
        %v591 = vlaneseq
        %v592 = vshrl.u32 %v591, 7
        %v593 = vsub.s32 6, %v592
        %v594 = vrot.slane %v345, %v593
        %v595 = vmul.f32 %v585, %v590
        %v596 = vmul.f32 %v586, %v594
        %597 = vset.pattern.permute.xlu0 6
        %598 = vperm.xlu0 %597, %v350
        %v599 = vpop.permute.xlu0 %598
        %v601 = vmul.f32 %v599, %v595
        %v602 = vmul.f32 %v599, %v596
        %v603 = vadd.f32 %v578, %v601
        %v604 = vadd.f32 %v579, %v602
        %605 = vrot.lane.b32.xlu0 %v437, 112
        %v606 = vpop.permute.xlu0 %605
        %607 = vrot.lane.b32.xlu0 %v439, 112
        %v608 = vpop.permute.xlu0 %607
        %vm609 = vcmp.lt.s32.totalorder %v458, 112
        %v610 = vsel %vm609, %v606, %v608
        %v611 = vsel %vm609, %v608, %v606
        %v612 = vlaneseq
        %v613 = vshrl.u32 %v612, 7
        %v614 = vsub.s32 7, %v613
        %v615 = vrot.slane %v344, %v614
        %v616 = vlaneseq
        %v617 = vshrl.u32 %v616, 7
        %v618 = vsub.s32 7, %v617
        %v619 = vrot.slane %v345, %v618
        %v620 = vmul.f32 %v610, %v615
        %v621 = vmul.f32 %v611, %v619
        %622 = vset.pattern.permute.xlu0 7
        %623 = vperm.xlu0 %622, %v350
        %v624 = vpop.permute.xlu0 %623
        %v626 = vmul.f32 %v624, %v620
        %v627 = vmul.f32 %v624, %v621
        %v628 = vadd.f32 %v603, %v626
        %v629 = vadd.f32 %v604, %v627
        %630 = vrot.lane.b32.xlu0 %v437, 111
        %v631 = vpop.permute.xlu0 %630
        %632 = vrot.lane.b32.xlu0 %v439, 111
        %v633 = vpop.permute.xlu0 %632
        %vm634 = vcmp.lt.s32.totalorder %v458, 111
        %v635 = vsel %vm634, %v631, %v633
        %v636 = vsel %vm634, %v633, %v631
        %v637 = vlaneseq
        %v638 = vshrl.u32 %v637, 7
        %v639 = vsub.s32 0, %v638
        %v640 = vrot.slane %v346, %v639
        %v641 = vlaneseq
        %v642 = vshrl.u32 %v641, 7
        %v643 = vsub.s32 0, %v642
        %v644 = vrot.slane %v347, %v643
        %v645 = vmul.f32 %v635, %v640
        %v646 = vmul.f32 %v636, %v644
        %647 = vset.pattern.permute.xlu0 8
        %648 = vperm.xlu0 %647, %v350
        %v649 = vpop.permute.xlu0 %648
        %v651 = vmul.f32 %v649, %v645
        %v652 = vmul.f32 %v649, %v646
        %v653 = vadd.f32 %v628, %v651
        %v654 = vadd.f32 %v629, %v652
        %vm655 = vcmask 64512
        %v657 = vsel %vm655, %v348, 0
        %659 = vmatprep.subr.mxu0 %v654
        %660 = vmatpush1.msra.mxu0 %v653
        %661 = vmatprep.subr.mxu0 0.0
        %662 = vmatpush1.msra.mxu0 0.0
        %663 = vmatprep.subr.mxu0 0.0
        %664 = vmatpush1.msra.mxu0 0.0
        %665 = vmatprep.subr.mxu0 0.0
        %666 = vmatpush1.msra.mxu0 0.0
        %667 = vmatprep.subr.mxu0 0.0
        %668 = vmatpush1.msra.mxu0 0.0
        %669 = vmatprep.subr.mxu0 0.0
        %670 = vmatpush1.msra.mxu0 0.0
        %671 = vmatprep.subr.mxu0 0.0
        %672 = vmatpush1.msra.mxu0 0.0
        %673 = vmatprep.subr.mxu0 0.0
        %674 = vmatpush1.msra.mxu0 0.0
        %675 = vmatprep.subr.mxu0 0.0
        %676 = vmatpush1.msra.mxu0 0.0
        %677 = vmatprep.subr.mxu0 0.0
        %678 = vmatpush1.msra.mxu0 0.0
        %679 = vmatprep.subr.mxu0 0.0
        %680 = vmatpush1.msra.mxu0 0.0
        %681 = vmatprep.subr.mxu0 0.0
        %682 = vmatpush1.msra.mxu0 0.0
        %683 = vmatprep.subr.mxu0 0.0
        %684 = vmatpush1.msra.mxu0 0.0
        %685 = vmatprep.subr.mxu0 0.0
        %686 = vmatpush1.msra.mxu0 0.0
        %687 = vmatprep.subr.mxu0 0.0
        %688 = vmatpush1.msra.mxu0 0.0
        %689 = vmatprep.subr.mxu0 0.0
        %690 = vmatpush1.msra.mxu0 0.0
        %691 = vmatprep.subr.mxu0 0.0
        %692 = vmatpush1.msra.mxu0 0.0
        %693 = vmatprep.subr.mxu0 0.0
        %694 = vmatpush1.msra.mxu0 0.0
        %695 = vmatprep.subr.mxu0 0.0
        %696 = vmatpush1.msra.mxu0 0.0
        %697 = vmatprep.subr.mxu0 0.0
        %698 = vmatpush1.msra.mxu0 0.0
        %699 = vmatprep.subr.mxu0 0.0
        %700 = vmatpush1.msra.mxu0 0.0
        %701 = vmatprep.subr.mxu0 0.0
        %702 = vmatpush1.msra.mxu0 0.0
        %703 = vmatprep.subr.mxu0 0.0
        %704 = vmatpush1.msra.mxu0 0.0
        %705 = vmatprep.subr.mxu0 0.0
        %706 = vmatpush1.msra.mxu0 0.0
        %707 = vmatprep.subr.mxu0 0.0
        %708 = vmatpush1.msra.mxu0 0.0
        %709 = vmatprep.subr.mxu0 0.0
        %710 = vmatpush1.msra.mxu0 0.0
        %711 = vmatprep.subr.mxu0 0.0
        %712 = vmatpush1.msra.mxu0 0.0
        %713 = vmatprep.subr.mxu0 0.0
        %714 = vmatpush1.msra.mxu0 0.0
        %715 = vmatprep.subr.mxu0 0.0
        %716 = vmatpush1.msra.mxu0 0.0
        %717 = vmatprep.subr.mxu0 0.0
        %718 = vmatpush1.msra.mxu0 0.0
        %719 = vmatprep.subr.mxu0 0.0
        %720 = vmatpush1.msra.mxu0 0.0
        %721 = vmatprep.subr.mxu0 0.0
        %722 = vmatpush1.msra.mxu0 0.0
        %723 = vmatprep.mubr.f32.mxu0 0.0
        %724 = vmatmul.mubr.f32.gmra.mrb[0].mxu0 %v657
        %v725 = vpop.f32.mrb[0].mxu0
        %v726 = vadd.f32 0.0, %v725
        %v727 = vpop.f32.mrb[0].mxu0
        %v728 = vadd.f32 0.0, %v727
        %729 = vdwg.mxu0
        %v730 = vmul.f32 %v653, %v653
        %v731 = vmul.f32 %v654, %v654
        %732 = vmatprep.subr.mxu0 %v731
        %733 = vmatpush1.msra.mxu0 %v730
        %734 = vmatprep.subr.mxu0 0.0
        %735 = vmatpush1.msra.mxu0 0.0
        %736 = vmatprep.subr.mxu0 0.0
        %737 = vmatpush1.msra.mxu0 0.0
        %738 = vmatprep.subr.mxu0 0.0
        %739 = vmatpush1.msra.mxu0 0.0
        %740 = vmatprep.subr.mxu0 0.0
        %741 = vmatpush1.msra.mxu0 0.0
        %742 = vmatprep.subr.mxu0 0.0
        %743 = vmatpush1.msra.mxu0 0.0
        %744 = vmatprep.subr.mxu0 0.0
        %745 = vmatpush1.msra.mxu0 0.0
        %746 = vmatprep.subr.mxu0 0.0
        %747 = vmatpush1.msra.mxu0 0.0
        %748 = vmatprep.subr.mxu0 0.0
        %749 = vmatpush1.msra.mxu0 0.0
        %750 = vmatprep.subr.mxu0 0.0
        %751 = vmatpush1.msra.mxu0 0.0
        %752 = vmatprep.subr.mxu0 0.0
        %753 = vmatpush1.msra.mxu0 0.0
        %754 = vmatprep.subr.mxu0 0.0
        %755 = vmatpush1.msra.mxu0 0.0
        %756 = vmatprep.subr.mxu0 0.0
        %757 = vmatpush1.msra.mxu0 0.0
        %758 = vmatprep.subr.mxu0 0.0
        %759 = vmatpush1.msra.mxu0 0.0
        %760 = vmatprep.subr.mxu0 0.0
        %761 = vmatpush1.msra.mxu0 0.0
        %762 = vmatprep.subr.mxu0 0.0
        %763 = vmatpush1.msra.mxu0 0.0
        %764 = vmatprep.subr.mxu0 0.0
        %765 = vmatpush1.msra.mxu0 0.0
        %766 = vmatprep.subr.mxu0 0.0
        %767 = vmatpush1.msra.mxu0 0.0
        %768 = vmatprep.subr.mxu0 0.0
        %769 = vmatpush1.msra.mxu0 0.0
        %770 = vmatprep.subr.mxu0 0.0
        %771 = vmatpush1.msra.mxu0 0.0
        %772 = vmatprep.subr.mxu0 0.0
        %773 = vmatpush1.msra.mxu0 0.0
        %774 = vmatprep.subr.mxu0 0.0
        %775 = vmatpush1.msra.mxu0 0.0
        %776 = vmatprep.subr.mxu0 0.0
        %777 = vmatpush1.msra.mxu0 0.0
        %778 = vmatprep.subr.mxu0 0.0
        %779 = vmatpush1.msra.mxu0 0.0
        %780 = vmatprep.subr.mxu0 0.0
        %781 = vmatpush1.msra.mxu0 0.0
        %782 = vmatprep.subr.mxu0 0.0
        %783 = vmatpush1.msra.mxu0 0.0
        %784 = vmatprep.subr.mxu0 0.0
        %785 = vmatpush1.msra.mxu0 0.0
        %786 = vmatprep.subr.mxu0 0.0
        %787 = vmatpush1.msra.mxu0 0.0
        %788 = vmatprep.subr.mxu0 0.0
        %789 = vmatpush1.msra.mxu0 0.0
        %790 = vmatprep.subr.mxu0 0.0
        %791 = vmatpush1.msra.mxu0 0.0
        %792 = vmatprep.subr.mxu0 0.0
        %793 = vmatpush1.msra.mxu0 0.0
        %794 = vmatprep.subr.mxu0 0.0
        %795 = vmatpush1.msra.mxu0 0.0
        %796 = vmatprep.mubr.f32.mxu0 0.0
        %797 = vmatmul.mubr.f32.gmra.mrb[0].mxu0 %v657
        %v798 = vpop.f32.mrb[0].mxu0
        %v799 = vadd.f32 0.0, %v798
        %v800 = vpop.f32.mrb[0].mxu0
        %v801 = vadd.f32 0.0, %v800
        %802 = vdwg.mxu0
        %vm803 = vcmask 1041408
        %v804 = vsel %vm803, %v726, 0.0
        %v805 = vsel %vm803, %v728, 0.0
        %v806 = vadd.f32 %v804, %v805
        %807 = vadd.xlane.f32.xlu0 %v806
        %v808 = vpop.xlane.xlu0 %807
        %v809 = vsel %vm803, %v799, 0.0
        %v810 = vsel %vm803, %v801, 0.0
        %v811 = vadd.f32 %v809, %v810
        %812 = vadd.xlane.f32.xlu0 %v811
        %v813 = vpop.xlane.xlu0 %812
        %v814 = vmul.f32 %v808, %v808
        %v815 = vsub.f32 %v813, %v814
        %v816 = vmax.f32 %v815, 0.0
        %v817 = vadd.f32 %v816, 1e-05
        %v818 = vrsqrt.pop %v817
        %vm819 = vcmask 15360
        %v821 = vsel %vm819, %v349, 0
        %v824 = vsel %vm803, %v808, 0
        %826 = vmatprep.subr.mxu0 0.0
        %827 = vmatpush1.msra.mxu0 %v824
        %828 = vmatprep.subr.mxu0 0.0
        %829 = vmatpush1.msra.mxu0 0.0
        %830 = vmatprep.subr.mxu0 0.0
        %831 = vmatpush1.msra.mxu0 0.0
        %832 = vmatprep.subr.mxu0 0.0
        %833 = vmatpush1.msra.mxu0 0.0
        %834 = vmatprep.subr.mxu0 0.0
        %835 = vmatpush1.msra.mxu0 0.0
        %836 = vmatprep.subr.mxu0 0.0
        %837 = vmatpush1.msra.mxu0 0.0
        %838 = vmatprep.subr.mxu0 0.0
        %839 = vmatpush1.msra.mxu0 0.0
        %840 = vmatprep.subr.mxu0 0.0
        %841 = vmatpush1.msra.mxu0 0.0
        %842 = vmatprep.subr.mxu0 0.0
        %843 = vmatpush1.msra.mxu0 0.0
        %844 = vmatprep.subr.mxu0 0.0
        %845 = vmatpush1.msra.mxu0 0.0
        %846 = vmatprep.subr.mxu0 0.0
        %847 = vmatpush1.msra.mxu0 0.0
        %848 = vmatprep.subr.mxu0 0.0
        %849 = vmatpush1.msra.mxu0 0.0
        %850 = vmatprep.subr.mxu0 0.0
        %851 = vmatpush1.msra.mxu0 0.0
        %852 = vmatprep.subr.mxu0 0.0
        %853 = vmatpush1.msra.mxu0 0.0
        %854 = vmatprep.subr.mxu0 0.0
        %855 = vmatpush1.msra.mxu0 0.0
        %856 = vmatprep.subr.mxu0 0.0
        %857 = vmatpush1.msra.mxu0 0.0
        %858 = vmatprep.subr.mxu0 0.0
        %859 = vmatpush1.msra.mxu0 0.0
        %860 = vmatprep.subr.mxu0 0.0
        %861 = vmatpush1.msra.mxu0 0.0
        %862 = vmatprep.subr.mxu0 0.0
        %863 = vmatpush1.msra.mxu0 0.0
        %864 = vmatprep.subr.mxu0 0.0
        %865 = vmatpush1.msra.mxu0 0.0
        %866 = vmatprep.subr.mxu0 0.0
        %867 = vmatpush1.msra.mxu0 0.0
        %868 = vmatprep.subr.mxu0 0.0
        %869 = vmatpush1.msra.mxu0 0.0
        %870 = vmatprep.subr.mxu0 0.0
        %871 = vmatpush1.msra.mxu0 0.0
        %872 = vmatprep.subr.mxu0 0.0
        %873 = vmatpush1.msra.mxu0 0.0
        %874 = vmatprep.subr.mxu0 0.0
        %875 = vmatpush1.msra.mxu0 0.0
        %876 = vmatprep.subr.mxu0 0.0
        %877 = vmatpush1.msra.mxu0 0.0
        %878 = vmatprep.subr.mxu0 0.0
        %879 = vmatpush1.msra.mxu0 0.0
        %880 = vmatprep.subr.mxu0 0.0
        %881 = vmatpush1.msra.mxu0 0.0
        %882 = vmatprep.subr.mxu0 0.0
        %883 = vmatpush1.msra.mxu0 0.0
        %884 = vmatprep.subr.mxu0 0.0
        %885 = vmatpush1.msra.mxu0 0.0
        %886 = vmatprep.subr.mxu0 0.0
        %887 = vmatpush1.msra.mxu0 0.0
        %888 = vmatprep.subr.mxu0 0.0
        %889 = vmatpush1.msra.mxu0 0.0
        %890 = vmatprep.mubr.f32.mxu0 0.0
        %891 = vmatmul.mubr.f32.gmra.mrb[0].mxu0 %v821
        %v892 = vpop.f32.mrb[0].mxu0
        %v893 = vadd.f32 0.0, %v892
        %v894 = vpop.f32.mrb[0].mxu0
        %895 = vdwg.mxu0
        %v897 = vsel %vm803, %v818, 0
        %899 = vmatprep.subr.mxu0 0.0
        %900 = vmatpush1.msra.mxu0 %v897
        %901 = vmatprep.subr.mxu0 0.0
        %902 = vmatpush1.msra.mxu0 0.0
        %903 = vmatprep.subr.mxu0 0.0
        %904 = vmatpush1.msra.mxu0 0.0
        %905 = vmatprep.subr.mxu0 0.0
        %906 = vmatpush1.msra.mxu0 0.0
        %907 = vmatprep.subr.mxu0 0.0
        %908 = vmatpush1.msra.mxu0 0.0
        %909 = vmatprep.subr.mxu0 0.0
        %910 = vmatpush1.msra.mxu0 0.0
        %911 = vmatprep.subr.mxu0 0.0
        %912 = vmatpush1.msra.mxu0 0.0
        %913 = vmatprep.subr.mxu0 0.0
        %914 = vmatpush1.msra.mxu0 0.0
        %915 = vmatprep.subr.mxu0 0.0
        %916 = vmatpush1.msra.mxu0 0.0
        %917 = vmatprep.subr.mxu0 0.0
        %918 = vmatpush1.msra.mxu0 0.0
        %919 = vmatprep.subr.mxu0 0.0
        %920 = vmatpush1.msra.mxu0 0.0
        %921 = vmatprep.subr.mxu0 0.0
        %922 = vmatpush1.msra.mxu0 0.0
        %923 = vmatprep.subr.mxu0 0.0
        %924 = vmatpush1.msra.mxu0 0.0
        %925 = vmatprep.subr.mxu0 0.0
        %926 = vmatpush1.msra.mxu0 0.0
        %927 = vmatprep.subr.mxu0 0.0
        %928 = vmatpush1.msra.mxu0 0.0
        %929 = vmatprep.subr.mxu0 0.0
        %930 = vmatpush1.msra.mxu0 0.0
        %931 = vmatprep.subr.mxu0 0.0
        %932 = vmatpush1.msra.mxu0 0.0
        %933 = vmatprep.subr.mxu0 0.0
        %934 = vmatpush1.msra.mxu0 0.0
        %935 = vmatprep.subr.mxu0 0.0
        %936 = vmatpush1.msra.mxu0 0.0
        %937 = vmatprep.subr.mxu0 0.0
        %938 = vmatpush1.msra.mxu0 0.0
        %939 = vmatprep.subr.mxu0 0.0
        %940 = vmatpush1.msra.mxu0 0.0
        %941 = vmatprep.subr.mxu0 0.0
        %942 = vmatpush1.msra.mxu0 0.0
        %943 = vmatprep.subr.mxu0 0.0
        %944 = vmatpush1.msra.mxu0 0.0
        %945 = vmatprep.subr.mxu0 0.0
        %946 = vmatpush1.msra.mxu0 0.0
        %947 = vmatprep.subr.mxu0 0.0
        %948 = vmatpush1.msra.mxu0 0.0
        %949 = vmatprep.subr.mxu0 0.0
        %950 = vmatpush1.msra.mxu0 0.0
        %951 = vmatprep.subr.mxu0 0.0
        %952 = vmatpush1.msra.mxu0 0.0
        %953 = vmatprep.subr.mxu0 0.0
        %954 = vmatpush1.msra.mxu0 0.0
        %955 = vmatprep.subr.mxu0 0.0
        %956 = vmatpush1.msra.mxu0 0.0
        %957 = vmatprep.subr.mxu0 0.0
        %958 = vmatpush1.msra.mxu0 0.0
        %959 = vmatprep.subr.mxu0 0.0
        %960 = vmatpush1.msra.mxu0 0.0
        %961 = vmatprep.subr.mxu0 0.0
        %962 = vmatpush1.msra.mxu0 0.0
        %963 = vmatprep.mubr.f32.mxu0 0.0
        %964 = vmatmul.mubr.f32.gmra.mrb[0].mxu0 %v821
        %v965 = vpop.f32.mrb[0].mxu0
        %v966 = vadd.f32 0.0, %v965
        %v967 = vpop.f32.mrb[0].mxu0
        %968 = vdwg.mxu0
        %969 = vrot.lane.b32.xlu0 %v350, 117
        %v970 = vpop.permute.xlu0 %969
        %v972 = vmul.f32 %v966, %v970
        %v973 = vmul.f32 %v893, %v972
        %975 = vrot.lane.b32.xlu0 %v973, 12
        %v976 = vpop.permute.xlu0 %975
        %v978 = vsub.f32 %v350, %v976
        %980 = vset.pattern.permute.xlu0 0
        %981 = vperm.xlu0 %980, %v972
        %v982 = vpop.permute.xlu0 %981
        %v984 = vmul.f32 %v653, %v982
        %v985 = vmul.f32 %v654, %v982
        %987 = vset.pattern.permute.xlu0 12
        %988 = vperm.xlu0 %987, %v978
        %v989 = vpop.permute.xlu0 %988
        %v991 = vadd.f32 %v984, %v989
        %v992 = vadd.f32 %v985, %v989
        %v993 = vmax.f32 %v991, 0.0
        %v994 = vmax.f32 %v992, 0.0
        %v995 = vld [vmem:[#allocation2] sm:$0xff]
        %997 = vset.pattern.permute.xlu0 9
        %998 = vperm.xlu0 %997, %v351
        %v999 = vpop.permute.xlu0 %998
        %v1002 = vsel %vm655, %v995, 0
        %1004 = vmatprep.subr.mxu0 %v994
        %1005 = vmatpush1.msra.mxu0 %v993
        %1006 = vmatprep.subr.mxu0 0.0
        %1007 = vmatpush1.msra.mxu0 0.0
        %1008 = vmatprep.subr.mxu0 0.0
        %1009 = vmatpush1.msra.mxu0 0.0
        %1010 = vmatprep.subr.mxu0 0.0
        %1011 = vmatpush1.msra.mxu0 0.0
        %1012 = vmatprep.subr.mxu0 0.0
        %1013 = vmatpush1.msra.mxu0 0.0
        %1014 = vmatprep.subr.mxu0 0.0
        %1015 = vmatpush1.msra.mxu0 0.0
        %1016 = vmatprep.subr.mxu0 0.0
        %1017 = vmatpush1.msra.mxu0 0.0
        %1018 = vmatprep.subr.mxu0 0.0
        %1019 = vmatpush1.msra.mxu0 0.0
        %1020 = vmatprep.subr.mxu0 0.0
        %1021 = vmatpush1.msra.mxu0 0.0
        %1022 = vmatprep.subr.mxu0 0.0
        %1023 = vmatpush1.msra.mxu0 0.0
        %1024 = vmatprep.subr.mxu0 0.0
        %1025 = vmatpush1.msra.mxu0 0.0
        %1026 = vmatprep.subr.mxu0 0.0
        %1027 = vmatpush1.msra.mxu0 0.0
        %1028 = vmatprep.subr.mxu0 0.0
        %1029 = vmatpush1.msra.mxu0 0.0
        %1030 = vmatprep.subr.mxu0 0.0
        %1031 = vmatpush1.msra.mxu0 0.0
        %1032 = vmatprep.subr.mxu0 0.0
        %1033 = vmatpush1.msra.mxu0 0.0
        %1034 = vmatprep.subr.mxu0 0.0
        %1035 = vmatpush1.msra.mxu0 0.0
        %1036 = vmatprep.subr.mxu0 0.0
        %1037 = vmatpush1.msra.mxu0 0.0
        %1038 = vmatprep.subr.mxu0 0.0
        %1039 = vmatpush1.msra.mxu0 0.0
        %1040 = vmatprep.subr.mxu0 0.0
        %1041 = vmatpush1.msra.mxu0 0.0
        %1042 = vmatprep.subr.mxu0 0.0
        %1043 = vmatpush1.msra.mxu0 0.0
        %1044 = vmatprep.subr.mxu0 0.0
        %1045 = vmatpush1.msra.mxu0 0.0
        %1046 = vmatprep.subr.mxu0 0.0
        %1047 = vmatpush1.msra.mxu0 0.0
        %1048 = vmatprep.subr.mxu0 0.0
        %1049 = vmatpush1.msra.mxu0 0.0
        %1050 = vmatprep.subr.mxu0 0.0
        %1051 = vmatpush1.msra.mxu0 0.0
        %1052 = vmatprep.subr.mxu0 0.0
        %1053 = vmatpush1.msra.mxu0 0.0
        %1054 = vmatprep.subr.mxu0 0.0
        %1055 = vmatpush1.msra.mxu0 0.0
        %1056 = vmatprep.subr.mxu0 0.0
        %1057 = vmatpush1.msra.mxu0 0.0
        %1058 = vmatprep.subr.mxu0 0.0
        %1059 = vmatpush1.msra.mxu0 0.0
        %1060 = vmatprep.subr.mxu0 0.0
        %1061 = vmatpush1.msra.mxu0 0.0
        %1062 = vmatprep.subr.mxu0 0.0
        %1063 = vmatpush1.msra.mxu0 0.0
        %1064 = vmatprep.subr.mxu0 0.0
        %1065 = vmatpush1.msra.mxu0 0.0
        %1066 = vmatprep.subr.mxu0 0.0
        %1067 = vmatpush1.msra.mxu0 0.0
        %1068 = vmatprep.mubr.f32.mxu0 0.0
        %1069 = vmatmul.mubr.f32.gmra.mrb[0].mxu0 %v1002
        %v1070 = vpop.f32.mrb[0].mxu0
        %v1071 = vadd.f32 %v999, %v1070
        %v1072 = vpop.f32.mrb[0].mxu0
        %v1073 = vadd.f32 %v999, %v1072
        %1074 = vdwg.mxu0
        %1075 = vset.pattern.permute.xlu0 4
        %1076 = vperm.xlu0 %1075, %v351
        %v1077 = vpop.permute.xlu0 %1076
        %v1079 = vmul.f32 %v1077, %v1071
        %v1080 = vmul.f32 %v1077, %v1073
        %1081 = vset.pattern.permute.xlu0 10
        %1082 = vperm.xlu0 %1081, %v351
        %v1083 = vpop.permute.xlu0 %1082
        %v1085 = vadd.f32 %v1079, %v1083
        %v1086 = vadd.f32 %v1080, %v1083
        %1087 = vrot.lane.b32.xlu0 %v1071, 17
        %v1088 = vpop.permute.xlu0 %1087
        %1089 = vrot.lane.b32.xlu0 %v1073, 17
        %v1090 = vpop.permute.xlu0 %1089
        %v1091 = vsel %vm459, %v1088, %v1090
        %v1092 = vsel %vm459, %v1090, %v1088
        %v1093 = vmul.f32 %v1092, %v465
        %v1094 = vmul.f32 %v1091, %v469
        %1095 = vset.pattern.permute.xlu0 0
        %1096 = vperm.xlu0 %1095, %v351
        %v1097 = vpop.permute.xlu0 %1096
        %v1099 = vmul.f32 %v1097, %v1093
        %v1100 = vmul.f32 %v1097, %v1094
        %v1101 = vadd.f32 %v1085, %v1099
        %v1102 = vadd.f32 %v1086, %v1100
        %1103 = vrot.lane.b32.xlu0 %v1071, 16
        %v1104 = vpop.permute.xlu0 %1103
        %1105 = vrot.lane.b32.xlu0 %v1073, 16
        %v1106 = vpop.permute.xlu0 %1105
        %v1107 = vsel %vm484, %v1104, %v1106
        %v1108 = vsel %vm484, %v1106, %v1104
        %v1109 = vmul.f32 %v1108, %v490
        %v1110 = vmul.f32 %v1107, %v494
        %1111 = vset.pattern.permute.xlu0 1
        %1112 = vperm.xlu0 %1111, %v351
        %v1113 = vpop.permute.xlu0 %1112
        %v1115 = vmul.f32 %v1113, %v1109
        %v1116 = vmul.f32 %v1113, %v1110
        %v1117 = vadd.f32 %v1101, %v1115
        %v1118 = vadd.f32 %v1102, %v1116
        %1119 = vrot.lane.b32.xlu0 %v1071, 15
        %v1120 = vpop.permute.xlu0 %1119
        %1121 = vrot.lane.b32.xlu0 %v1073, 15
        %v1122 = vpop.permute.xlu0 %1121
        %v1123 = vsel %vm509, %v1120, %v1122
        %v1124 = vsel %vm509, %v1122, %v1120
        %v1125 = vmul.f32 %v1124, %v515
        %v1126 = vmul.f32 %v1123, %v519
        %1127 = vset.pattern.permute.xlu0 2
        %1128 = vperm.xlu0 %1127, %v351
        %v1129 = vpop.permute.xlu0 %1128
        %v1131 = vmul.f32 %v1129, %v1125
        %v1132 = vmul.f32 %v1129, %v1126
        %v1133 = vadd.f32 %v1117, %v1131
        %v1134 = vadd.f32 %v1118, %v1132
        %1135 = vrot.lane.b32.xlu0 %v1071, 1
        %v1136 = vpop.permute.xlu0 %1135
        %1137 = vrot.lane.b32.xlu0 %v1073, 1
        %v1138 = vpop.permute.xlu0 %1137
        %v1139 = vsel %vm534, %v1136, %v1138
        %v1140 = vsel %vm534, %v1138, %v1136
        %v1141 = vmul.f32 %v1140, %v540
        %v1142 = vmul.f32 %v1139, %v544
        %1143 = vset.pattern.permute.xlu0 3
        %1144 = vperm.xlu0 %1143, %v351
        %v1145 = vpop.permute.xlu0 %1144
        %v1147 = vmul.f32 %v1145, %v1141
        %v1148 = vmul.f32 %v1145, %v1142
        %v1149 = vadd.f32 %v1133, %v1147
        %v1150 = vadd.f32 %v1134, %v1148
        %1151 = vrot.lane.b32.xlu0 %v1071, 127
        %v1152 = vpop.permute.xlu0 %1151
        %1153 = vrot.lane.b32.xlu0 %v1073, 127
        %v1154 = vpop.permute.xlu0 %1153
        %v1155 = vsel %vm559, %v1152, %v1154
        %v1156 = vsel %vm559, %v1154, %v1152
        %v1157 = vmul.f32 %v1155, %v565
        %v1158 = vmul.f32 %v1156, %v569
        %1159 = vset.pattern.permute.xlu0 5
        %1160 = vperm.xlu0 %1159, %v351
        %v1161 = vpop.permute.xlu0 %1160
        %v1163 = vmul.f32 %v1161, %v1157
        %v1164 = vmul.f32 %v1161, %v1158
        %v1165 = vadd.f32 %v1149, %v1163
        %v1166 = vadd.f32 %v1150, %v1164
        %1167 = vrot.lane.b32.xlu0 %v1071, 113
        %v1168 = vpop.permute.xlu0 %1167
        %1169 = vrot.lane.b32.xlu0 %v1073, 113
        %v1170 = vpop.permute.xlu0 %1169
        %v1171 = vsel %vm584, %v1168, %v1170
        %v1172 = vsel %vm584, %v1170, %v1168
        %v1173 = vmul.f32 %v1171, %v590
        %v1174 = vmul.f32 %v1172, %v594
        %1175 = vset.pattern.permute.xlu0 6
        %1176 = vperm.xlu0 %1175, %v351
        %v1177 = vpop.permute.xlu0 %1176
        %v1179 = vmul.f32 %v1177, %v1173
        %v1180 = vmul.f32 %v1177, %v1174
        %v1181 = vadd.f32 %v1165, %v1179
        %v1182 = vadd.f32 %v1166, %v1180
        %1183 = vrot.lane.b32.xlu0 %v1071, 112
        %v1184 = vpop.permute.xlu0 %1183
        %1185 = vrot.lane.b32.xlu0 %v1073, 112
        %v1186 = vpop.permute.xlu0 %1185
        %v1187 = vsel %vm609, %v1184, %v1186
        %v1188 = vsel %vm609, %v1186, %v1184
        %v1189 = vmul.f32 %v1187, %v615
        %v1190 = vmul.f32 %v1188, %v619
        %1191 = vset.pattern.permute.xlu0 7
        %1192 = vperm.xlu0 %1191, %v351
        %v1193 = vpop.permute.xlu0 %1192
        %v1195 = vmul.f32 %v1193, %v1189
        %v1196 = vmul.f32 %v1193, %v1190
        %v1197 = vadd.f32 %v1181, %v1195
        %v1198 = vadd.f32 %v1182, %v1196
        %1199 = vrot.lane.b32.xlu0 %v1071, 111
        %v1200 = vpop.permute.xlu0 %1199
        %1201 = vrot.lane.b32.xlu0 %v1073, 111
        %v1202 = vpop.permute.xlu0 %1201
        %v1203 = vsel %vm634, %v1200, %v1202
        %v1204 = vsel %vm634, %v1202, %v1200
        %v1205 = vmul.f32 %v1203, %v640
        %v1206 = vmul.f32 %v1204, %v644
        %1207 = vset.pattern.permute.xlu0 8
        %1208 = vperm.xlu0 %1207, %v351
        %v1209 = vpop.permute.xlu0 %1208
        %v1211 = vmul.f32 %v1209, %v1205
        %v1212 = vmul.f32 %v1209, %v1206
        %v1213 = vadd.f32 %v1197, %v1211
        %v1214 = vadd.f32 %v1198, %v1212
        %1215 = vmatprep.subr.mxu0 %v1214
        %1216 = vmatpush1.msra.mxu0 %v1213
        %1217 = vmatprep.subr.mxu0 0.0
        %1218 = vmatpush1.msra.mxu0 0.0
        %1219 = vmatprep.subr.mxu0 0.0
        %1220 = vmatpush1.msra.mxu0 0.0
        %1221 = vmatprep.subr.mxu0 0.0
        %1222 = vmatpush1.msra.mxu0 0.0
        %1223 = vmatprep.subr.mxu0 0.0
        %1224 = vmatpush1.msra.mxu0 0.0
        %1225 = vmatprep.subr.mxu0 0.0
        %1226 = vmatpush1.msra.mxu0 0.0
        %1227 = vmatprep.subr.mxu0 0.0
        %1228 = vmatpush1.msra.mxu0 0.0
        %1229 = vmatprep.subr.mxu0 0.0
        %1230 = vmatpush1.msra.mxu0 0.0
        %1231 = vmatprep.subr.mxu0 0.0
        %1232 = vmatpush1.msra.mxu0 0.0
        %1233 = vmatprep.subr.mxu0 0.0
        %1234 = vmatpush1.msra.mxu0 0.0
        %1235 = vmatprep.subr.mxu0 0.0
        %1236 = vmatpush1.msra.mxu0 0.0
        %1237 = vmatprep.subr.mxu0 0.0
        %1238 = vmatpush1.msra.mxu0 0.0
        %1239 = vmatprep.subr.mxu0 0.0
        %1240 = vmatpush1.msra.mxu0 0.0
        %1241 = vmatprep.subr.mxu0 0.0
        %1242 = vmatpush1.msra.mxu0 0.0
        %1243 = vmatprep.subr.mxu0 0.0
        %1244 = vmatpush1.msra.mxu0 0.0
        %1245 = vmatprep.subr.mxu0 0.0
        %1246 = vmatpush1.msra.mxu0 0.0
        %1247 = vmatprep.subr.mxu0 0.0
        %1248 = vmatpush1.msra.mxu0 0.0
        %1249 = vmatprep.subr.mxu0 0.0
        %1250 = vmatpush1.msra.mxu0 0.0
        %1251 = vmatprep.subr.mxu0 0.0
        %1252 = vmatpush1.msra.mxu0 0.0
        %1253 = vmatprep.subr.mxu0 0.0
        %1254 = vmatpush1.msra.mxu0 0.0
        %1255 = vmatprep.subr.mxu0 0.0
        %1256 = vmatpush1.msra.mxu0 0.0
        %1257 = vmatprep.subr.mxu0 0.0
        %1258 = vmatpush1.msra.mxu0 0.0
        %1259 = vmatprep.subr.mxu0 0.0
        %1260 = vmatpush1.msra.mxu0 0.0
        %1261 = vmatprep.subr.mxu0 0.0
        %1262 = vmatpush1.msra.mxu0 0.0
        %1263 = vmatprep.subr.mxu0 0.0
        %1264 = vmatpush1.msra.mxu0 0.0
        %1265 = vmatprep.subr.mxu0 0.0
        %1266 = vmatpush1.msra.mxu0 0.0
        %1267 = vmatprep.subr.mxu0 0.0
        %1268 = vmatpush1.msra.mxu0 0.0
        %1269 = vmatprep.subr.mxu0 0.0
        %1270 = vmatpush1.msra.mxu0 0.0
        %1271 = vmatprep.subr.mxu0 0.0
        %1272 = vmatpush1.msra.mxu0 0.0
        %1273 = vmatprep.subr.mxu0 0.0
        %1274 = vmatpush1.msra.mxu0 0.0
        %1275 = vmatprep.subr.mxu0 0.0
        %1276 = vmatpush1.msra.mxu0 0.0
        %1277 = vmatprep.subr.mxu0 0.0
        %1278 = vmatpush1.msra.mxu0 0.0
        %1279 = vmatprep.mubr.f32.mxu0 0.0
        %1280 = vmatmul.mubr.f32.gmra.mrb[0].mxu0 %v657
        %v1281 = vpop.f32.mrb[0].mxu0
        %v1282 = vadd.f32 0.0, %v1281
        %v1283 = vpop.f32.mrb[0].mxu0
        %v1284 = vadd.f32 0.0, %v1283
        %1285 = vdwg.mxu0
        %v1286 = vmul.f32 %v1213, %v1213
        %v1287 = vmul.f32 %v1214, %v1214
        %1288 = vmatprep.subr.mxu0 %v1287
        %1289 = vmatpush1.msra.mxu0 %v1286
        %1290 = vmatprep.subr.mxu0 0.0
        %1291 = vmatpush1.msra.mxu0 0.0
        %1292 = vmatprep.subr.mxu0 0.0
        %1293 = vmatpush1.msra.mxu0 0.0
        %1294 = vmatprep.subr.mxu0 0.0
        %1295 = vmatpush1.msra.mxu0 0.0
        %1296 = vmatprep.subr.mxu0 0.0
        %1297 = vmatpush1.msra.mxu0 0.0
        %1298 = vmatprep.subr.mxu0 0.0
        %1299 = vmatpush1.msra.mxu0 0.0
        %1300 = vmatprep.subr.mxu0 0.0
        %1301 = vmatpush1.msra.mxu0 0.0
        %1302 = vmatprep.subr.mxu0 0.0
        %1303 = vmatpush1.msra.mxu0 0.0
        %1304 = vmatprep.subr.mxu0 0.0
        %1305 = vmatpush1.msra.mxu0 0.0
        %1306 = vmatprep.subr.mxu0 0.0
        %1307 = vmatpush1.msra.mxu0 0.0
        %1308 = vmatprep.subr.mxu0 0.0
        %1309 = vmatpush1.msra.mxu0 0.0
        %1310 = vmatprep.subr.mxu0 0.0
        %1311 = vmatpush1.msra.mxu0 0.0
        %1312 = vmatprep.subr.mxu0 0.0
        %1313 = vmatpush1.msra.mxu0 0.0
        %1314 = vmatprep.subr.mxu0 0.0
        %1315 = vmatpush1.msra.mxu0 0.0
        %1316 = vmatprep.subr.mxu0 0.0
        %1317 = vmatpush1.msra.mxu0 0.0
        %1318 = vmatprep.subr.mxu0 0.0
        %1319 = vmatpush1.msra.mxu0 0.0
        %1320 = vmatprep.subr.mxu0 0.0
        %1321 = vmatpush1.msra.mxu0 0.0
        %1322 = vmatprep.subr.mxu0 0.0
        %1323 = vmatpush1.msra.mxu0 0.0
        %1324 = vmatprep.subr.mxu0 0.0
        %1325 = vmatpush1.msra.mxu0 0.0
        %1326 = vmatprep.subr.mxu0 0.0
        %1327 = vmatpush1.msra.mxu0 0.0
        %1328 = vmatprep.subr.mxu0 0.0
        %1329 = vmatpush1.msra.mxu0 0.0
        %1330 = vmatprep.subr.mxu0 0.0
        %1331 = vmatpush1.msra.mxu0 0.0
        %1332 = vmatprep.subr.mxu0 0.0
        %1333 = vmatpush1.msra.mxu0 0.0
        %1334 = vmatprep.subr.mxu0 0.0
        %1335 = vmatpush1.msra.mxu0 0.0
        %1336 = vmatprep.subr.mxu0 0.0
        %1337 = vmatpush1.msra.mxu0 0.0
        %1338 = vmatprep.subr.mxu0 0.0
        %1339 = vmatpush1.msra.mxu0 0.0
        %1340 = vmatprep.subr.mxu0 0.0
        %1341 = vmatpush1.msra.mxu0 0.0
        %1342 = vmatprep.subr.mxu0 0.0
        %1343 = vmatpush1.msra.mxu0 0.0
        %1344 = vmatprep.subr.mxu0 0.0
        %1345 = vmatpush1.msra.mxu0 0.0
        %1346 = vmatprep.subr.mxu0 0.0
        %1347 = vmatpush1.msra.mxu0 0.0
        %1348 = vmatprep.subr.mxu0 0.0
        %1349 = vmatpush1.msra.mxu0 0.0
        %1350 = vmatprep.subr.mxu0 0.0
        %1351 = vmatpush1.msra.mxu0 0.0
        %1352 = vmatprep.mubr.f32.mxu0 0.0
        %1353 = vmatmul.mubr.f32.gmra.mrb[0].mxu0 %v657
        %v1354 = vpop.f32.mrb[0].mxu0
        %v1355 = vadd.f32 0.0, %v1354
        %v1356 = vpop.f32.mrb[0].mxu0
        %v1357 = vadd.f32 0.0, %v1356
        %1358 = vdwg.mxu0
        %v1359 = vsel %vm803, %v1282, 0.0
        %v1360 = vsel %vm803, %v1284, 0.0
        %v1361 = vadd.f32 %v1359, %v1360
        %1362 = vadd.xlane.f32.xlu0 %v1361
        %v1363 = vpop.xlane.xlu0 %1362
        %v1364 = vsel %vm803, %v1355, 0.0
        %v1365 = vsel %vm803, %v1357, 0.0
        %v1366 = vadd.f32 %v1364, %v1365
        %1367 = vadd.xlane.f32.xlu0 %v1366
        %v1368 = vpop.xlane.xlu0 %1367
        %v1369 = vmul.f32 %v1363, %v1363
        %v1370 = vsub.f32 %v1368, %v1369
        %v1371 = vmax.f32 %v1370, 0.0
        %v1372 = vadd.f32 %v1371, 1e-05
        %v1373 = vrsqrt.pop %v1372
        %v1375 = vsel %vm803, %v1363, 0
        %1377 = vmatprep.subr.mxu0 0.0
        %1378 = vmatpush1.msra.mxu0 %v1375
        %1379 = vmatprep.subr.mxu0 0.0
        %1380 = vmatpush1.msra.mxu0 0.0
        %1381 = vmatprep.subr.mxu0 0.0
        %1382 = vmatpush1.msra.mxu0 0.0
        %1383 = vmatprep.subr.mxu0 0.0
        %1384 = vmatpush1.msra.mxu0 0.0
        %1385 = vmatprep.subr.mxu0 0.0
        %1386 = vmatpush1.msra.mxu0 0.0
        %1387 = vmatprep.subr.mxu0 0.0
        %1388 = vmatpush1.msra.mxu0 0.0
        %1389 = vmatprep.subr.mxu0 0.0
        %1390 = vmatpush1.msra.mxu0 0.0
        %1391 = vmatprep.subr.mxu0 0.0
        %1392 = vmatpush1.msra.mxu0 0.0
        %1393 = vmatprep.subr.mxu0 0.0
        %1394 = vmatpush1.msra.mxu0 0.0
        %1395 = vmatprep.subr.mxu0 0.0
        %1396 = vmatpush1.msra.mxu0 0.0
        %1397 = vmatprep.subr.mxu0 0.0
        %1398 = vmatpush1.msra.mxu0 0.0
        %1399 = vmatprep.subr.mxu0 0.0
        %1400 = vmatpush1.msra.mxu0 0.0
        %1401 = vmatprep.subr.mxu0 0.0
        %1402 = vmatpush1.msra.mxu0 0.0
        %1403 = vmatprep.subr.mxu0 0.0
        %1404 = vmatpush1.msra.mxu0 0.0
        %1405 = vmatprep.subr.mxu0 0.0
        %1406 = vmatpush1.msra.mxu0 0.0
        %1407 = vmatprep.subr.mxu0 0.0
        %1408 = vmatpush1.msra.mxu0 0.0
        %1409 = vmatprep.subr.mxu0 0.0
        %1410 = vmatpush1.msra.mxu0 0.0
        %1411 = vmatprep.subr.mxu0 0.0
        %1412 = vmatpush1.msra.mxu0 0.0
        %1413 = vmatprep.subr.mxu0 0.0
        %1414 = vmatpush1.msra.mxu0 0.0
        %1415 = vmatprep.subr.mxu0 0.0
        %1416 = vmatpush1.msra.mxu0 0.0
        %1417 = vmatprep.subr.mxu0 0.0
        %1418 = vmatpush1.msra.mxu0 0.0
        %1419 = vmatprep.subr.mxu0 0.0
        %1420 = vmatpush1.msra.mxu0 0.0
        %1421 = vmatprep.subr.mxu0 0.0
        %1422 = vmatpush1.msra.mxu0 0.0
        %1423 = vmatprep.subr.mxu0 0.0
        %1424 = vmatpush1.msra.mxu0 0.0
        %1425 = vmatprep.subr.mxu0 0.0
        %1426 = vmatpush1.msra.mxu0 0.0
        %1427 = vmatprep.subr.mxu0 0.0
        %1428 = vmatpush1.msra.mxu0 0.0
        %1429 = vmatprep.subr.mxu0 0.0
        %1430 = vmatpush1.msra.mxu0 0.0
        %1431 = vmatprep.subr.mxu0 0.0
        %1432 = vmatpush1.msra.mxu0 0.0
        %1433 = vmatprep.subr.mxu0 0.0
        %1434 = vmatpush1.msra.mxu0 0.0
        %1435 = vmatprep.subr.mxu0 0.0
        %1436 = vmatpush1.msra.mxu0 0.0
        %1437 = vmatprep.subr.mxu0 0.0
        %1438 = vmatpush1.msra.mxu0 0.0
        %1439 = vmatprep.subr.mxu0 0.0
        %1440 = vmatpush1.msra.mxu0 0.0
        %1441 = vmatprep.mubr.f32.mxu0 0.0
        %1442 = vmatmul.mubr.f32.gmra.mrb[0].mxu0 %v821
        %v1443 = vpop.f32.mrb[0].mxu0
        %v1444 = vadd.f32 0.0, %v1443
        %v1445 = vpop.f32.mrb[0].mxu0
        %1446 = vdwg.mxu0
        %v1448 = vsel %vm803, %v1373, 0
        %1450 = vmatprep.subr.mxu0 0.0
        %1451 = vmatpush1.msra.mxu0 %v1448
        %1452 = vmatprep.subr.mxu0 0.0
        %1453 = vmatpush1.msra.mxu0 0.0
        %1454 = vmatprep.subr.mxu0 0.0
        %1455 = vmatpush1.msra.mxu0 0.0
        %1456 = vmatprep.subr.mxu0 0.0
        %1457 = vmatpush1.msra.mxu0 0.0
        %1458 = vmatprep.subr.mxu0 0.0
        %1459 = vmatpush1.msra.mxu0 0.0
        %1460 = vmatprep.subr.mxu0 0.0
        %1461 = vmatpush1.msra.mxu0 0.0
        %1462 = vmatprep.subr.mxu0 0.0
        %1463 = vmatpush1.msra.mxu0 0.0
        %1464 = vmatprep.subr.mxu0 0.0
        %1465 = vmatpush1.msra.mxu0 0.0
        %1466 = vmatprep.subr.mxu0 0.0
        %1467 = vmatpush1.msra.mxu0 0.0
        %1468 = vmatprep.subr.mxu0 0.0
        %1469 = vmatpush1.msra.mxu0 0.0
        %1470 = vmatprep.subr.mxu0 0.0
        %1471 = vmatpush1.msra.mxu0 0.0
        %1472 = vmatprep.subr.mxu0 0.0
        %1473 = vmatpush1.msra.mxu0 0.0
        %1474 = vmatprep.subr.mxu0 0.0
        %1475 = vmatpush1.msra.mxu0 0.0
        %1476 = vmatprep.subr.mxu0 0.0
        %1477 = vmatpush1.msra.mxu0 0.0
        %1478 = vmatprep.subr.mxu0 0.0
        %1479 = vmatpush1.msra.mxu0 0.0
        %1480 = vmatprep.subr.mxu0 0.0
        %1481 = vmatpush1.msra.mxu0 0.0
        %1482 = vmatprep.subr.mxu0 0.0
        %1483 = vmatpush1.msra.mxu0 0.0
        %1484 = vmatprep.subr.mxu0 0.0
        %1485 = vmatpush1.msra.mxu0 0.0
        %1486 = vmatprep.subr.mxu0 0.0
        %1487 = vmatpush1.msra.mxu0 0.0
        %1488 = vmatprep.subr.mxu0 0.0
        %1489 = vmatpush1.msra.mxu0 0.0
        %1490 = vmatprep.subr.mxu0 0.0
        %1491 = vmatpush1.msra.mxu0 0.0
        %1492 = vmatprep.subr.mxu0 0.0
        %1493 = vmatpush1.msra.mxu0 0.0
        %1494 = vmatprep.subr.mxu0 0.0
        %1495 = vmatpush1.msra.mxu0 0.0
        %1496 = vmatprep.subr.mxu0 0.0
        %1497 = vmatpush1.msra.mxu0 0.0
        %1498 = vmatprep.subr.mxu0 0.0
        %1499 = vmatpush1.msra.mxu0 0.0
        %1500 = vmatprep.subr.mxu0 0.0
        %1501 = vmatpush1.msra.mxu0 0.0
        %1502 = vmatprep.subr.mxu0 0.0
        %1503 = vmatpush1.msra.mxu0 0.0
        %1504 = vmatprep.subr.mxu0 0.0
        %1505 = vmatpush1.msra.mxu0 0.0
        %1506 = vmatprep.subr.mxu0 0.0
        %1507 = vmatpush1.msra.mxu0 0.0
        %1508 = vmatprep.subr.mxu0 0.0
        %1509 = vmatpush1.msra.mxu0 0.0
        %1510 = vmatprep.subr.mxu0 0.0
        %1511 = vmatpush1.msra.mxu0 0.0
        %1512 = vmatprep.subr.mxu0 0.0
        %1513 = vmatpush1.msra.mxu0 0.0
        %1514 = vmatprep.mubr.f32.mxu0 0.0
        %1515 = vmatmul.mubr.f32.gmra.mrb[0].mxu0 %v821
        %v1516 = vpop.f32.mrb[0].mxu0
        %v1517 = vadd.f32 0.0, %v1516
        %v1518 = vpop.f32.mrb[0].mxu0
        %1519 = vdwg.mxu0
        %1520 = vrot.lane.b32.xlu0 %v351, 117
        %v1521 = vpop.permute.xlu0 %1520
        %v1523 = vmul.f32 %v1517, %v1521
        %v1524 = vmul.f32 %v1444, %v1523
        %1526 = vrot.lane.b32.xlu0 %v1524, 12
        %v1527 = vpop.permute.xlu0 %1526
        %v1529 = vsub.f32 %v351, %v1527
        %1531 = vset.pattern.permute.xlu0 0
        %1532 = vperm.xlu0 %1531, %v1523
        %v1533 = vpop.permute.xlu0 %1532
        %v1535 = vmul.f32 %v1213, %v1533
        %v1536 = vmul.f32 %v1214, %v1533
        %1538 = vset.pattern.permute.xlu0 12
        %1539 = vperm.xlu0 %1538, %v1529
        %v1540 = vpop.permute.xlu0 %1539
        %v1542 = vadd.f32 %v1535, %v1540
        %v1543 = vadd.f32 %v1536, %v1540
        %v1544 = vmax.f32 %v1542, 0.0
        %v1545 = vmax.f32 %v1543, 0.0
        %1546 = vst [vmem:[%s336] sm:$0xff] %v1544
        %1547 = vst [vmem:[%s336 + $0x8] sm:$0xff] %v1545
        %s1548 = sand.u32 %s205, 1
        %s1549 = scalar_lea.sflag [#allocation4], %s1548
        %s1550 = sand.u32 %s205, 1
        %s1551 = smul.addr %s1550, 16
        %s1552 = scalar_lea.vmem [#allocation8], %s1551
        // Predicated region
        $region65: #{tpu_custom_call.1} parent=51 // pred_check
          %p1553 = pneg %p215
        $region66: #{tpu_custom_call.1} parent=51 // pred_check_branch
          %1555 = sbr.rel (%p1553) target = $region68
        $region67: #{tpu_custom_call.1} parent=51 // pred_region
          %s1557 = ssub.s32 256, 256
          %1558 = vsyncadd %s1549, %s1557
          %s1559 = smul.addr %s24, 2
          %s1560 = smul.addr %s1559, 128
          %s1561 = scalar_lea.hbm %s8, %s1560
          %s1563 = sshll.u32 %s1552, 4
          %s1564 = int_to_ptr.vmem [resolvable:$true] %s1563
          %1566 = dma.vmem_to_hbm [thread:$0]  %s1564, 256, %s1561, %s1549
        $region68: #{tpu_custom_call.1} parent=51 // pred_fallthru
          _
      $region52: #{tpu_custom_call.1} parent=5 // pred_fallthru
        _
      %p1567 = scmp.le.s32.totalorder 2, %s19
      // Predicated region
      $region69: #{tpu_custom_call.1} parent=5 // pred_check
        %p1568 = pneg %p1567
      $region70: #{tpu_custom_call.1} parent=5 // pred_check_branch
        %1570 = sbr.rel (%p1568) target = $region72
      $region71: #{tpu_custom_call.1} parent=5 // pred_region
        %s1571 = ssub.s32 %s19, 2
        // Predicated region
        $region73: #{tpu_custom_call.1} parent=71 // pred_check
          %p1572 = pneg %p221
        $region74: #{tpu_custom_call.1} parent=71 // pred_check_branch
          %1574 = sbr.rel (%p1572) target = $region76
        $region75: #{tpu_custom_call.1} parent=71 // pred_region
          %s1575 = sand.u32 %s206, 1
          %s1576 = scalar_lea.sflag [#allocation4], %s1575
          %s1577 = sand.u32 %s206, 1
          %s1578 = smul.addr %s1577, 16
          %s1579 = scalar_lea.vmem [#allocation8], %s1578
          %1580 = dma.done %s1576, 256
        $region76: #{tpu_custom_call.1} parent=71 // pred_fallthru
          _
      $region72: #{tpu_custom_call.1} parent=5 // pred_fallthru
        _
    $region6: #{tpu_custom_call.1} parent=1 // loop_footer
      %s23 = sadd.s32 1, %s19
    $region7: #{tpu_custom_call.1} parent=1 // loop_footer_branch
      %18 = sbr.rel target = $region3
    $region8: #{tpu_custom_call.1} parent=1 // loop_exit
      _
    %1581 = vsyncpa [#allocation3], 1
    %s1582 = scalar_lea.sflag [#allocation3], 1
    %1583 = vsyncpa %s1582, 1
    %1584 = vsyncpa [#allocation6], 1
    %1585 = vsyncpa [#allocation4], 1
    %s1586 = scalar_lea.sflag [#allocation4], 1
    %1587 = vsyncpa %s1586, 1

// kernel: tpu_custom_call.1
$region0: #{tpu_custom_call.1}
  #allocation0 [shape = 'u32[]', space=smem, size = 0x4, offset = 0x4, fixed_abs, tag = 'smem constant byte address 0x4 - core index']
  #allocation1 [shape = 'u32[144,128]{1,0:T(1,128)}', space=vmem, size = 0x12000, scoped, tag = 'internal scratch']
  %s0 = inlined_call_operand.vmem [shape: f32[2,4,256], index: 0, kind: input, shape index: {}]
  %s1 = inlined_call_operand.vmem [shape: f32[8,4], index: 1, kind: input, shape index: {}]
  %s2 = inlined_call_operand.hbm [shape: f32[8,8], index: 2, kind: input, shape index: {}]
  %s3 = inlined_call_operand.hbm [shape: f32[8,13], index: 3, kind: input, shape index: {}]
  %s4 = inlined_call_operand.hbm [shape: f32[8,13], index: 4, kind: input, shape index: {}]
  %s5 = inlined_call_operand.vmem [shape: bf16[9,256], index: 5, kind: input, shape index: {}]
  %s6 = inlined_call_operand.vmem [shape: f32[2,8], index: 6, kind: input, shape index: {}]
  %s7 = inlined_call_operand.vmem [shape: f32[8,2], index: 7, kind: input, shape index: {}]
  %s8 = inlined_call_operand.hbm [shape: f32[2,8,256], index: 8, kind: output, shape index: {}]
  %s9 = sld [smem:[#allocation0]]
  $region77: #{tpu_custom_call.1} parent=0
    _
  %s11 = ssub.s32 1, %s9
  %s12 = scalar_select 0, %s11, %s9
  $region1: #{tpu_custom_call.1} parent=0
    #allocation2 [shape = 'u8[4096]{0}', space=vmem, size = 0x1000, scoped, tag = 'input window, operand 2, single buffered']
    #allocation3 [shape = 's32[2]{0}', space=sflag, size = 0x8, scoped, tag = 'scoped memory for tpu_custom_call.1']
    #allocation4 [shape = 's32[2]{0}', space=sflag, size = 0x8, scoped, tag = 'scoped memory for tpu_custom_call.1']
    #allocation5 [shape = 'u8[4096]{0}', space=vmem, size = 0x1000, scoped, tag = 'input window, operand 3, single buffered']
    #allocation6 [shape = 's32[1]{0}', space=sflag, size = 0x4, scoped, tag = 'scoped memory for tpu_custom_call.1']
    #allocation7 [shape = 'u8[4096]{0}', space=vmem, size = 0x1000, scoped, tag = 'input window, operand 4, single buffered']
    #allocation8 [shape = 'u8[16384]{0}', space=vmem, size = 0x4000, scoped, tag = 'output window, operand 0']
    %13 = vsyncpa [#allocation3], 0
    %14 = vsyncpa [#allocation6], 0
    %15 = vsyncpa [#allocation4], 0
    %s16 = scalar_lea.sflag [#allocation4], 1
    %17 = vsyncpa %s16, 0
    loop: start=0, step=1, limit=4
    $region2: #{tpu_custom_call.1} parent=1 // loop_pre_header
      _
    $region3: #{tpu_custom_call.1} parent=1 // loop_header
      %s19 = sphi 0, %s23
      %p20 = scmp.ge.s32.totalorder %s19, 4
      %s29 = sphi 0, %s31
      %s32 = sphi 0, %s29
      %s33 = sphi 0, %s32
      %s49 = sphi 0, %s33
      %s53 = sphi 0, %s53
      %s55 = sphi 0, %s53
      %s56 = sphi 0, %s55
      %s70 = sphi 0, %s56
      %s74 = sphi 0, %s74
      %s76 = sphi 0, %s74
      %s77 = sphi 0, %s76
      %s91 = sphi 0, %s77
      %s95 = sphi 0, %s95
      %s97 = sphi 0, %s95
      %s98 = sphi 0, %s97
      %s112 = sphi 0, %s98
      %s116 = sphi 0, %s116
      %s118 = sphi 0, %s116
      %s119 = sphi 0, %s118
      %s133 = sphi 0, %s119
      %s137 = sphi 0, %s137
      %s139 = sphi 0, %s137
      %s140 = sphi 0, %s139
      %s154 = sphi 0, %s140
      %s158 = sphi 0, %s158
      %s160 = sphi 0, %s158
      %s161 = sphi 0, %s160
      %s175 = sphi 0, %s161
      %s179 = sphi 0, %s179
      %s181 = sphi 0, %s179
      %s182 = sphi 0, %s181
      %s196 = sphi 0, %s182
      %s202 = sphi 0, %s204
      %s205 = sphi 0, %s202
      %s206 = sphi 0, %s205
      %s222 = sphi 0, %s206
    $region4: #{tpu_custom_call.1} parent=1 // loop_header_branch
      %22 = sbr.rel (%p20) target = $region8
    $region5: #{tpu_custom_call.1} parent=1 // loop_body
      %s24 = ssub.s32 %s19, 1
      %s25 = ssub.s32 %s19, 2
      %s26 = sadd.s32 %s19, 1
      %s27 = ssub.s32 %s19, %s26
      %p28 = scmp.eq.s32.totalorder %s27, 0
      %s30 = sadd.s32 %s29, 1
      %s31 = scalar_select %p28, %s29, %s30
      %p34 = pneg %p28
      %p35 = scmp.eq.s32.totalorder %s19, 1
      %p36 = por %p34, %p35
      %p37 = scmp.ne.s32.totalorder %s29, %s32
      %p38 = scmp.eq.s32.totalorder %s19, 0
      %p39 = por %p37, %p38
      %p40 = scmp.ne.s32.totalorder %s29, %s32
      %p41 = scmp.eq.s32.totalorder %s24, 1
      %p42 = por %p40, %p41
      %p43 = scmp.ne.s32.totalorder %s32, %s33
      %p44 = scmp.eq.s32.totalorder %s24, 0
      %p45 = por %p43, %p44
      %p46 = scmp.ne.s32.totalorder %s32, %s33
      %p47 = scmp.eq.s32.totalorder %s25, 1
      %p48 = por %p46, %p47
      %p50 = scmp.ne.s32.totalorder %s33, %s49
      %p51 = scmp.eq.s32.totalorder %s25, 0
      %p52 = por %p50, %p51
      %s54 = sadd.s32 %s53, 1
      %p57 = scmp.eq.s32.totalorder %s19, 1
      %p58 = scmp.ne.s32.totalorder %s53, %s55
      %p59 = scmp.eq.s32.totalorder %s19, 0
      %p60 = por %p58, %p59
      %p61 = scmp.ne.s32.totalorder %s53, %s55
      %p62 = scmp.eq.s32.totalorder %s24, 1
      %p63 = por %p61, %p62
      %p64 = scmp.ne.s32.totalorder %s55, %s56
      %p65 = scmp.eq.s32.totalorder %s24, 0
      %p66 = por %p64, %p65
      %p67 = scmp.ne.s32.totalorder %s55, %s56
      %p68 = scmp.eq.s32.totalorder %s25, 1
      %p69 = por %p67, %p68
      %p71 = scmp.ne.s32.totalorder %s56, %s70
      %p72 = scmp.eq.s32.totalorder %s25, 0
      %p73 = por %p71, %p72
      %s75 = sadd.s32 %s74, 1
      %p78 = scmp.eq.s32.totalorder %s19, 1
      %p79 = scmp.ne.s32.totalorder %s74, %s76
      %p80 = scmp.eq.s32.totalorder %s19, 0
      %p81 = por %p79, %p80
      %p82 = scmp.ne.s32.totalorder %s74, %s76
      %p83 = scmp.eq.s32.totalorder %s24, 1
      %p84 = por %p82, %p83
      %p85 = scmp.ne.s32.totalorder %s76, %s77
      %p86 = scmp.eq.s32.totalorder %s24, 0
      %p87 = por %p85, %p86
      %p88 = scmp.ne.s32.totalorder %s76, %s77
      %p89 = scmp.eq.s32.totalorder %s25, 1
      %p90 = por %p88, %p89
      %p92 = scmp.ne.s32.totalorder %s77, %s91
      %p93 = scmp.eq.s32.totalorder %s25, 0
      %p94 = por %p92, %p93
      %s96 = sadd.s32 %s95, 1
      %p99 = scmp.eq.s32.totalorder %s19, 1
      %p100 = scmp.ne.s32.totalorder %s95, %s97
      %p101 = scmp.eq.s32.totalorder %s19, 0
      %p102 = por %p100, %p101
      %p103 = scmp.ne.s32.totalorder %s95, %s97
      %p104 = scmp.eq.s32.totalorder %s24, 1
      %p105 = por %p103, %p104
      %p106 = scmp.ne.s32.totalorder %s97, %s98
      %p107 = scmp.eq.s32.totalorder %s24, 0
      %p108 = por %p106, %p107
      %p109 = scmp.ne.s32.totalorder %s97, %s98
      %p110 = scmp.eq.s32.totalorder %s25, 1
      %p111 = por %p109, %p110
      %p113 = scmp.ne.s32.totalorder %s98, %s112
      %p114 = scmp.eq.s32.totalorder %s25, 0
      %p115 = por %p113, %p114
      %s117 = sadd.s32 %s116, 1
      %p120 = scmp.eq.s32.totalorder %s19, 1
      %p121 = scmp.ne.s32.totalorder %s116, %s118
      %p122 = scmp.eq.s32.totalorder %s19, 0
      %p123 = por %p121, %p122
      %p124 = scmp.ne.s32.totalorder %s116, %s118
      %p125 = scmp.eq.s32.totalorder %s24, 1
      %p126 = por %p124, %p125
      %p127 = scmp.ne.s32.totalorder %s118, %s119
      %p128 = scmp.eq.s32.totalorder %s24, 0
      %p129 = por %p127, %p128
      %p130 = scmp.ne.s32.totalorder %s118, %s119
      %p131 = scmp.eq.s32.totalorder %s25, 1
      %p132 = por %p130, %p131
      %p134 = scmp.ne.s32.totalorder %s119, %s133
      %p135 = scmp.eq.s32.totalorder %s25, 0
      %p136 = por %p134, %p135
      %s138 = sadd.s32 %s137, 1
      %p141 = scmp.eq.s32.totalorder %s19, 1
      %p142 = scmp.ne.s32.totalorder %s137, %s139
      %p143 = scmp.eq.s32.totalorder %s19, 0
      %p144 = por %p142, %p143
      %p145 = scmp.ne.s32.totalorder %s137, %s139
      %p146 = scmp.eq.s32.totalorder %s24, 1
      %p147 = por %p145, %p146
      %p148 = scmp.ne.s32.totalorder %s139, %s140
      %p149 = scmp.eq.s32.totalorder %s24, 0
      %p150 = por %p148, %p149
      %p151 = scmp.ne.s32.totalorder %s139, %s140
      %p152 = scmp.eq.s32.totalorder %s25, 1
      %p153 = por %p151, %p152
      %p155 = scmp.ne.s32.totalorder %s140, %s154
      %p156 = scmp.eq.s32.totalorder %s25, 0
      %p157 = por %p155, %p156
      %s159 = sadd.s32 %s158, 1
      %p162 = scmp.eq.s32.totalorder %s19, 1
      %p163 = scmp.ne.s32.totalorder %s158, %s160
      %p164 = scmp.eq.s32.totalorder %s19, 0
      %p165 = por %p163, %p164
      %p166 = scmp.ne.s32.totalorder %s158, %s160
      %p167 = scmp.eq.s32.totalorder %s24, 1
      %p168 = por %p166, %p167
      %p169 = scmp.ne.s32.totalorder %s160, %s161
      %p170 = scmp.eq.s32.totalorder %s24, 0
      %p171 = por %p169, %p170
      %p172 = scmp.ne.s32.totalorder %s160, %s161
      %p173 = scmp.eq.s32.totalorder %s25, 1
      %p174 = por %p172, %p173
      %p176 = scmp.ne.s32.totalorder %s161, %s175
      %p177 = scmp.eq.s32.totalorder %s25, 0
      %p178 = por %p176, %p177
      %s180 = sadd.s32 %s179, 1
      %p183 = scmp.eq.s32.totalorder %s19, 1
      %p184 = scmp.ne.s32.totalorder %s179, %s181
      %p185 = scmp.eq.s32.totalorder %s19, 0
      %p186 = por %p184, %p185
      %p187 = scmp.ne.s32.totalorder %s179, %s181
      %p188 = scmp.eq.s32.totalorder %s24, 1
      %p189 = por %p187, %p188
      %p190 = scmp.ne.s32.totalorder %s181, %s182
      %p191 = scmp.eq.s32.totalorder %s24, 0
      %p192 = por %p190, %p191
      %p193 = scmp.ne.s32.totalorder %s181, %s182
      %p194 = scmp.eq.s32.totalorder %s25, 1
      %p195 = por %p193, %p194
      %p197 = scmp.ne.s32.totalorder %s182, %s196
      %p198 = scmp.eq.s32.totalorder %s25, 0
      %p199 = por %p197, %p198
      %s200 = ssub.s32 %s19, %s26
      %p201 = scmp.eq.s32.totalorder %s200, 0
      %s203 = sadd.s32 %s202, 1
      %s204 = scalar_select %p201, %s202, %s203
      %p207 = pneg %p201
      %p208 = scmp.eq.s32.totalorder %s19, 1
      %p209 = por %p207, %p208
      %p210 = scmp.ne.s32.totalorder %s202, %s205
      %p211 = scmp.eq.s32.totalorder %s19, 0
      %p212 = por %p210, %p211
      %p213 = scmp.ne.s32.totalorder %s202, %s205
      %p214 = scmp.eq.s32.totalorder %s24, 1
      %p215 = por %p213, %p214
      %p216 = scmp.ne.s32.totalorder %s205, %s206
      %p217 = scmp.eq.s32.totalorder %s24, 0
      %p218 = por %p216, %p217
      %p219 = scmp.ne.s32.totalorder %s205, %s206
      %p220 = scmp.eq.s32.totalorder %s25, 1
      %p221 = por %p219, %p220
      %p223 = scmp.ne.s32.totalorder %s206, %s222
      %p224 = scmp.eq.s32.totalorder %s25, 0
      %p225 = por %p223, %p224
      %p226 = scmp.le.s32.totalorder 1, %s19
      %p227 = scmp.lt.s32.totalorder %s19, 3
      %p228 = pnand %p226, %p227
      %p229 = pneg %p228
      // Predicated region
      $region9: #{tpu_custom_call.1} parent=5 // pred_check
        _
      $region10: #{tpu_custom_call.1} parent=5 // pred_check_branch
        %231 = sbr.rel (%p228) target = $region12
      $region11: #{tpu_custom_call.1} parent=5 // pred_region
        %s232 = ssub.s32 %s19, 1
        // Predicated region
        $region13: #{tpu_custom_call.1} parent=11 // pred_check
          %p233 = pneg %p66
        $region14: #{tpu_custom_call.1} parent=11 // pred_check_branch
          %235 = sbr.rel (%p233) target = $region16
        $region15: #{tpu_custom_call.1} parent=11 // pred_region
          _
        $region16: #{tpu_custom_call.1} parent=11 // pred_fallthru
          _
        // Predicated region
        $region17: #{tpu_custom_call.1} parent=11 // pred_check
          %p236 = pneg %p87
        $region18: #{tpu_custom_call.1} parent=11 // pred_check_branch
          %238 = sbr.rel (%p236) target = $region20
        $region19: #{tpu_custom_call.1} parent=11 // pred_region
          %s240 = ssub.s32 128, 128
          %241 = vsyncadd [#allocation3], %s240
          %s243 = sshll.u32 [#allocation2], 4
          %s244 = int_to_ptr.vmem [resolvable:$true] %s243
          %246 = dma.hbm_to_vmem [thread:$0]  %s2, 128, %s244, [#allocation3]
        $region20: #{tpu_custom_call.1} parent=11 // pred_fallthru
          _
        // Predicated region
        $region21: #{tpu_custom_call.1} parent=11 // pred_check
          %p247 = pneg %p108
        $region22: #{tpu_custom_call.1} parent=11 // pred_check_branch
          %249 = sbr.rel (%p247) target = $region24
        $region23: #{tpu_custom_call.1} parent=11 // pred_region
          %s251 = ssub.s32 128, 128
          %252 = vsyncadd [#allocation6], %s251
          %s254 = sshll.u32 [#allocation5], 4
          %s255 = int_to_ptr.vmem [resolvable:$true] %s254
          %257 = dma.hbm_to_vmem [thread:$0]  %s3, 128, %s255, [#allocation6]
        $region24: #{tpu_custom_call.1} parent=11 // pred_fallthru
          _
        // Predicated region
        $region25: #{tpu_custom_call.1} parent=11 // pred_check
          %p258 = pneg %p129
        $region26: #{tpu_custom_call.1} parent=11 // pred_check_branch
          %260 = sbr.rel (%p258) target = $region28
        $region27: #{tpu_custom_call.1} parent=11 // pred_region
          %s262 = ssub.s32 128, 128
          %263 = vsyncadd [#allocation6], %s262
          %s265 = sshll.u32 [#allocation7], 4
          %s266 = int_to_ptr.vmem [resolvable:$true] %s265
          %268 = dma.hbm_to_vmem [thread:$0]  %s4, 128, %s266, [#allocation6]
        $region28: #{tpu_custom_call.1} parent=11 // pred_fallthru
          _
        // Predicated region
        $region29: #{tpu_custom_call.1} parent=11 // pred_check
          %p269 = pneg %p150
        $region30: #{tpu_custom_call.1} parent=11 // pred_check_branch
          %271 = sbr.rel (%p269) target = $region32
        $region31: #{tpu_custom_call.1} parent=11 // pred_region
          _
        $region32: #{tpu_custom_call.1} parent=11 // pred_fallthru
          _
        // Predicated region
        $region33: #{tpu_custom_call.1} parent=11 // pred_check
          %p272 = pneg %p171
        $region34: #{tpu_custom_call.1} parent=11 // pred_check_branch
          %274 = sbr.rel (%p272) target = $region36
        $region35: #{tpu_custom_call.1} parent=11 // pred_region
          _
        $region36: #{tpu_custom_call.1} parent=11 // pred_fallthru
          _
        // Predicated region
        $region37: #{tpu_custom_call.1} parent=11 // pred_check
          %p275 = pneg %p192
        $region38: #{tpu_custom_call.1} parent=11 // pred_check_branch
          %277 = sbr.rel (%p275) target = $region40
        $region39: #{tpu_custom_call.1} parent=11 // pred_region
          _
        $region40: #{tpu_custom_call.1} parent=11 // pred_fallthru
          _
      $region12: #{tpu_custom_call.1} parent=5 // pred_fallthru
        _
      %p278 = scmp.lt.s32.totalorder %s19, 2
      // Predicated region
      $region41: #{tpu_custom_call.1} parent=5 // pred_check
        %p279 = pneg %p278
      $region42: #{tpu_custom_call.1} parent=5 // pred_check_branch
        %281 = sbr.rel (%p279) target = $region44
      $region43: #{tpu_custom_call.1} parent=5 // pred_region
        // Predicated region
        $region45: #{tpu_custom_call.1} parent=43 // pred_check
          %p282 = pneg %p39
        $region46: #{tpu_custom_call.1} parent=43 // pred_check_branch
          %284 = sbr.rel (%p282) target = $region48
        $region47: #{tpu_custom_call.1} parent=43 // pred_region
          %p285 = scmp.lt.s32.totalorder %s19, 1
          %s286 = scalar_select %p285, %s19, 1
          %s287 = smul.addr %s286, 2
          %s288 = smul.addr %s287, 4
          %s289 = scalar_lea.vmem %s0, %s288
        $region48: #{tpu_custom_call.1} parent=43 // pred_fallthru
          _
      $region44: #{tpu_custom_call.1} parent=5 // pred_fallthru
        _
      %p290 = scmp.le.s32.totalorder 1, %s19
      %p291 = scmp.lt.s32.totalorder %s19, 3
      %p292 = pnand %p290, %p291
      %p293 = pneg %p292
      // Predicated region
      $region49: #{tpu_custom_call.1} parent=5 // pred_check
        _
      $region50: #{tpu_custom_call.1} parent=5 // pred_check_branch
        %295 = sbr.rel (%p292) target = $region52
      $region51: #{tpu_custom_call.1} parent=5 // pred_region
        %s296 = ssub.s32 %s19, 1
        // Predicated region
        $region53: #{tpu_custom_call.1} parent=51 // pred_check
          %p297 = pneg %p87
        $region54: #{tpu_custom_call.1} parent=51 // pred_check_branch
          %299 = sbr.rel (%p297) target = $region56
        $region55: #{tpu_custom_call.1} parent=51 // pred_region
          %300 = dma.done [#allocation3], 128
        $region56: #{tpu_custom_call.1} parent=51 // pred_fallthru
          _
        // Predicated region
        $region57: #{tpu_custom_call.1} parent=51 // pred_check
          %p301 = pneg %p108
        $region58: #{tpu_custom_call.1} parent=51 // pred_check_branch
          %303 = sbr.rel (%p301) target = $region60
        $region59: #{tpu_custom_call.1} parent=51 // pred_region
          %304 = dma.done [#allocation6], 128
        $region60: #{tpu_custom_call.1} parent=51 // pred_fallthru
          _
        // Predicated region
        $region61: #{tpu_custom_call.1} parent=51 // pred_check
          %p305 = pneg %p129
        $region62: #{tpu_custom_call.1} parent=51 // pred_check_branch
          %307 = sbr.rel (%p305) target = $region64
        $region63: #{tpu_custom_call.1} parent=51 // pred_region
          %308 = dma.done [#allocation6], 128
        $region64: #{tpu_custom_call.1} parent=51 // pred_fallthru
          _
        %p309 = scmp.lt.s32.totalorder %s24, 1
        %s310 = scalar_select %p309, %s24, 1
        %s311 = smul.addr %s310, 2
        %s312 = smul.addr %s311, 4
        %s313 = scalar_lea.vmem %s0, %s312
        %p314 = pneg %p45
        %p315 = pneg %p42
        %p316 = pneg %p66
        %p317 = pneg %p63
        %p318 = pneg %p87
        %p319 = pneg %p84
        %p320 = pneg %p108
        %p321 = pneg %p105
        %p322 = pneg %p129
        %p323 = pneg %p126
        %p324 = pneg %p150
        %p325 = pneg %p147
        %p326 = pneg %p171
        %p327 = pneg %p168
        %p328 = pneg %p192
        %p329 = pneg %p189
        %p330 = pneg %p218
        %p331 = pneg %p215
        %s332 = sand.u32 %s205, 1
        %s333 = scalar_lea.sflag [#allocation4], %s332
        %s334 = sand.u32 %s205, 1
        %s335 = smul.addr %s334, 16
        %s336 = scalar_lea.vmem [#allocation8], %s335
        %p337 = scmp.lt.s32.totalorder %s24, 1
        %s338 = scalar_select %p337, %s24, 1
        %s339 = smul.addr %s338, 2
        %s340 = smul.addr %s339, 4
        %s341 = scalar_lea.vmem %s0, %s340
        %v342 = vld [vmem:[%s5] sm:$0xff]
        %v343 = vld [vmem:[%s5 + $0x8] sm:$0x11]
        %v344 = vunpack.c.l.bf16 %v342
        %v345 = vunpack.c.h.bf16 %v342
        %v346 = vunpack.c.l.bf16 %v343
        %v347 = vunpack.c.h.bf16 %v343
        %v348 = vld [vmem:[%s6] sm:$0x3]
        %v349 = vld [vmem:[%s7] sm:$0xff]
        %v350 = vld [vmem:[#allocation5] sm:$0xff]
        %v351 = vld [vmem:[#allocation7] sm:$0xff]
        %v352 = vld [vmem:[%s341] sm:$0xff]
        %v353 = vld [vmem:[%s1] sm:$0xff]
        %355 = vset.pattern.permute.xlu0 9
        %356 = vperm.xlu0 %355, %v350
        %v357 = vpop.permute.xlu0 %356
        %v360 = vcombine.high %v352, %v352
        %vm361 = vcmask 31744
        %v363 = vsel %vm361, %v353, 0
        %vm365 = vcmask 1043456
        %v366 = vsel %vm365, %v352, 0
        %v368 = vsel %vm365, %v360, 0
        %370 = vmatprep.subr.mxu0 %v368
        %371 = vmatpush1.msra.mxu0 %v366
        %372 = vmatprep.subr.mxu0 0.0
        %373 = vmatpush1.msra.mxu0 0.0
        %374 = vmatprep.subr.mxu0 0.0
        %375 = vmatpush1.msra.mxu0 0.0
        %376 = vmatprep.subr.mxu0 0.0
        %377 = vmatpush1.msra.mxu0 0.0
        %378 = vmatprep.subr.mxu0 0.0
        %379 = vmatpush1.msra.mxu0 0.0
        %380 = vmatprep.subr.mxu0 0.0
        %381 = vmatpush1.msra.mxu0 0.0
        %382 = vmatprep.subr.mxu0 0.0
        %383 = vmatpush1.msra.mxu0 0.0
        %384 = vmatprep.subr.mxu0 0.0
        %385 = vmatpush1.msra.mxu0 0.0
        %386 = vmatprep.subr.mxu0 0.0
        %387 = vmatpush1.msra.mxu0 0.0
        %388 = vmatprep.subr.mxu0 0.0
        %389 = vmatpush1.msra.mxu0 0.0
        %390 = vmatprep.subr.mxu0 0.0
        %391 = vmatpush1.msra.mxu0 0.0
        %392 = vmatprep.subr.mxu0 0.0
        %393 = vmatpush1.msra.mxu0 0.0
        %394 = vmatprep.subr.mxu0 0.0
        %395 = vmatpush1.msra.mxu0 0.0
        %396 = vmatprep.subr.mxu0 0.0
        %397 = vmatpush1.msra.mxu0 0.0
        %398 = vmatprep.subr.mxu0 0.0
        %399 = vmatpush1.msra.mxu0 0.0
        %400 = vmatprep.subr.mxu0 0.0
        %401 = vmatpush1.msra.mxu0 0.0
        %402 = vmatprep.subr.mxu0 0.0
        %403 = vmatpush1.msra.mxu0 0.0
        %404 = vmatprep.subr.mxu0 0.0
        %405 = vmatpush1.msra.mxu0 0.0
        %406 = vmatprep.subr.mxu0 0.0
        %407 = vmatpush1.msra.mxu0 0.0
        %408 = vmatprep.subr.mxu0 0.0
        %409 = vmatpush1.msra.mxu0 0.0
        %410 = vmatprep.subr.mxu0 0.0
        %411 = vmatpush1.msra.mxu0 0.0
        %412 = vmatprep.subr.mxu0 0.0
        %413 = vmatpush1.msra.mxu0 0.0
        %414 = vmatprep.subr.mxu0 0.0
        %415 = vmatpush1.msra.mxu0 0.0
        %416 = vmatprep.subr.mxu0 0.0
        %417 = vmatpush1.msra.mxu0 0.0
        %418 = vmatprep.subr.mxu0 0.0
        %419 = vmatpush1.msra.mxu0 0.0
        %420 = vmatprep.subr.mxu0 0.0
        %421 = vmatpush1.msra.mxu0 0.0
        %422 = vmatprep.subr.mxu0 0.0
        %423 = vmatpush1.msra.mxu0 0.0
        %424 = vmatprep.subr.mxu0 0.0
        %425 = vmatpush1.msra.mxu0 0.0
        %426 = vmatprep.subr.mxu0 0.0
        %427 = vmatpush1.msra.mxu0 0.0
        %428 = vmatprep.subr.mxu0 0.0
        %429 = vmatpush1.msra.mxu0 0.0
        %430 = vmatprep.subr.mxu0 0.0
        %431 = vmatpush1.msra.mxu0 0.0
        %432 = vmatprep.subr.mxu0 0.0
        %433 = vmatpush1.msra.mxu0 0.0
        %434 = vmatprep.mubr.f32.mxu0 0.0
        %435 = vmatmul.mubr.f32.gmra.mrb[0].mxu0 %v363
        %v436 = vpop.f32.mrb[0].mxu0
        %v437 = vadd.f32 %v357, %v436
        %v438 = vpop.f32.mrb[0].mxu0
        %v439 = vadd.f32 %v357, %v438
        %440 = vdwg.mxu0
        %441 = vset.pattern.permute.xlu0 4
        %442 = vperm.xlu0 %441, %v350
        %v443 = vpop.permute.xlu0 %442
        %v445 = vmul.f32 %v443, %v437
        %v446 = vmul.f32 %v443, %v439
        %447 = vset.pattern.permute.xlu0 10
        %448 = vperm.xlu0 %447, %v350
        %v449 = vpop.permute.xlu0 %448
        %v451 = vadd.f32 %v445, %v449
        %v452 = vadd.f32 %v446, %v449
        %453 = vrot.lane.b32.xlu0 %v437, 17
        %v454 = vpop.permute.xlu0 %453
        %455 = vrot.lane.b32.xlu0 %v439, 17
        %v456 = vpop.permute.xlu0 %455
        %v457 = vlaneseq
        %v458 = vand.u32 %v457, 127
        %vm459 = vcmp.lt.s32.totalorder %v458, 17
        %v460 = vsel %vm459, %v454, %v456
        %v461 = vsel %vm459, %v456, %v454
        %v462 = vlaneseq
        %v463 = vshrl.u32 %v462, 7
        %v464 = vsub.s32 0, %v463
        %v465 = vrot.slane %v344, %v464
        %v466 = vlaneseq
        %v467 = vshrl.u32 %v466, 7
        %v468 = vsub.s32 0, %v467
        %v469 = vrot.slane %v345, %v468
        %v470 = vmul.f32 %v461, %v465
        %v471 = vmul.f32 %v460, %v469
        %472 = vset.pattern.permute.xlu0 0
        %473 = vperm.xlu0 %472, %v350
        %v474 = vpop.permute.xlu0 %473
        %v476 = vmul.f32 %v474, %v470
        %v477 = vmul.f32 %v474, %v471
        %v478 = vadd.f32 %v451, %v476
        %v479 = vadd.f32 %v452, %v477
        %480 = vrot.lane.b32.xlu0 %v437, 16
        %v481 = vpop.permute.xlu0 %480
        %482 = vrot.lane.b32.xlu0 %v439, 16
        %v483 = vpop.permute.xlu0 %482
        %vm484 = vcmp.lt.s32.totalorder %v458, 16
        %v485 = vsel %vm484, %v481, %v483
        %v486 = vsel %vm484, %v483, %v481
        %v487 = vlaneseq
        %v488 = vshrl.u32 %v487, 7
        %v489 = vsub.s32 1, %v488
        %v490 = vrot.slane %v344, %v489
        %v491 = vlaneseq
        %v492 = vshrl.u32 %v491, 7
        %v493 = vsub.s32 1, %v492
        %v494 = vrot.slane %v345, %v493
        %v495 = vmul.f32 %v486, %v490
        %v496 = vmul.f32 %v485, %v494
        %497 = vset.pattern.permute.xlu0 1
        %498 = vperm.xlu0 %497, %v350
        %v499 = vpop.permute.xlu0 %498
        %v501 = vmul.f32 %v499, %v495
        %v502 = vmul.f32 %v499, %v496
        %v503 = vadd.f32 %v478, %v501
        %v504 = vadd.f32 %v479, %v502
        %505 = vrot.lane.b32.xlu0 %v437, 15
        %v506 = vpop.permute.xlu0 %505
        %507 = vrot.lane.b32.xlu0 %v439, 15
        %v508 = vpop.permute.xlu0 %507
        %vm509 = vcmp.lt.s32.totalorder %v458, 15
        %v510 = vsel %vm509, %v506, %v508
        %v511 = vsel %vm509, %v508, %v506
        %v512 = vlaneseq
        %v513 = vshrl.u32 %v512, 7
        %v514 = vsub.s32 2, %v513
        %v515 = vrot.slane %v344, %v514
        %v516 = vlaneseq
        %v517 = vshrl.u32 %v516, 7
        %v518 = vsub.s32 2, %v517
        %v519 = vrot.slane %v345, %v518
        %v520 = vmul.f32 %v511, %v515
        %v521 = vmul.f32 %v510, %v519
        %522 = vset.pattern.permute.xlu0 2
        %523 = vperm.xlu0 %522, %v350
        %v524 = vpop.permute.xlu0 %523
        %v526 = vmul.f32 %v524, %v520
        %v527 = vmul.f32 %v524, %v521
        %v528 = vadd.f32 %v503, %v526
        %v529 = vadd.f32 %v504, %v527
        %530 = vrot.lane.b32.xlu0 %v437, 1
        %v531 = vpop.permute.xlu0 %530
        %532 = vrot.lane.b32.xlu0 %v439, 1
        %v533 = vpop.permute.xlu0 %532
        %vm534 = vcmp.lt.s32.totalorder %v458, 1
        %v535 = vsel %vm534, %v531, %v533
        %v536 = vsel %vm534, %v533, %v531
        %v537 = vlaneseq
        %v538 = vshrl.u32 %v537, 7
        %v539 = vsub.s32 3, %v538
        %v540 = vrot.slane %v344, %v539
        %v541 = vlaneseq
        %v542 = vshrl.u32 %v541, 7
        %v543 = vsub.s32 3, %v542
        %v544 = vrot.slane %v345, %v543
        %v545 = vmul.f32 %v536, %v540
        %v546 = vmul.f32 %v535, %v544
        %547 = vset.pattern.permute.xlu0 3
        %548 = vperm.xlu0 %547, %v350
        %v549 = vpop.permute.xlu0 %548
        %v551 = vmul.f32 %v549, %v545
        %v552 = vmul.f32 %v549, %v546
        %v553 = vadd.f32 %v528, %v551
        %v554 = vadd.f32 %v529, %v552
        %555 = vrot.lane.b32.xlu0 %v437, 127
        %v556 = vpop.permute.xlu0 %555
        %557 = vrot.lane.b32.xlu0 %v439, 127
        %v558 = vpop.permute.xlu0 %557
        %vm559 = vcmp.lt.s32.totalorder %v458, 127
        %v560 = vsel %vm559, %v556, %v558
        %v561 = vsel %vm559, %v558, %v556
        %v562 = vlaneseq
        %v563 = vshrl.u32 %v562, 7
        %v564 = vsub.s32 5, %v563
        %v565 = vrot.slane %v344, %v564
        %v566 = vlaneseq
        %v567 = vshrl.u32 %v566, 7
        %v568 = vsub.s32 5, %v567
        %v569 = vrot.slane %v345, %v568
        %v570 = vmul.f32 %v560, %v565
        %v571 = vmul.f32 %v561, %v569
        %572 = vset.pattern.permute.xlu0 5
        %573 = vperm.xlu0 %572, %v350
        %v574 = vpop.permute.xlu0 %573
        %v576 = vmul.f32 %v574, %v570
        %v577 = vmul.f32 %v574, %v571
        %v578 = vadd.f32 %v553, %v576
        %v579 = vadd.f32 %v554, %v577
        %580 = vrot.lane.b32.xlu0 %v437, 113
        %v581 = vpop.permute.xlu0 %580
        %582 = vrot.lane.b32.xlu0 %v439, 113
        %v583 = vpop.permute.xlu0 %582
        %vm584 = vcmp.lt.s32.totalorder %v458, 113
        %v585 = vsel %vm584, %v581, %v583
        %v586 = vsel %vm584, %v583, %v581
        %v587 = vlaneseq
        %v588 = vshrl.u32 %v587, 7
        %v589 = vsub.s32 6, %v588
        %v590 = vrot.slane %v344, %v589
        %v591 = vlaneseq
        %v592 = vshrl.u32 %v591, 7
        %v593 = vsub.s32 6, %v592
        %v594 = vrot.slane %v345, %v593
        %v595 = vmul.f32 %v585, %v590
        %v596 = vmul.f32 %v586, %v594
        %597 = vset.pattern.permute.xlu0 6
        %598 = vperm.xlu0 %597, %v350
        %v599 = vpop.permute.xlu0 %598
        %v601 = vmul.f32 %v599, %v595
        %v602 = vmul.f32 %v599, %v596
        %v603 = vadd.f32 %v578, %v601
        %v604 = vadd.f32 %v579, %v602
        %605 = vrot.lane.b32.xlu0 %v437, 112
        %v606 = vpop.permute.xlu0 %605
        %607 = vrot.lane.b32.xlu0 %v439, 112
        %v608 = vpop.permute.xlu0 %607
        %vm609 = vcmp.lt.s32.totalorder %v458, 112
        %v610 = vsel %vm609, %v606, %v608
        %v611 = vsel %vm609, %v608, %v606
        %v612 = vlaneseq
        %v613 = vshrl.u32 %v612, 7
        %v614 = vsub.s32 7, %v613
        %v615 = vrot.slane %v344, %v614
        %v616 = vlaneseq
        %v617 = vshrl.u32 %v616, 7
        %v618 = vsub.s32 7, %v617
        %v619 = vrot.slane %v345, %v618
        %v620 = vmul.f32 %v610, %v615
        %v621 = vmul.f32 %v611, %v619
        %622 = vset.pattern.permute.xlu0 7
        %623 = vperm.xlu0 %622, %v350
        %v624 = vpop.permute.xlu0 %623
        %v626 = vmul.f32 %v624, %v620
        %v627 = vmul.f32 %v624, %v621
        %v628 = vadd.f32 %v603, %v626
        %v629 = vadd.f32 %v604, %v627
        %630 = vrot.lane.b32.xlu0 %v437, 111
        %v631 = vpop.permute.xlu0 %630
        %632 = vrot.lane.b32.xlu0 %v439, 111
        %v633 = vpop.permute.xlu0 %632
        %vm634 = vcmp.lt.s32.totalorder %v458, 111
        %v635 = vsel %vm634, %v631, %v633
        %v636 = vsel %vm634, %v633, %v631
        %v637 = vlaneseq
        %v638 = vshrl.u32 %v637, 7
        %v639 = vsub.s32 0, %v638
        %v640 = vrot.slane %v346, %v639
        %v641 = vlaneseq
        %v642 = vshrl.u32 %v641, 7
        %v643 = vsub.s32 0, %v642
        %v644 = vrot.slane %v347, %v643
        %v645 = vmul.f32 %v635, %v640
        %v646 = vmul.f32 %v636, %v644
        %647 = vset.pattern.permute.xlu0 8
        %648 = vperm.xlu0 %647, %v350
        %v649 = vpop.permute.xlu0 %648
        %v651 = vmul.f32 %v649, %v645
        %v652 = vmul.f32 %v649, %v646
        %v653 = vadd.f32 %v628, %v651
        %v654 = vadd.f32 %v629, %v652
        %vm655 = vcmask 64512
        %v657 = vsel %vm655, %v348, 0
        %659 = vmatprep.subr.mxu0 %v654
        %660 = vmatpush1.msra.mxu0 %v653
        %661 = vmatprep.subr.mxu0 0.0
        %662 = vmatpush1.msra.mxu0 0.0
        %663 = vmatprep.subr.mxu0 0.0
        %664 = vmatpush1.msra.mxu0 0.0
        %665 = vmatprep.subr.mxu0 0.0
        %666 = vmatpush1.msra.mxu0 0.0
        %667 = vmatprep.subr.mxu0 0.0
        %668 = vmatpush1.msra.mxu0 0.0
        %669 = vmatprep.subr.mxu0 0.0
        %670 = vmatpush1.msra.mxu0 0.0
        %671 = vmatprep.subr.mxu0 0.0
        %672 = vmatpush1.msra.mxu0 0.0
        %673 = vmatprep.subr.mxu0 0.0
        %674 = vmatpush1.msra.mxu0 0.0
        %675 = vmatprep.subr.mxu0 0.0
        %676 = vmatpush1.msra.mxu0 0.0
        %677 = vmatprep.subr.mxu0 0.0
        %678 = vmatpush1.msra.mxu0 0.0
        %679 = vmatprep.subr.mxu0 0.0
        %680 = vmatpush1.msra.mxu0 0.0
        %681 = vmatprep.subr.mxu0 0.0
        %682 = vmatpush1.msra.mxu0 0.0
        %683 = vmatprep.subr.mxu0 0.0
        %684 = vmatpush1.msra.mxu0 0.0
        %685 = vmatprep.subr.mxu0 0.0
        %686 = vmatpush1.msra.mxu0 0.0
        %687 = vmatprep.subr.mxu0 0.0
        %688 = vmatpush1.msra.mxu0 0.0
        %689 = vmatprep.subr.mxu0 0.0
        %690 = vmatpush1.msra.mxu0 0.0
        %691 = vmatprep.subr.mxu0 0.0
        %692 = vmatpush1.msra.mxu0 0.0
        %693 = vmatprep.subr.mxu0 0.0
        %694 = vmatpush1.msra.mxu0 0.0
        %695 = vmatprep.subr.mxu0 0.0
        %696 = vmatpush1.msra.mxu0 0.0
        %697 = vmatprep.subr.mxu0 0.0
        %698 = vmatpush1.msra.mxu0 0.0
        %699 = vmatprep.subr.mxu0 0.0
        %700 = vmatpush1.msra.mxu0 0.0
        %701 = vmatprep.subr.mxu0 0.0
        %702 = vmatpush1.msra.mxu0 0.0
        %703 = vmatprep.subr.mxu0 0.0
        %704 = vmatpush1.msra.mxu0 0.0
        %705 = vmatprep.subr.mxu0 0.0
        %706 = vmatpush1.msra.mxu0 0.0
        %707 = vmatprep.subr.mxu0 0.0
        %708 = vmatpush1.msra.mxu0 0.0
        %709 = vmatprep.subr.mxu0 0.0
        %710 = vmatpush1.msra.mxu0 0.0
        %711 = vmatprep.subr.mxu0 0.0
        %712 = vmatpush1.msra.mxu0 0.0
        %713 = vmatprep.subr.mxu0 0.0
        %714 = vmatpush1.msra.mxu0 0.0
        %715 = vmatprep.subr.mxu0 0.0
        %716 = vmatpush1.msra.mxu0 0.0
        %717 = vmatprep.subr.mxu0 0.0
        %718 = vmatpush1.msra.mxu0 0.0
        %719 = vmatprep.subr.mxu0 0.0
        %720 = vmatpush1.msra.mxu0 0.0
        %721 = vmatprep.subr.mxu0 0.0
        %722 = vmatpush1.msra.mxu0 0.0
        %723 = vmatprep.mubr.f32.mxu0 0.0
        %724 = vmatmul.mubr.f32.gmra.mrb[0].mxu0 %v657
        %v725 = vpop.f32.mrb[0].mxu0
        %v726 = vadd.f32 0.0, %v725
        %v727 = vpop.f32.mrb[0].mxu0
        %v728 = vadd.f32 0.0, %v727
        %729 = vdwg.mxu0
        %v730 = vmul.f32 %v653, %v653
        %v731 = vmul.f32 %v654, %v654
        %732 = vmatprep.subr.mxu0 %v731
        %733 = vmatpush1.msra.mxu0 %v730
        %734 = vmatprep.subr.mxu0 0.0
        %735 = vmatpush1.msra.mxu0 0.0
        %736 = vmatprep.subr.mxu0 0.0
        %737 = vmatpush1.msra.mxu0 0.0
        %738 = vmatprep.subr.mxu0 0.0
        %739 = vmatpush1.msra.mxu0 0.0
        %740 = vmatprep.subr.mxu0 0.0
        %741 = vmatpush1.msra.mxu0 0.0
        %742 = vmatprep.subr.mxu0 0.0
        %743 = vmatpush1.msra.mxu0 0.0
        %744 = vmatprep.subr.mxu0 0.0
        %745 = vmatpush1.msra.mxu0 0.0
        %746 = vmatprep.subr.mxu0 0.0
        %747 = vmatpush1.msra.mxu0 0.0
        %748 = vmatprep.subr.mxu0 0.0
        %749 = vmatpush1.msra.mxu0 0.0
        %750 = vmatprep.subr.mxu0 0.0
        %751 = vmatpush1.msra.mxu0 0.0
        %752 = vmatprep.subr.mxu0 0.0
        %753 = vmatpush1.msra.mxu0 0.0
        %754 = vmatprep.subr.mxu0 0.0
        %755 = vmatpush1.msra.mxu0 0.0
        %756 = vmatprep.subr.mxu0 0.0
        %757 = vmatpush1.msra.mxu0 0.0
        %758 = vmatprep.subr.mxu0 0.0
        %759 = vmatpush1.msra.mxu0 0.0
        %760 = vmatprep.subr.mxu0 0.0
        %761 = vmatpush1.msra.mxu0 0.0
        %762 = vmatprep.subr.mxu0 0.0
        %763 = vmatpush1.msra.mxu0 0.0
        %764 = vmatprep.subr.mxu0 0.0
        %765 = vmatpush1.msra.mxu0 0.0
        %766 = vmatprep.subr.mxu0 0.0
        %767 = vmatpush1.msra.mxu0 0.0
        %768 = vmatprep.subr.mxu0 0.0
        %769 = vmatpush1.msra.mxu0 0.0
        %770 = vmatprep.subr.mxu0 0.0
        %771 = vmatpush1.msra.mxu0 0.0
        %772 = vmatprep.subr.mxu0 0.0
        %773 = vmatpush1.msra.mxu0 0.0
        %774 = vmatprep.subr.mxu0 0.0
        %775 = vmatpush1.msra.mxu0 0.0
        %776 = vmatprep.subr.mxu0 0.0
        %777 = vmatpush1.msra.mxu0 0.0
        %778 = vmatprep.subr.mxu0 0.0
        %779 = vmatpush1.msra.mxu0 0.0
        %780 = vmatprep.subr.mxu0 0.0
        %781 = vmatpush1.msra.mxu0 0.0
        %782 = vmatprep.subr.mxu0 0.0
        %783 = vmatpush1.msra.mxu0 0.0
        %784 = vmatprep.subr.mxu0 0.0
        %785 = vmatpush1.msra.mxu0 0.0
        %786 = vmatprep.subr.mxu0 0.0
        %787 = vmatpush1.msra.mxu0 0.0
        %788 = vmatprep.subr.mxu0 0.0
        %789 = vmatpush1.msra.mxu0 0.0
        %790 = vmatprep.subr.mxu0 0.0
        %791 = vmatpush1.msra.mxu0 0.0
        %792 = vmatprep.subr.mxu0 0.0
        %793 = vmatpush1.msra.mxu0 0.0
        %794 = vmatprep.subr.mxu0 0.0
        %795 = vmatpush1.msra.mxu0 0.0
        %796 = vmatprep.mubr.f32.mxu0 0.0
        %797 = vmatmul.mubr.f32.gmra.mrb[0].mxu0 %v657
        %v798 = vpop.f32.mrb[0].mxu0
        %v799 = vadd.f32 0.0, %v798
        %v800 = vpop.f32.mrb[0].mxu0
        %v801 = vadd.f32 0.0, %v800
        %802 = vdwg.mxu0
        %vm803 = vcmask 1041408
        %v804 = vsel %vm803, %v726, 0.0
        %v805 = vsel %vm803, %v728, 0.0
        %v806 = vadd.f32 %v804, %v805
        %807 = vadd.xlane.f32.xlu0 %v806
        %v808 = vpop.xlane.xlu0 %807
        %v809 = vsel %vm803, %v799, 0.0
        %v810 = vsel %vm803, %v801, 0.0
        %v811 = vadd.f32 %v809, %v810
        %812 = vadd.xlane.f32.xlu0 %v811
        %v813 = vpop.xlane.xlu0 %812
        %v814 = vmul.f32 %v808, %v808
        %v815 = vsub.f32 %v813, %v814
        %v816 = vmax.f32 %v815, 0.0
        %v817 = vadd.f32 %v816, 1e-05
        %v818 = vrsqrt.pop %v817
        %vm819 = vcmask 15360
        %v821 = vsel %vm819, %v349, 0
        %v824 = vsel %vm803, %v808, 0
        %826 = vmatprep.subr.mxu0 0.0
        %827 = vmatpush1.msra.mxu0 %v824
        %828 = vmatprep.subr.mxu0 0.0
        %829 = vmatpush1.msra.mxu0 0.0
        %830 = vmatprep.subr.mxu0 0.0
        %831 = vmatpush1.msra.mxu0 0.0
        %832 = vmatprep.subr.mxu0 0.0
        %833 = vmatpush1.msra.mxu0 0.0
        %834 = vmatprep.subr.mxu0 0.0
        %835 = vmatpush1.msra.mxu0 0.0
        %836 = vmatprep.subr.mxu0 0.0
        %837 = vmatpush1.msra.mxu0 0.0
        %838 = vmatprep.subr.mxu0 0.0
        %839 = vmatpush1.msra.mxu0 0.0
        %840 = vmatprep.subr.mxu0 0.0
        %841 = vmatpush1.msra.mxu0 0.0
        %842 = vmatprep.subr.mxu0 0.0
        %843 = vmatpush1.msra.mxu0 0.0
        %844 = vmatprep.subr.mxu0 0.0
        %845 = vmatpush1.msra.mxu0 0.0
        %846 = vmatprep.subr.mxu0 0.0
        %847 = vmatpush1.msra.mxu0 0.0
        %848 = vmatprep.subr.mxu0 0.0
        %849 = vmatpush1.msra.mxu0 0.0
        %850 = vmatprep.subr.mxu0 0.0
        %851 = vmatpush1.msra.mxu0 0.0
        %852 = vmatprep.subr.mxu0 0.0
        %853 = vmatpush1.msra.mxu0 0.0
        %854 = vmatprep.subr.mxu0 0.0
        %855 = vmatpush1.msra.mxu0 0.0
        %856 = vmatprep.subr.mxu0 0.0
        %857 = vmatpush1.msra.mxu0 0.0
        %858 = vmatprep.subr.mxu0 0.0
        %859 = vmatpush1.msra.mxu0 0.0
        %860 = vmatprep.subr.mxu0 0.0
        %861 = vmatpush1.msra.mxu0 0.0
        %862 = vmatprep.subr.mxu0 0.0
        %863 = vmatpush1.msra.mxu0 0.0
        %864 = vmatprep.subr.mxu0 0.0
        %865 = vmatpush1.msra.mxu0 0.0
        %866 = vmatprep.subr.mxu0 0.0
        %867 = vmatpush1.msra.mxu0 0.0
        %868 = vmatprep.subr.mxu0 0.0
        %869 = vmatpush1.msra.mxu0 0.0
        %870 = vmatprep.subr.mxu0 0.0
        %871 = vmatpush1.msra.mxu0 0.0
        %872 = vmatprep.subr.mxu0 0.0
        %873 = vmatpush1.msra.mxu0 0.0
        %874 = vmatprep.subr.mxu0 0.0
        %875 = vmatpush1.msra.mxu0 0.0
        %876 = vmatprep.subr.mxu0 0.0
        %877 = vmatpush1.msra.mxu0 0.0
        %878 = vmatprep.subr.mxu0 0.0
        %879 = vmatpush1.msra.mxu0 0.0
        %880 = vmatprep.subr.mxu0 0.0
        %881 = vmatpush1.msra.mxu0 0.0
        %882 = vmatprep.subr.mxu0 0.0
        %883 = vmatpush1.msra.mxu0 0.0
        %884 = vmatprep.subr.mxu0 0.0
        %885 = vmatpush1.msra.mxu0 0.0
        %886 = vmatprep.subr.mxu0 0.0
        %887 = vmatpush1.msra.mxu0 0.0
        %888 = vmatprep.subr.mxu0 0.0
        %889 = vmatpush1.msra.mxu0 0.0
        %890 = vmatprep.mubr.f32.mxu0 0.0
        %891 = vmatmul.mubr.f32.gmra.mrb[0].mxu0 %v821
        %v892 = vpop.f32.mrb[0].mxu0
        %v893 = vadd.f32 0.0, %v892
        %v894 = vpop.f32.mrb[0].mxu0
        %895 = vdwg.mxu0
        %v897 = vsel %vm803, %v818, 0
        %899 = vmatprep.subr.mxu0 0.0
        %900 = vmatpush1.msra.mxu0 %v897
        %901 = vmatprep.subr.mxu0 0.0
        %902 = vmatpush1.msra.mxu0 0.0
        %903 = vmatprep.subr.mxu0 0.0
        %904 = vmatpush1.msra.mxu0 0.0
        %905 = vmatprep.subr.mxu0 0.0
        %906 = vmatpush1.msra.mxu0 0.0
        %907 = vmatprep.subr.mxu0 0.0
        %908 = vmatpush1.msra.mxu0 0.0
        %909 = vmatprep.subr.mxu0 0.0
        %910 = vmatpush1.msra.mxu0 0.0
        %911 = vmatprep.subr.mxu0 0.0
        %912 = vmatpush1.msra.mxu0 0.0
        %913 = vmatprep.subr.mxu0 0.0
        %914 = vmatpush1.msra.mxu0 0.0
        %915 = vmatprep.subr.mxu0 0.0
        %916 = vmatpush1.msra.mxu0 0.0
        %917 = vmatprep.subr.mxu0 0.0
        %918 = vmatpush1.msra.mxu0 0.0
        %919 = vmatprep.subr.mxu0 0.0
        %920 = vmatpush1.msra.mxu0 0.0
        %921 = vmatprep.subr.mxu0 0.0
        %922 = vmatpush1.msra.mxu0 0.0
        %923 = vmatprep.subr.mxu0 0.0
        %924 = vmatpush1.msra.mxu0 0.0
        %925 = vmatprep.subr.mxu0 0.0
        %926 = vmatpush1.msra.mxu0 0.0
        %927 = vmatprep.subr.mxu0 0.0
        %928 = vmatpush1.msra.mxu0 0.0
        %929 = vmatprep.subr.mxu0 0.0
        %930 = vmatpush1.msra.mxu0 0.0
        %931 = vmatprep.subr.mxu0 0.0
        %932 = vmatpush1.msra.mxu0 0.0
        %933 = vmatprep.subr.mxu0 0.0
        %934 = vmatpush1.msra.mxu0 0.0
        %935 = vmatprep.subr.mxu0 0.0
        %936 = vmatpush1.msra.mxu0 0.0
        %937 = vmatprep.subr.mxu0 0.0
        %938 = vmatpush1.msra.mxu0 0.0
        %939 = vmatprep.subr.mxu0 0.0
        %940 = vmatpush1.msra.mxu0 0.0
        %941 = vmatprep.subr.mxu0 0.0
        %942 = vmatpush1.msra.mxu0 0.0
        %943 = vmatprep.subr.mxu0 0.0
        %944 = vmatpush1.msra.mxu0 0.0
        %945 = vmatprep.subr.mxu0 0.0
        %946 = vmatpush1.msra.mxu0 0.0
        %947 = vmatprep.subr.mxu0 0.0
        %948 = vmatpush1.msra.mxu0 0.0
        %949 = vmatprep.subr.mxu0 0.0
        %950 = vmatpush1.msra.mxu0 0.0
        %951 = vmatprep.subr.mxu0 0.0
        %952 = vmatpush1.msra.mxu0 0.0
        %953 = vmatprep.subr.mxu0 0.0
        %954 = vmatpush1.msra.mxu0 0.0
        %955 = vmatprep.subr.mxu0 0.0
        %956 = vmatpush1.msra.mxu0 0.0
        %957 = vmatprep.subr.mxu0 0.0
        %958 = vmatpush1.msra.mxu0 0.0
        %959 = vmatprep.subr.mxu0 0.0
        %960 = vmatpush1.msra.mxu0 0.0
        %961 = vmatprep.subr.mxu0 0.0
        %962 = vmatpush1.msra.mxu0 0.0
        %963 = vmatprep.mubr.f32.mxu0 0.0
        %964 = vmatmul.mubr.f32.gmra.mrb[0].mxu0 %v821
        %v965 = vpop.f32.mrb[0].mxu0
        %v966 = vadd.f32 0.0, %v965
        %v967 = vpop.f32.mrb[0].mxu0
        %968 = vdwg.mxu0
        %969 = vrot.lane.b32.xlu0 %v350, 117
        %v970 = vpop.permute.xlu0 %969
        %v972 = vmul.f32 %v966, %v970
        %v973 = vmul.f32 %v893, %v972
        %975 = vrot.lane.b32.xlu0 %v973, 12
        %v976 = vpop.permute.xlu0 %975
        %v978 = vsub.f32 %v350, %v976
        %980 = vset.pattern.permute.xlu0 0
        %981 = vperm.xlu0 %980, %v972
        %v982 = vpop.permute.xlu0 %981
        %v984 = vmul.f32 %v653, %v982
        %v985 = vmul.f32 %v654, %v982
        %987 = vset.pattern.permute.xlu0 12
        %988 = vperm.xlu0 %987, %v978
        %v989 = vpop.permute.xlu0 %988
        %v991 = vadd.f32 %v984, %v989
        %v992 = vadd.f32 %v985, %v989
        %v993 = vmax.f32 %v991, 0.0
        %v994 = vmax.f32 %v992, 0.0
        %v995 = vld [vmem:[#allocation2] sm:$0xff]
        %997 = vset.pattern.permute.xlu0 9
        %998 = vperm.xlu0 %997, %v351
        %v999 = vpop.permute.xlu0 %998
        %v1002 = vsel %vm655, %v995, 0
        %1004 = vmatprep.subr.mxu0 %v994
        %1005 = vmatpush1.msra.mxu0 %v993
        %1006 = vmatprep.subr.mxu0 0.0
        %1007 = vmatpush1.msra.mxu0 0.0
        %1008 = vmatprep.subr.mxu0 0.0
        %1009 = vmatpush1.msra.mxu0 0.0
        %1010 = vmatprep.subr.mxu0 0.0
        %1011 = vmatpush1.msra.mxu0 0.0
        %1012 = vmatprep.subr.mxu0 0.0
        %1013 = vmatpush1.msra.mxu0 0.0
        %1014 = vmatprep.subr.mxu0 0.0
        %1015 = vmatpush1.msra.mxu0 0.0
        %1016 = vmatprep.subr.mxu0 0.0
        %1017 = vmatpush1.msra.mxu0 0.0
        %1018 = vmatprep.subr.mxu0 0.0
        %1019 = vmatpush1.msra.mxu0 0.0
        %1020 = vmatprep.subr.mxu0 0.0
        %1021 = vmatpush1.msra.mxu0 0.0
        %1022 = vmatprep.subr.mxu0 0.0
        %1023 = vmatpush1.msra.mxu0 0.0
        %1024 = vmatprep.subr.mxu0 0.0
        %1025 = vmatpush1.msra.mxu0 0.0
        %1026 = vmatprep.subr.mxu0 0.0
        %1027 = vmatpush1.msra.mxu0 0.0
        %1028 = vmatprep.subr.mxu0 0.0
        %1029 = vmatpush1.msra.mxu0 0.0
        %1030 = vmatprep.subr.mxu0 0.0
        %1031 = vmatpush1.msra.mxu0 0.0
        %1032 = vmatprep.subr.mxu0 0.0
        %1033 = vmatpush1.msra.mxu0 0.0
        %1034 = vmatprep.subr.mxu0 0.0
        %1035 = vmatpush1.msra.mxu0 0.0
        %1036 = vmatprep.subr.mxu0 0.0
        %1037 = vmatpush1.msra.mxu0 0.0
        %1038 = vmatprep.subr.mxu0 0.0
        %1039 = vmatpush1.msra.mxu0 0.0
        %1040 = vmatprep.subr.mxu0 0.0
        %1041 = vmatpush1.msra.mxu0 0.0
        %1042 = vmatprep.subr.mxu0 0.0
        %1043 = vmatpush1.msra.mxu0 0.0
        %1044 = vmatprep.subr.mxu0 0.0
        %1045 = vmatpush1.msra.mxu0 0.0
        %1046 = vmatprep.subr.mxu0 0.0
        %1047 = vmatpush1.msra.mxu0 0.0
        %1048 = vmatprep.subr.mxu0 0.0
        %1049 = vmatpush1.msra.mxu0 0.0
        %1050 = vmatprep.subr.mxu0 0.0
        %1051 = vmatpush1.msra.mxu0 0.0
        %1052 = vmatprep.subr.mxu0 0.0
        %1053 = vmatpush1.msra.mxu0 0.0
        %1054 = vmatprep.subr.mxu0 0.0
        %1055 = vmatpush1.msra.mxu0 0.0
        %1056 = vmatprep.subr.mxu0 0.0
        %1057 = vmatpush1.msra.mxu0 0.0
        %1058 = vmatprep.subr.mxu0 0.0
        %1059 = vmatpush1.msra.mxu0 0.0
        %1060 = vmatprep.subr.mxu0 0.0
        %1061 = vmatpush1.msra.mxu0 0.0
        %1062 = vmatprep.subr.mxu0 0.0
        %1063 = vmatpush1.msra.mxu0 0.0
        %1064 = vmatprep.subr.mxu0 0.0
        %1065 = vmatpush1.msra.mxu0 0.0
        %1066 = vmatprep.subr.mxu0 0.0
        %1067 = vmatpush1.msra.mxu0 0.0
        %1068 = vmatprep.mubr.f32.mxu0 0.0
        %1069 = vmatmul.mubr.f32.gmra.mrb[0].mxu0 %v1002
        %v1070 = vpop.f32.mrb[0].mxu0
        %v1071 = vadd.f32 %v999, %v1070
        %v1072 = vpop.f32.mrb[0].mxu0
        %v1073 = vadd.f32 %v999, %v1072
        %1074 = vdwg.mxu0
        %1075 = vset.pattern.permute.xlu0 4
        %1076 = vperm.xlu0 %1075, %v351
        %v1077 = vpop.permute.xlu0 %1076
        %v1079 = vmul.f32 %v1077, %v1071
        %v1080 = vmul.f32 %v1077, %v1073
        %1081 = vset.pattern.permute.xlu0 10
        %1082 = vperm.xlu0 %1081, %v351
        %v1083 = vpop.permute.xlu0 %1082
        %v1085 = vadd.f32 %v1079, %v1083
        %v1086 = vadd.f32 %v1080, %v1083
        %1087 = vrot.lane.b32.xlu0 %v1071, 17
        %v1088 = vpop.permute.xlu0 %1087
        %1089 = vrot.lane.b32.xlu0 %v1073, 17
        %v1090 = vpop.permute.xlu0 %1089
        %v1091 = vsel %vm459, %v1088, %v1090
        %v1092 = vsel %vm459, %v1090, %v1088
        %v1093 = vmul.f32 %v1092, %v465
        %v1094 = vmul.f32 %v1091, %v469
        %1095 = vset.pattern.permute.xlu0 0
        %1096 = vperm.xlu0 %1095, %v351
        %v1097 = vpop.permute.xlu0 %1096
        %v1099 = vmul.f32 %v1097, %v1093
        %v1100 = vmul.f32 %v1097, %v1094
        %v1101 = vadd.f32 %v1085, %v1099
        %v1102 = vadd.f32 %v1086, %v1100
        %1103 = vrot.lane.b32.xlu0 %v1071, 16
        %v1104 = vpop.permute.xlu0 %1103
        %1105 = vrot.lane.b32.xlu0 %v1073, 16
        %v1106 = vpop.permute.xlu0 %1105
        %v1107 = vsel %vm484, %v1104, %v1106
        %v1108 = vsel %vm484, %v1106, %v1104
        %v1109 = vmul.f32 %v1108, %v490
        %v1110 = vmul.f32 %v1107, %v494
        %1111 = vset.pattern.permute.xlu0 1
        %1112 = vperm.xlu0 %1111, %v351
        %v1113 = vpop.permute.xlu0 %1112
        %v1115 = vmul.f32 %v1113, %v1109
        %v1116 = vmul.f32 %v1113, %v1110
        %v1117 = vadd.f32 %v1101, %v1115
        %v1118 = vadd.f32 %v1102, %v1116
        %1119 = vrot.lane.b32.xlu0 %v1071, 15
        %v1120 = vpop.permute.xlu0 %1119
        %1121 = vrot.lane.b32.xlu0 %v1073, 15
        %v1122 = vpop.permute.xlu0 %1121
        %v1123 = vsel %vm509, %v1120, %v1122
        %v1124 = vsel %vm509, %v1122, %v1120
        %v1125 = vmul.f32 %v1124, %v515
        %v1126 = vmul.f32 %v1123, %v519
        %1127 = vset.pattern.permute.xlu0 2
        %1128 = vperm.xlu0 %1127, %v351
        %v1129 = vpop.permute.xlu0 %1128
        %v1131 = vmul.f32 %v1129, %v1125
        %v1132 = vmul.f32 %v1129, %v1126
        %v1133 = vadd.f32 %v1117, %v1131
        %v1134 = vadd.f32 %v1118, %v1132
        %1135 = vrot.lane.b32.xlu0 %v1071, 1
        %v1136 = vpop.permute.xlu0 %1135
        %1137 = vrot.lane.b32.xlu0 %v1073, 1
        %v1138 = vpop.permute.xlu0 %1137
        %v1139 = vsel %vm534, %v1136, %v1138
        %v1140 = vsel %vm534, %v1138, %v1136
        %v1141 = vmul.f32 %v1140, %v540
        %v1142 = vmul.f32 %v1139, %v544
        %1143 = vset.pattern.permute.xlu0 3
        %1144 = vperm.xlu0 %1143, %v351
        %v1145 = vpop.permute.xlu0 %1144
        %v1147 = vmul.f32 %v1145, %v1141
        %v1148 = vmul.f32 %v1145, %v1142
        %v1149 = vadd.f32 %v1133, %v1147
        %v1150 = vadd.f32 %v1134, %v1148
        %1151 = vrot.lane.b32.xlu0 %v1071, 127
        %v1152 = vpop.permute.xlu0 %1151
        %1153 = vrot.lane.b32.xlu0 %v1073, 127
        %v1154 = vpop.permute.xlu0 %1153
        %v1155 = vsel %vm559, %v1152, %v1154
        %v1156 = vsel %vm559, %v1154, %v1152
        %v1157 = vmul.f32 %v1155, %v565
        %v1158 = vmul.f32 %v1156, %v569
        %1159 = vset.pattern.permute.xlu0 5
        %1160 = vperm.xlu0 %1159, %v351
        %v1161 = vpop.permute.xlu0 %1160
        %v1163 = vmul.f32 %v1161, %v1157
        %v1164 = vmul.f32 %v1161, %v1158
        %v1165 = vadd.f32 %v1149, %v1163
        %v1166 = vadd.f32 %v1150, %v1164
        %1167 = vrot.lane.b32.xlu0 %v1071, 113
        %v1168 = vpop.permute.xlu0 %1167
        %1169 = vrot.lane.b32.xlu0 %v1073, 113
        %v1170 = vpop.permute.xlu0 %1169
        %v1171 = vsel %vm584, %v1168, %v1170
        %v1172 = vsel %vm584, %v1170, %v1168
        %v1173 = vmul.f32 %v1171, %v590
        %v1174 = vmul.f32 %v1172, %v594
        %1175 = vset.pattern.permute.xlu0 6
        %1176 = vperm.xlu0 %1175, %v351
        %v1177 = vpop.permute.xlu0 %1176
        %v1179 = vmul.f32 %v1177, %v1173
        %v1180 = vmul.f32 %v1177, %v1174
        %v1181 = vadd.f32 %v1165, %v1179
        %v1182 = vadd.f32 %v1166, %v1180
        %1183 = vrot.lane.b32.xlu0 %v1071, 112
        %v1184 = vpop.permute.xlu0 %1183
        %1185 = vrot.lane.b32.xlu0 %v1073, 112
        %v1186 = vpop.permute.xlu0 %1185
        %v1187 = vsel %vm609, %v1184, %v1186
        %v1188 = vsel %vm609, %v1186, %v1184
        %v1189 = vmul.f32 %v1187, %v615
        %v1190 = vmul.f32 %v1188, %v619
        %1191 = vset.pattern.permute.xlu0 7
        %1192 = vperm.xlu0 %1191, %v351
        %v1193 = vpop.permute.xlu0 %1192
        %v1195 = vmul.f32 %v1193, %v1189
        %v1196 = vmul.f32 %v1193, %v1190
        %v1197 = vadd.f32 %v1181, %v1195
        %v1198 = vadd.f32 %v1182, %v1196
        %1199 = vrot.lane.b32.xlu0 %v1071, 111
        %v1200 = vpop.permute.xlu0 %1199
        %1201 = vrot.lane.b32.xlu0 %v1073, 111
        %v1202 = vpop.permute.xlu0 %1201
        %v1203 = vsel %vm634, %v1200, %v1202
        %v1204 = vsel %vm634, %v1202, %v1200
        %v1205 = vmul.f32 %v1203, %v640
        %v1206 = vmul.f32 %v1204, %v644
        %1207 = vset.pattern.permute.xlu0 8
        %1208 = vperm.xlu0 %1207, %v351
        %v1209 = vpop.permute.xlu0 %1208
        %v1211 = vmul.f32 %v1209, %v1205
        %v1212 = vmul.f32 %v1209, %v1206
        %v1213 = vadd.f32 %v1197, %v1211
        %v1214 = vadd.f32 %v1198, %v1212
        %1215 = vmatprep.subr.mxu0 %v1214
        %1216 = vmatpush1.msra.mxu0 %v1213
        %1217 = vmatprep.subr.mxu0 0.0
        %1218 = vmatpush1.msra.mxu0 0.0
        %1219 = vmatprep.subr.mxu0 0.0
        %1220 = vmatpush1.msra.mxu0 0.0
        %1221 = vmatprep.subr.mxu0 0.0
        %1222 = vmatpush1.msra.mxu0 0.0
        %1223 = vmatprep.subr.mxu0 0.0
        %1224 = vmatpush1.msra.mxu0 0.0
        %1225 = vmatprep.subr.mxu0 0.0
        %1226 = vmatpush1.msra.mxu0 0.0
        %1227 = vmatprep.subr.mxu0 0.0
        %1228 = vmatpush1.msra.mxu0 0.0
        %1229 = vmatprep.subr.mxu0 0.0
        %1230 = vmatpush1.msra.mxu0 0.0
        %1231 = vmatprep.subr.mxu0 0.0
        %1232 = vmatpush1.msra.mxu0 0.0
        %1233 = vmatprep.subr.mxu0 0.0
        %1234 = vmatpush1.msra.mxu0 0.0
        %1235 = vmatprep.subr.mxu0 0.0
        %1236 = vmatpush1.msra.mxu0 0.0
        %1237 = vmatprep.subr.mxu0 0.0
        %1238 = vmatpush1.msra.mxu0 0.0
        %1239 = vmatprep.subr.mxu0 0.0
        %1240 = vmatpush1.msra.mxu0 0.0
        %1241 = vmatprep.subr.mxu0 0.0
        %1242 = vmatpush1.msra.mxu0 0.0
        %1243 = vmatprep.subr.mxu0 0.0
        %1244 = vmatpush1.msra.mxu0 0.0
        %1245 = vmatprep.subr.mxu0 0.0
        %1246 = vmatpush1.msra.mxu0 0.0
        %1247 = vmatprep.subr.mxu0 0.0
        %1248 = vmatpush1.msra.mxu0 0.0
        %1249 = vmatprep.subr.mxu0 0.0
        %1250 = vmatpush1.msra.mxu0 0.0
        %1251 = vmatprep.subr.mxu0 0.0
        %1252 = vmatpush1.msra.mxu0 0.0
        %1253 = vmatprep.subr.mxu0 0.0
        %1254 = vmatpush1.msra.mxu0 0.0
        %1255 = vmatprep.subr.mxu0 0.0
        %1256 = vmatpush1.msra.mxu0 0.0
        %1257 = vmatprep.subr.mxu0 0.0
        %1258 = vmatpush1.msra.mxu0 0.0
        %1259 = vmatprep.subr.mxu0 0.0
        %1260 = vmatpush1.msra.mxu0 0.0
        %1261 = vmatprep.subr.mxu0 0.0
        %1262 = vmatpush1.msra.mxu0 0.0
        %1263 = vmatprep.subr.mxu0 0.0
        %1264 = vmatpush1.msra.mxu0 0.0
        %1265 = vmatprep.subr.mxu0 0.0
        %1266 = vmatpush1.msra.mxu0 0.0
        %1267 = vmatprep.subr.mxu0 0.0
        %1268 = vmatpush1.msra.mxu0 0.0
        %1269 = vmatprep.subr.mxu0 0.0
        %1270 = vmatpush1.msra.mxu0 0.0
        %1271 = vmatprep.subr.mxu0 0.0
        %1272 = vmatpush1.msra.mxu0 0.0
        %1273 = vmatprep.subr.mxu0 0.0
        %1274 = vmatpush1.msra.mxu0 0.0
        %1275 = vmatprep.subr.mxu0 0.0
        %1276 = vmatpush1.msra.mxu0 0.0
        %1277 = vmatprep.subr.mxu0 0.0
        %1278 = vmatpush1.msra.mxu0 0.0
        %1279 = vmatprep.mubr.f32.mxu0 0.0
        %1280 = vmatmul.mubr.f32.gmra.mrb[0].mxu0 %v657
        %v1281 = vpop.f32.mrb[0].mxu0
        %v1282 = vadd.f32 0.0, %v1281
        %v1283 = vpop.f32.mrb[0].mxu0
        %v1284 = vadd.f32 0.0, %v1283
        %1285 = vdwg.mxu0
        %v1286 = vmul.f32 %v1213, %v1213
        %v1287 = vmul.f32 %v1214, %v1214
        %1288 = vmatprep.subr.mxu0 %v1287
        %1289 = vmatpush1.msra.mxu0 %v1286
        %1290 = vmatprep.subr.mxu0 0.0
        %1291 = vmatpush1.msra.mxu0 0.0
        %1292 = vmatprep.subr.mxu0 0.0
        %1293 = vmatpush1.msra.mxu0 0.0
        %1294 = vmatprep.subr.mxu0 0.0
        %1295 = vmatpush1.msra.mxu0 0.0
        %1296 = vmatprep.subr.mxu0 0.0
        %1297 = vmatpush1.msra.mxu0 0.0
        %1298 = vmatprep.subr.mxu0 0.0
        %1299 = vmatpush1.msra.mxu0 0.0
        %1300 = vmatprep.subr.mxu0 0.0
        %1301 = vmatpush1.msra.mxu0 0.0
        %1302 = vmatprep.subr.mxu0 0.0
        %1303 = vmatpush1.msra.mxu0 0.0
        %1304 = vmatprep.subr.mxu0 0.0
        %1305 = vmatpush1.msra.mxu0 0.0
        %1306 = vmatprep.subr.mxu0 0.0
        %1307 = vmatpush1.msra.mxu0 0.0
        %1308 = vmatprep.subr.mxu0 0.0
        %1309 = vmatpush1.msra.mxu0 0.0
        %1310 = vmatprep.subr.mxu0 0.0
        %1311 = vmatpush1.msra.mxu0 0.0
        %1312 = vmatprep.subr.mxu0 0.0
        %1313 = vmatpush1.msra.mxu0 0.0
        %1314 = vmatprep.subr.mxu0 0.0
        %1315 = vmatpush1.msra.mxu0 0.0
        %1316 = vmatprep.subr.mxu0 0.0
        %1317 = vmatpush1.msra.mxu0 0.0
        %1318 = vmatprep.subr.mxu0 0.0
        %1319 = vmatpush1.msra.mxu0 0.0
        %1320 = vmatprep.subr.mxu0 0.0
        %1321 = vmatpush1.msra.mxu0 0.0
        %1322 = vmatprep.subr.mxu0 0.0
        %1323 = vmatpush1.msra.mxu0 0.0
        %1324 = vmatprep.subr.mxu0 0.0
        %1325 = vmatpush1.msra.mxu0 0.0
        %1326 = vmatprep.subr.mxu0 0.0
        %1327 = vmatpush1.msra.mxu0 0.0
        %1328 = vmatprep.subr.mxu0 0.0
        %1329 = vmatpush1.msra.mxu0 0.0
        %1330 = vmatprep.subr.mxu0 0.0
        %1331 = vmatpush1.msra.mxu0 0.0
        %1332 = vmatprep.subr.mxu0 0.0
        %1333 = vmatpush1.msra.mxu0 0.0
        %1334 = vmatprep.subr.mxu0 0.0
        %1335 = vmatpush1.msra.mxu0 0.0
        %1336 = vmatprep.subr.mxu0 0.0
        %1337 = vmatpush1.msra.mxu0 0.0
        %1338 = vmatprep.subr.mxu0 0.0
        %1339 = vmatpush1.msra.mxu0 0.0
        %1340 = vmatprep.subr.mxu0 0.0
        %1341 = vmatpush1.msra.mxu0 0.0
        %1342 = vmatprep.subr.mxu0 0.0
        %1343 = vmatpush1.msra.mxu0 0.0
        %1344 = vmatprep.subr.mxu0 0.0
        %1345 = vmatpush1.msra.mxu0 0.0
        %1346 = vmatprep.subr.mxu0 0.0
        %1347 = vmatpush1.msra.mxu0 0.0
        %1348 = vmatprep.subr.mxu0 0.0
        %1349 = vmatpush1.msra.mxu0 0.0
        %1350 = vmatprep.subr.mxu0 0.0
        %1351 = vmatpush1.msra.mxu0 0.0
        %1352 = vmatprep.mubr.f32.mxu0 0.0
        %1353 = vmatmul.mubr.f32.gmra.mrb[0].mxu0 %v657
        %v1354 = vpop.f32.mrb[0].mxu0
        %v1355 = vadd.f32 0.0, %v1354
        %v1356 = vpop.f32.mrb[0].mxu0
        %v1357 = vadd.f32 0.0, %v1356
        %1358 = vdwg.mxu0
        %v1359 = vsel %vm803, %v1282, 0.0
        %v1360 = vsel %vm803, %v1284, 0.0
        %v1361 = vadd.f32 %v1359, %v1360
        %1362 = vadd.xlane.f32.xlu0 %v1361
        %v1363 = vpop.xlane.xlu0 %1362
        %v1364 = vsel %vm803, %v1355, 0.0
        %v1365 = vsel %vm803, %v1357, 0.0
        %v1366 = vadd.f32 %v1364, %v1365
        %1367 = vadd.xlane.f32.xlu0 %v1366
        %v1368 = vpop.xlane.xlu0 %1367
        %v1369 = vmul.f32 %v1363, %v1363
        %v1370 = vsub.f32 %v1368, %v1369
        %v1371 = vmax.f32 %v1370, 0.0
        %v1372 = vadd.f32 %v1371, 1e-05
        %v1373 = vrsqrt.pop %v1372
        %v1375 = vsel %vm803, %v1363, 0
        %1377 = vmatprep.subr.mxu0 0.0
        %1378 = vmatpush1.msra.mxu0 %v1375
        %1379 = vmatprep.subr.mxu0 0.0
        %1380 = vmatpush1.msra.mxu0 0.0
        %1381 = vmatprep.subr.mxu0 0.0
        %1382 = vmatpush1.msra.mxu0 0.0
        %1383 = vmatprep.subr.mxu0 0.0
        %1384 = vmatpush1.msra.mxu0 0.0
        %1385 = vmatprep.subr.mxu0 0.0
        %1386 = vmatpush1.msra.mxu0 0.0
        %1387 = vmatprep.subr.mxu0 0.0
        %1388 = vmatpush1.msra.mxu0 0.0
        %1389 = vmatprep.subr.mxu0 0.0
        %1390 = vmatpush1.msra.mxu0 0.0
        %1391 = vmatprep.subr.mxu0 0.0
        %1392 = vmatpush1.msra.mxu0 0.0
        %1393 = vmatprep.subr.mxu0 0.0
        %1394 = vmatpush1.msra.mxu0 0.0
        %1395 = vmatprep.subr.mxu0 0.0
        %1396 = vmatpush1.msra.mxu0 0.0
        %1397 = vmatprep.subr.mxu0 0.0
        %1398 = vmatpush1.msra.mxu0 0.0
        %1399 = vmatprep.subr.mxu0 0.0
        %1400 = vmatpush1.msra.mxu0 0.0
        %1401 = vmatprep.subr.mxu0 0.0
        %1402 = vmatpush1.msra.mxu0 0.0
        %1403 = vmatprep.subr.mxu0 0.0
        %1404 = vmatpush1.msra.mxu0 0.0
        %1405 = vmatprep.subr.mxu0 0.0
        %1406 = vmatpush1.msra.mxu0 0.0
        %1407 = vmatprep.subr.mxu0 0.0
        %1408 = vmatpush1.msra.mxu0 0.0
        %1409 = vmatprep.subr.mxu0 0.0
        %1410 = vmatpush1.msra.mxu0 0.0
        %1411 = vmatprep.subr.mxu0 0.0
        %1412 = vmatpush1.msra.mxu0 0.0
        %1413 = vmatprep.subr.mxu0 0.0
        %1414 = vmatpush1.msra.mxu0 0.0
        %1415 = vmatprep.subr.mxu0 0.0
        %1416 = vmatpush1.msra.mxu0 0.0
        %1417 = vmatprep.subr.mxu0 0.0
        %1418 = vmatpush1.msra.mxu0 0.0
        %1419 = vmatprep.subr.mxu0 0.0
        %1420 = vmatpush1.msra.mxu0 0.0
        %1421 = vmatprep.subr.mxu0 0.0
        %1422 = vmatpush1.msra.mxu0 0.0
        %1423 = vmatprep.subr.mxu0 0.0
        %1424 = vmatpush1.msra.mxu0 0.0
        %1425 = vmatprep.subr.mxu0 0.0
        %1426 = vmatpush1.msra.mxu0 0.0
        %1427 = vmatprep.subr.mxu0 0.0
        %1428 = vmatpush1.msra.mxu0 0.0
        %1429 = vmatprep.subr.mxu0 0.0
        %1430 = vmatpush1.msra.mxu0 0.0
        %1431 = vmatprep.subr.mxu0 0.0
        %1432 = vmatpush1.msra.mxu0 0.0
        %1433 = vmatprep.subr.mxu0 0.0
        %1434 = vmatpush1.msra.mxu0 0.0
        %1435 = vmatprep.subr.mxu0 0.0
        %1436 = vmatpush1.msra.mxu0 0.0
        %1437 = vmatprep.subr.mxu0 0.0
        %1438 = vmatpush1.msra.mxu0 0.0
        %1439 = vmatprep.subr.mxu0 0.0
        %1440 = vmatpush1.msra.mxu0 0.0
        %1441 = vmatprep.mubr.f32.mxu0 0.0
        %1442 = vmatmul.mubr.f32.gmra.mrb[0].mxu0 %v821
        %v1443 = vpop.f32.mrb[0].mxu0
        %v1444 = vadd.f32 0.0, %v1443
        %v1445 = vpop.f32.mrb[0].mxu0
        %1446 = vdwg.mxu0
        %v1448 = vsel %vm803, %v1373, 0
        %1450 = vmatprep.subr.mxu0 0.0
        %1451 = vmatpush1.msra.mxu0 %v1448
        %1452 = vmatprep.subr.mxu0 0.0
        %1453 = vmatpush1.msra.mxu0 0.0
        %1454 = vmatprep.subr.mxu0 0.0
        %1455 = vmatpush1.msra.mxu0 0.0
        %1456 = vmatprep.subr.mxu0 0.0
        %1457 = vmatpush1.msra.mxu0 0.0
        %1458 = vmatprep.subr.mxu0 0.0
        %1459 = vmatpush1.msra.mxu0 0.0
        %1460 = vmatprep.subr.mxu0 0.0
        %1461 = vmatpush1.msra.mxu0 0.0
        %1462 = vmatprep.subr.mxu0 0.0
        %1463 = vmatpush1.msra.mxu0 0.0
        %1464 = vmatprep.subr.mxu0 0.0
        %1465 = vmatpush1.msra.mxu0 0.0
        %1466 = vmatprep.subr.mxu0 0.0
        %1467 = vmatpush1.msra.mxu0 0.0
        %1468 = vmatprep.subr.mxu0 0.0
        %1469 = vmatpush1.msra.mxu0 0.0
        %1470 = vmatprep.subr.mxu0 0.0
        %1471 = vmatpush1.msra.mxu0 0.0
        %1472 = vmatprep.subr.mxu0 0.0
        %1473 = vmatpush1.msra.mxu0 0.0
        %1474 = vmatprep.subr.mxu0 0.0
        %1475 = vmatpush1.msra.mxu0 0.0
        %1476 = vmatprep.subr.mxu0 0.0
        %1477 = vmatpush1.msra.mxu0 0.0
        %1478 = vmatprep.subr.mxu0 0.0
        %1479 = vmatpush1.msra.mxu0 0.0
        %1480 = vmatprep.subr.mxu0 0.0
        %1481 = vmatpush1.msra.mxu0 0.0
        %1482 = vmatprep.subr.mxu0 0.0
        %1483 = vmatpush1.msra.mxu0 0.0
        %1484 = vmatprep.subr.mxu0 0.0
        %1485 = vmatpush1.msra.mxu0 0.0
        %1486 = vmatprep.subr.mxu0 0.0
        %1487 = vmatpush1.msra.mxu0 0.0
        %1488 = vmatprep.subr.mxu0 0.0
        %1489 = vmatpush1.msra.mxu0 0.0
        %1490 = vmatprep.subr.mxu0 0.0
        %1491 = vmatpush1.msra.mxu0 0.0
        %1492 = vmatprep.subr.mxu0 0.0
        %1493 = vmatpush1.msra.mxu0 0.0
        %1494 = vmatprep.subr.mxu0 0.0
        %1495 = vmatpush1.msra.mxu0 0.0
        %1496 = vmatprep.subr.mxu0 0.0
        %1497 = vmatpush1.msra.mxu0 0.0
        %1498 = vmatprep.subr.mxu0 0.0
        %1499 = vmatpush1.msra.mxu0 0.0
        %1500 = vmatprep.subr.mxu0 0.0
        %1501 = vmatpush1.msra.mxu0 0.0
        %1502 = vmatprep.subr.mxu0 0.0
        %1503 = vmatpush1.msra.mxu0 0.0
        %1504 = vmatprep.subr.mxu0 0.0
        %1505 = vmatpush1.msra.mxu0 0.0
        %1506 = vmatprep.subr.mxu0 0.0
        %1507 = vmatpush1.msra.mxu0 0.0
        %1508 = vmatprep.subr.mxu0 0.0
        %1509 = vmatpush1.msra.mxu0 0.0
        %1510 = vmatprep.subr.mxu0 0.0
        %1511 = vmatpush1.msra.mxu0 0.0
        %1512 = vmatprep.subr.mxu0 0.0
        %1513 = vmatpush1.msra.mxu0 0.0
        %1514 = vmatprep.mubr.f32.mxu0 0.0
        %1515 = vmatmul.mubr.f32.gmra.mrb[0].mxu0 %v821
        %v1516 = vpop.f32.mrb[0].mxu0
        %v1517 = vadd.f32 0.0, %v1516
        %v1518 = vpop.f32.mrb[0].mxu0
        %1519 = vdwg.mxu0
        %1520 = vrot.lane.b32.xlu0 %v351, 117
        %v1521 = vpop.permute.xlu0 %1520
        %v1523 = vmul.f32 %v1517, %v1521
        %v1524 = vmul.f32 %v1444, %v1523
        %1526 = vrot.lane.b32.xlu0 %v1524, 12
        %v1527 = vpop.permute.xlu0 %1526
        %v1529 = vsub.f32 %v351, %v1527
        %1531 = vset.pattern.permute.xlu0 0
        %1532 = vperm.xlu0 %1531, %v1523
        %v1533 = vpop.permute.xlu0 %1532
        %v1535 = vmul.f32 %v1213, %v1533
        %v1536 = vmul.f32 %v1214, %v1533
        %1538 = vset.pattern.permute.xlu0 12
        %1539 = vperm.xlu0 %1538, %v1529
        %v1540 = vpop.permute.xlu0 %1539
        %v1542 = vadd.f32 %v1535, %v1540
        %v1543 = vadd.f32 %v1536, %v1540
        %v1544 = vmax.f32 %v1542, 0.0
        %v1545 = vmax.f32 %v1543, 0.0
        %1546 = vst [vmem:[%s336] sm:$0xff] %v1544
        %1547 = vst [vmem:[%s336 + $0x8] sm:$0xff] %v1545
        %s1548 = sand.u32 %s205, 1
        %s1549 = scalar_lea.sflag [#allocation4], %s1548
        %s1550 = sand.u32 %s205, 1
        %s1551 = smul.addr %s1550, 16
        %s1552 = scalar_lea.vmem [#allocation8], %s1551
        // Predicated region
        $region65: #{tpu_custom_call.1} parent=51 // pred_check
          %p1553 = pneg %p215
        $region66: #{tpu_custom_call.1} parent=51 // pred_check_branch
          %1555 = sbr.rel (%p1553) target = $region68
        $region67: #{tpu_custom_call.1} parent=51 // pred_region
          %s1557 = ssub.s32 256, 256
          %1558 = vsyncadd %s1549, %s1557
          %s1559 = smul.addr %s24, 2
          %s1560 = smul.addr %s1559, 128
          %s1561 = scalar_lea.hbm %s8, %s1560
          %s1563 = sshll.u32 %s1552, 4
          %s1564 = int_to_ptr.vmem [resolvable:$true] %s1563
          %1566 = dma.vmem_to_hbm [thread:$0]  %s1564, 256, %s1561, %s1549
        $region68: #{tpu_custom_call.1} parent=51 // pred_fallthru
          _
      $region52: #{tpu_custom_call.1} parent=5 // pred_fallthru
        _
      %p1567 = scmp.le.s32.totalorder 2, %s19
      // Predicated region
      $region69: #{tpu_custom_call.1} parent=5 // pred_check
        %p1568 = pneg %p1567
      $region70: #{tpu_custom_call.1} parent=5 // pred_check_branch
        %1570 = sbr.rel (%p1568) target = $region72
      $region71: #{tpu_custom_call.1} parent=5 // pred_region
        %s1571 = ssub.s32 %s19, 2
        // Predicated region
        $region73: #{tpu_custom_call.1} parent=71 // pred_check
          %p1572 = pneg %p221
        $region74: #{tpu_custom_call.1} parent=71 // pred_check_branch
          %1574 = sbr.rel (%p1572) target = $region76
        $region75: #{tpu_custom_call.1} parent=71 // pred_region
          %s1575 = sand.u32 %s206, 1
          %s1576 = scalar_lea.sflag [#allocation4], %s1575
          %s1577 = sand.u32 %s206, 1
          %s1578 = smul.addr %s1577, 16
          %s1579 = scalar_lea.vmem [#allocation8], %s1578
          %1580 = dma.done %s1576, 256
        $region76: #{tpu_custom_call.1} parent=71 // pred_fallthru
          _
      $region72: #{tpu_custom_call.1} parent=5 // pred_fallthru
        _
    $region6: #{tpu_custom_call.1} parent=1 // loop_footer
      %s23 = sadd.s32 1, %s19
    $region7: #{tpu_custom_call.1} parent=1 // loop_footer_branch
      %18 = sbr.rel target = $region3
    $region8: #{tpu_custom_call.1} parent=1 // loop_exit
      _
    %1581 = vsyncpa [#allocation3], 1
    %s1582 = scalar_lea.sflag [#allocation3], 1
    %1583 = vsyncpa %s1582, 1
    %1584 = vsyncpa [#allocation6], 1
    %1585 = vsyncpa [#allocation4], 1
    %s1586 = scalar_lea.sflag [#allocation4], 1
    %1587 = vsyncpa %s1586, 1

</llo_original>
